<compile_context>
chip_gen: v7x
topology: tpu7x:2x2x1
jax: 0.10.0
libtpu: 0.0.40
codegen_flags: <defaults>
</compile_context>

<pallas_src>
import functools

import jax
import jax.numpy as jnp
from jax.experimental import pallas as pl
from jax.experimental.pallas import tpu as pltpu

_LAYER_CHANNELS = [(3, 16), (16, 32), (32, 64), (64, 128)]
_BN_EPS = 1e-5
_HEAD_LANES = 128              # head output padded lane-dense
_L0_K = 32                     # 27 im2col channels zero-padded to 32 lanes
MATMUL_DTYPE = jnp.bfloat16    # MXU operand dtype (accumulation stays f32)


def _layer_geometry(H, W):
    """Static per-layer geometry: (H, W, Cin, Cout, Wp, Pw, Pbuf)."""
    geo = []
    h, w = H, W
    for i, (cin, cout) in enumerate(_LAYER_CHANNELS):
        wp = w + 2                    # padded width
        pw = h * wp                   # "wide" conv output rows (2 junk cols/row)
        pbuf = (h + 3) * wp           # padded flat input buffer + 1 slack row
        geo.append((h, w, cin, cout, wp, pw, pbuf))
        if i < len(_LAYER_CHANNELS) - 1:
            h, w = h // 2, w // 2
    return geo


# ---------------------------------------------------------------------------
# Fused kernel: whole network for one image per grid step
# ---------------------------------------------------------------------------
def _fused_kernel(geo,
                  x_ref,
                  w0, s0, b0, w1, s1, b1, w2, s2, b2, w3, s3, b3,
                  wh, bh,
                  o_ref,
                  buf1, buf2, buf3, ywide):
    f32 = jnp.float32
    bufs = [None, buf1, buf2, buf3]
    ws = [w0, w1, w2, w3]
    ss = [s0, s1, s2, s3]
    bs = [b0, b1, b2, b3]

    # --- zero ONLY the halo cells of the padded layer-1..3 input buffers ----
    # The interior (rows 1..H, cols 1..W) is fully overwritten by the fused
    # pool every grid step, so a full O(H*W) re-zero is unnecessary; the halo
    # (pad rows, pad columns, slack) is O(H+W) and re-zeroing it every step is
    # correct regardless of how the batch grid is split across cores.
    for l in (1, 2, 3):
        H, W, Cin, _, Wp, _, _ = geo[l]
        buf = bufs[l]
        # top pad row + col 0 of row 1
        buf[pl.ds(0, Wp + 1), :] = jnp.zeros((Wp + 1, Cin), f32)
        # (col W+1 of row r, col 0 of row r+1) are adjacent -> one 2-cell store
        for r in range(1, H):
            buf[pl.ds(r * Wp + W + 1, 2), :] = jnp.zeros((2, Cin), f32)
        # col W+1 of row H + bottom pad row + slack row
        buf[pl.ds(H * Wp + W + 1, 2 * Wp + 1), :] = (
            jnp.zeros((2 * Wp + 1, Cin), f32))

    # --- vectorized fused 2x2 max-pool -------------------------------------
    def pool_into(y, src_stride, n_rows, dst_buf, geo_next):
        """y: (n_rows, C) conv output with flat row stride `src_stride`.
        Writes the pooled result into the interior of the next layer's
        zero-padded flat input buffer."""
        C = y.shape[-1]
        Hn, Wn, Wpn = geo_next[0], geo_next[1], geo_next[4]
        ywide[0:n_rows, 0:C] = y
        pm = n_rows - src_stride - 1
        # max over the 2x2 window = max of 4 offset views (full-tile VPU ops)
        blockmax = jnp.maximum(
            jnp.maximum(ywide[pl.ds(0, pm), 0:C],
                        ywide[pl.ds(1, pm), 0:C]),
            jnp.maximum(ywide[pl.ds(src_stride, pm), 0:C],
                        ywide[pl.ds(src_stride + 1, pm), 0:C]))
        ywide[0:pm, 0:C] = blockmax
        # per output row: one stride-2 downsample load + one store
        for r in range(Hn):
            dst_buf[pl.ds((r + 1) * Wpn + 1, Wn), :] = (
                ywide[pl.ds(2 * r * src_stride, Wn, 2), 0:C])

    # ---------------- layer 0: pre-im2col'd input, single matmul ------------
    H0, W0 = geo[0][0], geo[0][1]
    acc = jnp.dot(x_ref[0], w0[...], preferred_element_type=f32)  # (H0*W0, 16)
    y = jnp.maximum(acc * s0[...] + b0[...], 0.0)
    pool_into(y, W0, H0 * W0, buf1, geo[1])

    # ---------------- layers 1-3: 9 accumulating per-tap matmuls ------------
    for l in (1, 2, 3):
        H, W, Cin, Cout, Wp, Pw, _ = geo[l]
        buf_in = bufs[l]
        acc = None
        for t in range(9):
            dy, dx = t // 3, t % 3
            tap = buf_in[pl.ds(dy * Wp + dx, Pw), :].astype(MATMUL_DTYPE)
            wt = ws[l][pl.ds(t * Cin, Cin), :]                  # (Cin, Cout)
            d = jnp.dot(tap, wt, preferred_element_type=f32)
            acc = d if acc is None else acc + d
        # folded BatchNorm (eval-mode running stats) + ReLU, in f32
        y = jnp.maximum(acc * ss[l][...] + bs[l][...], 0.0)
        if l < 3:
            pool_into(y, Wp, Pw, bufs[l + 1], geo[l + 1])

    # ---------------- fused classifier + regressor heads --------------------
    head = jnp.dot(y.astype(MATMUL_DTYPE), wh[...],
                   preferred_element_type=f32) + bh[...]
    o_ref[0] = head.astype(o_ref.dtype)


# ---------------------------------------------------------------------------
# Parameters
# ---------------------------------------------------------------------------
def init_params(key, num_classes=1):
    params = {}
    keys = jax.random.split(key, 6 * len(_LAYER_CHANNELS) + 4)
    ki = 0
    for i, (cin, cout) in enumerate(_LAYER_CHANNELS):
        w = 0.1 * jax.random.normal(keys[ki], (3, 3, cin, cout), jnp.float32); ki += 1
        b = 0.1 * jax.random.normal(keys[ki], (cout,), jnp.float32); ki += 1
        gamma = 1.0 + 0.1 * jax.random.normal(keys[ki], (cout,), jnp.float32); ki += 1
        beta = 0.1 * jax.random.normal(keys[ki], (cout,), jnp.float32); ki += 1
        mean = 0.1 * jax.random.normal(keys[ki], (cout,), jnp.float32); ki += 1
        var = 0.5 + jnp.abs(jax.random.normal(keys[ki], (cout,), jnp.float32)); ki += 1
        scale = gamma / jnp.sqrt(var + _BN_EPS)
        shift = (b - mean) * scale + beta
        params[f"conv{i}"] = (w, scale, shift)
    params["cls_w"] = 0.1 * jax.random.normal(keys[ki], (128, num_classes), jnp.float32); ki += 1
    params["cls_b"] = 0.1 * jax.random.normal(keys[ki], (num_classes,), jnp.float32); ki += 1
    params["reg_w"] = 0.1 * jax.random.normal(keys[ki], (128, 4), jnp.float32); ki += 1
    params["reg_b"] = 0.1 * jax.random.normal(keys[ki], (4,), jnp.float32); ki += 1
    return params


def pack_params(params, num_classes):
    """Pack weights into the VMEM-resident, MXU-friendly layout."""
    packed = {"num_classes": num_classes}
    for l, (cin, cout) in enumerate(_LAYER_CHANNELS):
        w, scale, shift = params[f"conv{l}"]
        wr = w.reshape(9 * cin, cout)              # row = (ky*3+kx)*cin + c
        if l == 0:
            wr = jnp.zeros((_L0_K, cout), jnp.float32).at[:9 * cin, :].set(wr)
        packed[f"w{l}"] = wr.astype(MATMUL_DTYPE)
        packed[f"s{l}"] = scale.reshape(1, cout).astype(jnp.float32)
        packed[f"b{l}"] = shift.reshape(1, cout).astype(jnp.float32)
    nc = num_classes
    wh = jnp.concatenate([params["cls_w"], params["reg_w"]], axis=1)
    wh = jnp.zeros((128, _HEAD_LANES), jnp.float32).at[:, :nc + 4].set(wh)
    bh = jnp.concatenate([params["cls_b"], params["reg_b"]])
    bh = jnp.zeros((_HEAD_LANES,), jnp.float32).at[:nc + 4].set(bh)
    packed["wh"] = wh.astype(MATMUL_DTYPE)
    packed["bh"] = bh.reshape(1, -1).astype(jnp.float32)
    return packed


def _tile_bytes(shape, dtype):
    dims = list(shape)
    dims[-1] = -(-dims[-1] // 128) * 128
    if len(dims) >= 2:
        dims[-2] = -(-dims[-2] // 8) * 8
    n = 1
    for d in dims:
        n *= int(d)
    return n * jnp.dtype(dtype).itemsize


# ---------------------------------------------------------------------------
# Forward pass (single fused pallas_call)
# ---------------------------------------------------------------------------
def missile_detector_forward(packed, x_nchw):
    N, Cin, H, W = x_nchw.shape
    assert Cin == _LAYER_CHANNELS[0][0] and H % 8 == 0 and W % 8 == 0
    geo = _layer_geometry(H, W)
    nc = packed["num_classes"]

    # NCHW -> NHWC; im2col ONLY layer 0 in the wrapper (3 -> 27 channels,
    # zero-padded to 32 lanes, pre-cast to bf16): lane-dense input DMA and a
    # single dense-K first-layer matmul.
    x = jnp.transpose(x_nchw, (0, 2, 3, 1))
    xp = jnp.pad(x, ((0, 0), (1, 1), (1, 1), (0, 0)))
    taps = [xp[:, ky:ky + H, kx:kx + W, :] for ky in range(3) for kx in range(3)]
    x27 = jnp.concatenate(taps, axis=-1)                       # (N, H, W, 27)
    x0 = jnp.pad(x27, ((0, 0), (0, 0), (0, 0), (0, _L0_K - 27)))
    x0 = x0.reshape(N, H * W, _L0_K).astype(MATMUL_DTYPE)

    H3, W3, _, _, Wp3, Pw3, _ = geo[3]

    kernel = functools.partial(_fused_kernel, geo)
    const2 = lambda n: (0, 0)

    in_specs, args, block_defs = [], [], []

    def add_input(arr, block_shape, index_map):
        in_specs.append(pl.BlockSpec(block_shape, index_map))
        args.append(arr)
        block_defs.append((block_shape, arr.dtype))

    add_input(x0, (1, H * W, _L0_K), lambda n: (n, 0, 0))
    for l, (cin, cout) in enumerate(_LAYER_CHANNELS):
        kdim = _L0_K if l == 0 else 9 * cin
        add_input(packed[f"w{l}"], (kdim, cout), const2)
        add_input(packed[f"s{l}"], (1, cout), const2)
        add_input(packed[f"b{l}"], (1, cout), const2)
    add_input(packed["wh"], (_LAYER_CHANNELS[-1][1], _HEAD_LANES), const2)
    add_input(packed["bh"], (1, _HEAD_LANES), const2)

    # Scratch: zero-padded flat activation buffers (exact Cin lane width) for
    # layers 1-3 plus one shared pool staging buffer.
    scratch_defs = [((geo[l][6], geo[l][2]), jnp.float32) for l in (1, 2, 3)]
    scratch_defs.append(((H * W, _LAYER_CHANNELS[2][1]), jnp.float32))   # ywide
    scratch = [pltpu.VMEM(s, d) for s, d in scratch_defs]

    # VMEM budget sized from the actual footprint (double-buffered blocks).
    vmem_est = sum(_tile_bytes(s, d) for s, d in scratch_defs)
    vmem_est += 2 * sum(_tile_bytes(s, d) for s, d in block_defs)
    vmem_est += 2 * _tile_bytes((Pw3, _HEAD_LANES), jnp.float32)
    vmem_limit = int(min(128 << 20, max(32 << 20, 1.5 * vmem_est + (4 << 20))))

    out_wide = pl.pallas_call(
        kernel,
        out_shape=jax.ShapeDtypeStruct((N, Pw3, _HEAD_LANES), jnp.float32),
        grid=(N,),
        in_specs=in_specs,
        out_specs=pl.BlockSpec((1, Pw3, _HEAD_LANES), lambda n: (n, 0, 0)),
        scratch_shapes=scratch,
        compiler_params=pltpu.CompilerParams(
            dimension_semantics=("parallel",),
            vmem_limit_bytes=vmem_limit),
    )(*args)

    # Wide rows are (y, x') with x' in [0, W3+2); keep the W3 valid columns
    # and the nc+4 valid head lanes.
    out = out_wide.reshape(N, H3, Wp3, _HEAD_LANES)[:, :, :W3, :nc + 4]
    cls = jnp.transpose(out[..., :nc], (0, 3, 1, 2))          # NCHW
    reg = jnp.transpose(out[..., nc:], (0, 3, 1, 2))
    return cls, reg


# Pure-JAX f32 reference (correctness check only; not part of the kernel path).
def reference_forward(params, x_nchw):
    x = jnp.transpose(x_nchw, (0, 2, 3, 1))
    for i in range(len(_LAYER_CHANNELS)):
        w, scale, shift = params[f"conv{i}"]
        y = jax.lax.conv_general_dilated(
            x, w, (1, 1), "SAME", dimension_numbers=("NHWC", "HWIO", "NHWC"))
        x = jnp.maximum(y * scale + shift, 0.0)
        if i < 3:
            N, H, W, C = x.shape
            x = x.reshape(N, H // 2, 2, W // 2, 2, C).max(axis=(2, 4))
    cls = jnp.einsum("nhwc,co->nhwo", x, params["cls_w"]) + params["cls_b"]
    reg = jnp.einsum("nhwc,co->nhwo", x, params["reg_w"]) + params["reg_b"]
    return jnp.transpose(cls, (0, 3, 1, 2)), jnp.transpose(reg, (0, 3, 1, 2))


if __name__ == "__main__":
    key = jax.random.PRNGKey(0)
    pkey, xkey = jax.random.split(key)
    num_classes = 1
    params = init_params(pkey, num_classes=num_classes)
    packed = pack_params(params, num_classes)
    x = jax.random.normal(xkey, (2, 3, 16, 16), jnp.float32)   # NCHW input

    fwd = jax.jit(functools.partial(missile_detector_forward, packed))
    cls, reg = fwd(x)
    jax.block_until_ready((cls, reg))

    assert cls.shape == (2, num_classes, 2, 2) and reg.shape == (2, 4, 2, 2)
    cls_ref, reg_ref = reference_forward(params, x)
    # bf16 matmul operands (f32 accumulation) -> relaxed tolerance vs f32 ref.
    assert jnp.allclose(cls, cls_ref, atol=5e-2, rtol=5e-2), \
        float(jnp.max(jnp.abs(cls - cls_ref)))
    assert jnp.allclose(reg, reg_ref, atol=5e-2, rtol=5e-2), \
        float(jnp.max(jnp.abs(reg - reg_ref)))
    print("KERNEL_OK")
</pallas_src>

<mosaic_0001>
module attributes {stable_mosaic.version = 11 : i64} {
  func.func @_fused_kernel(%arg0: i32, %arg1: memref<1x256x32xbf16, #tpu.memory_space<vmem>>, %arg2: memref<32x16xbf16, #tpu.memory_space<vmem>>, %arg3: memref<1x16xf32, #tpu.memory_space<vmem>>, %arg4: memref<1x16xf32, #tpu.memory_space<vmem>>, %arg5: memref<144x32xbf16, #tpu.memory_space<vmem>>, %arg6: memref<1x32xf32, #tpu.memory_space<vmem>>, %arg7: memref<1x32xf32, #tpu.memory_space<vmem>>, %arg8: memref<288x64xbf16, #tpu.memory_space<vmem>>, %arg9: memref<1x64xf32, #tpu.memory_space<vmem>>, %arg10: memref<1x64xf32, #tpu.memory_space<vmem>>, %arg11: memref<576x128xbf16, #tpu.memory_space<vmem>>, %arg12: memref<1x128xf32, #tpu.memory_space<vmem>>, %arg13: memref<1x128xf32, #tpu.memory_space<vmem>>, %arg14: memref<128x128xbf16, #tpu.memory_space<vmem>>, %arg15: memref<1x128xf32, #tpu.memory_space<vmem>>, %arg16: memref<1x8x128xf32, #tpu.memory_space<vmem>>, %arg17: memref<110x16xf32, #tpu.memory_space<vmem>>, %arg18: memref<42x32xf32, #tpu.memory_space<vmem>>, %arg19: memref<20x64xf32, #tpu.memory_space<vmem>>, %arg20: memref<256x64xf32, #tpu.memory_space<vmem>>) attributes {dimension_semantics = [#tpu.dimension_semantics<parallel>], iteration_bounds = array<i64: 2>, scalar_prefetch = 0 : i64, scratch_operands = 4 : i64, tpu.core_type = #tpu.core_type<tc>, window_params = [{transform_indices = @transform_0, window_bounds = array<i64: 1, 256, 32>}, {pipeline_mode = #tpu.pipeline_mode<synchronous>, transform_indices = @transform_1, window_bounds = array<i64: 32, 16>}, {pipeline_mode = #tpu.pipeline_mode<synchronous>, transform_indices = @transform_2, window_bounds = array<i64: 1, 16>}, {pipeline_mode = #tpu.pipeline_mode<synchronous>, transform_indices = @transform_3, window_bounds = array<i64: 1, 16>}, {pipeline_mode = #tpu.pipeline_mode<synchronous>, transform_indices = @transform_4, window_bounds = array<i64: 144, 32>}, {pipeline_mode = #tpu.pipeline_mode<synchronous>, transform_indices = @transform_5, window_bounds = array<i64: 1, 32>}, {pipeline_mode = #tpu.pipeline_mode<synchronous>, transform_indices = @transform_6, window_bounds = array<i64: 1, 32>}, {pipeline_mode = #tpu.pipeline_mode<synchronous>, transform_indices = @transform_7, window_bounds = array<i64: 288, 64>}, {pipeline_mode = #tpu.pipeline_mode<synchronous>, transform_indices = @transform_8, window_bounds = array<i64: 1, 64>}, {pipeline_mode = #tpu.pipeline_mode<synchronous>, transform_indices = @transform_9, window_bounds = array<i64: 1, 64>}, {pipeline_mode = #tpu.pipeline_mode<synchronous>, transform_indices = @transform_10, window_bounds = array<i64: 576, 128>}, {pipeline_mode = #tpu.pipeline_mode<synchronous>, transform_indices = @transform_11, window_bounds = array<i64: 1, 128>}, {pipeline_mode = #tpu.pipeline_mode<synchronous>, transform_indices = @transform_12, window_bounds = array<i64: 1, 128>}, {pipeline_mode = #tpu.pipeline_mode<synchronous>, transform_indices = @transform_13, window_bounds = array<i64: 128, 128>}, {pipeline_mode = #tpu.pipeline_mode<synchronous>, transform_indices = @transform_14, window_bounds = array<i64: 1, 128>}, {transform_indices = @transform_15, window_bounds = array<i64: 1, 8, 128>}]} {
    %cst = arith.constant 0.000000e+00 : f32
    %0 = vector.broadcast %cst : f32 to vector<11x16xf32>
    %c0 = arith.constant 0 : index
    %c0_0 = arith.constant 0 : index
    %1 = vector.load %arg17[%c0, %c0_0] : memref<110x16xf32, #tpu.memory_space<vmem>>, vector<11x16xf32>
    tpu.vector_store %arg17[%c0, %c0_0], %0 {strides = array<i32>} : memref<110x16xf32, #tpu.memory_space<vmem>>, vector<11x16xf32>,
    %cst_1 = arith.constant 0.000000e+00 : f32
    %2 = vector.broadcast %cst_1 : f32 to vector<2x16xf32>
    %c19 = arith.constant 19 : index
    %c0_2 = arith.constant 0 : index
    %3 = vector.load %arg17[%c19, %c0_2] : memref<110x16xf32, #tpu.memory_space<vmem>>, vector<2x16xf32>
    tpu.vector_store %arg17[%c19, %c0_2], %2 {strides = array<i32>} : memref<110x16xf32, #tpu.memory_space<vmem>>, vector<2x16xf32>,
    %cst_3 = arith.constant 0.000000e+00 : f32
    %4 = vector.broadcast %cst_3 : f32 to vector<2x16xf32>
    %c29 = arith.constant 29 : index
    %c0_4 = arith.constant 0 : index
    %5 = vector.load %arg17[%c29, %c0_4] : memref<110x16xf32, #tpu.memory_space<vmem>>, vector<2x16xf32>
    tpu.vector_store %arg17[%c29, %c0_4], %4 {strides = array<i32>} : memref<110x16xf32, #tpu.memory_space<vmem>>, vector<2x16xf32>,
    %cst_5 = arith.constant 0.000000e+00 : f32
    %6 = vector.broadcast %cst_5 : f32 to vector<2x16xf32>
    %c39 = arith.constant 39 : index
    %c0_6 = arith.constant 0 : index
    %7 = vector.load %arg17[%c39, %c0_6] : memref<110x16xf32, #tpu.memory_space<vmem>>, vector<2x16xf32>
    tpu.vector_store %arg17[%c39, %c0_6], %6 {strides = array<i32>} : memref<110x16xf32, #tpu.memory_space<vmem>>, vector<2x16xf32>,
    %cst_7 = arith.constant 0.000000e+00 : f32
    %8 = vector.broadcast %cst_7 : f32 to vector<2x16xf32>
    %c49 = arith.constant 49 : index
    %c0_8 = arith.constant 0 : index
    %9 = vector.load %arg17[%c49, %c0_8] : memref<110x16xf32, #tpu.memory_space<vmem>>, vector<2x16xf32>
    tpu.vector_store %arg17[%c49, %c0_8], %8 {strides = array<i32>} : memref<110x16xf32, #tpu.memory_space<vmem>>, vector<2x16xf32>,
    %cst_9 = arith.constant 0.000000e+00 : f32
    %10 = vector.broadcast %cst_9 : f32 to vector<2x16xf32>
    %c59 = arith.constant 59 : index
    %c0_10 = arith.constant 0 : index
    %11 = vector.load %arg17[%c59, %c0_10] : memref<110x16xf32, #tpu.memory_space<vmem>>, vector<2x16xf32>
    tpu.vector_store %arg17[%c59, %c0_10], %10 {strides = array<i32>} : memref<110x16xf32, #tpu.memory_space<vmem>>, vector<2x16xf32>,
    %cst_11 = arith.constant 0.000000e+00 : f32
    %12 = vector.broadcast %cst_11 : f32 to vector<2x16xf32>
    %c69 = arith.constant 69 : index
    %c0_12 = arith.constant 0 : index
    %13 = vector.load %arg17[%c69, %c0_12] : memref<110x16xf32, #tpu.memory_space<vmem>>, vector<2x16xf32>
    tpu.vector_store %arg17[%c69, %c0_12], %12 {strides = array<i32>} : memref<110x16xf32, #tpu.memory_space<vmem>>, vector<2x16xf32>,
    %cst_13 = arith.constant 0.000000e+00 : f32
    %14 = vector.broadcast %cst_13 : f32 to vector<2x16xf32>
    %c79 = arith.constant 79 : index
    %c0_14 = arith.constant 0 : index
    %15 = vector.load %arg17[%c79, %c0_14] : memref<110x16xf32, #tpu.memory_space<vmem>>, vector<2x16xf32>
    tpu.vector_store %arg17[%c79, %c0_14], %14 {strides = array<i32>} : memref<110x16xf32, #tpu.memory_space<vmem>>, vector<2x16xf32>,
    %cst_15 = arith.constant 0.000000e+00 : f32
    %16 = vector.broadcast %cst_15 : f32 to vector<21x16xf32>
    %c89 = arith.constant 89 : index
    %c0_16 = arith.constant 0 : index
    %17 = vector.load %arg17[%c89, %c0_16] : memref<110x16xf32, #tpu.memory_space<vmem>>, vector<21x16xf32>
    tpu.vector_store %arg17[%c89, %c0_16], %16 {strides = array<i32>} : memref<110x16xf32, #tpu.memory_space<vmem>>, vector<21x16xf32>,
    %cst_17 = arith.constant 0.000000e+00 : f32
    %18 = vector.broadcast %cst_17 : f32 to vector<7x32xf32>
    %c0_18 = arith.constant 0 : index
    %c0_19 = arith.constant 0 : index
    %19 = vector.load %arg18[%c0_18, %c0_19] : memref<42x32xf32, #tpu.memory_space<vmem>>, vector<7x32xf32>
    tpu.vector_store %arg18[%c0_18, %c0_19], %18 {strides = array<i32>} : memref<42x32xf32, #tpu.memory_space<vmem>>, vector<7x32xf32>,
    %cst_20 = arith.constant 0.000000e+00 : f32
    %20 = vector.broadcast %cst_20 : f32 to vector<2x32xf32>
    %c11 = arith.constant 11 : index
    %c0_21 = arith.constant 0 : index
    %21 = vector.load %arg18[%c11, %c0_21] : memref<42x32xf32, #tpu.memory_space<vmem>>, vector<2x32xf32>
    tpu.vector_store %arg18[%c11, %c0_21], %20 {strides = array<i32>} : memref<42x32xf32, #tpu.memory_space<vmem>>, vector<2x32xf32>,
    %cst_22 = arith.constant 0.000000e+00 : f32
    %22 = vector.broadcast %cst_22 : f32 to vector<2x32xf32>
    %c17 = arith.constant 17 : index
    %c0_23 = arith.constant 0 : index
    %23 = vector.load %arg18[%c17, %c0_23] : memref<42x32xf32, #tpu.memory_space<vmem>>, vector<2x32xf32>
    tpu.vector_store %arg18[%c17, %c0_23], %22 {strides = array<i32>} : memref<42x32xf32, #tpu.memory_space<vmem>>, vector<2x32xf32>,
    %cst_24 = arith.constant 0.000000e+00 : f32
    %24 = vector.broadcast %cst_24 : f32 to vector<2x32xf32>
    %c23 = arith.constant 23 : index
    %c0_25 = arith.constant 0 : index
    %25 = vector.load %arg18[%c23, %c0_25] : memref<42x32xf32, #tpu.memory_space<vmem>>, vector<2x32xf32>
    tpu.vector_store %arg18[%c23, %c0_25], %24 {strides = array<i32>} : memref<42x32xf32, #tpu.memory_space<vmem>>, vector<2x32xf32>,
    %cst_26 = arith.constant 0.000000e+00 : f32
    %26 = vector.broadcast %cst_26 : f32 to vector<13x32xf32>
    %c29_27 = arith.constant 29 : index
    %c0_28 = arith.constant 0 : index
    %27 = vector.load %arg18[%c29_27, %c0_28] : memref<42x32xf32, #tpu.memory_space<vmem>>, vector<13x32xf32>
    tpu.vector_store %arg18[%c29_27, %c0_28], %26 {strides = array<i32>} : memref<42x32xf32, #tpu.memory_space<vmem>>, vector<13x32xf32>,
    %cst_29 = arith.constant 0.000000e+00 : f32
    %28 = vector.broadcast %cst_29 : f32 to vector<5x64xf32>
    %c0_30 = arith.constant 0 : index
    %c0_31 = arith.constant 0 : index
    %29 = vector.load %arg19[%c0_30, %c0_31] : memref<20x64xf32, #tpu.memory_space<vmem>>, vector<5x64xf32>
    tpu.vector_store %arg19[%c0_30, %c0_31], %28 {strides = array<i32>} : memref<20x64xf32, #tpu.memory_space<vmem>>, vector<5x64xf32>,
    %cst_32 = arith.constant 0.000000e+00 : f32
    %30 = vector.broadcast %cst_32 : f32 to vector<2x64xf32>
    %c7 = arith.constant 7 : index
    %c0_33 = arith.constant 0 : index
    %31 = vector.load %arg19[%c7, %c0_33] : memref<20x64xf32, #tpu.memory_space<vmem>>, vector<2x64xf32>
    tpu.vector_store %arg19[%c7, %c0_33], %30 {strides = array<i32>} : memref<20x64xf32, #tpu.memory_space<vmem>>, vector<2x64xf32>,
    %cst_34 = arith.constant 0.000000e+00 : f32
    %32 = vector.broadcast %cst_34 : f32 to vector<9x64xf32>
    %c11_35 = arith.constant 11 : index
    %c0_36 = arith.constant 0 : index
    %33 = vector.load %arg19[%c11_35, %c0_36] : memref<20x64xf32, #tpu.memory_space<vmem>>, vector<9x64xf32>
    tpu.vector_store %arg19[%c11_35, %c0_36], %32 {strides = array<i32>} : memref<20x64xf32, #tpu.memory_space<vmem>>, vector<9x64xf32>,
    %c0_37 = arith.constant 0 : index
    %c0_38 = arith.constant 0 : index
    %c0_39 = arith.constant 0 : index
    %34 = vector.load %arg1[%c0_37, %c0_38, %c0_39] : memref<1x256x32xbf16, #tpu.memory_space<vmem>>, vector<1x256x32xbf16>
    %35 = vector.shape_cast %34 : vector<1x256x32xbf16> to vector<256x32xbf16>
    %c0_40 = arith.constant 0 : index
    %c0_41 = arith.constant 0 : index
    %36 = vector.load %arg2[%c0_40, %c0_41] : memref<32x16xbf16, #tpu.memory_space<vmem>>, vector<32x16xbf16>
    %cst_42 = arith.constant dense<0.000000e+00> : vector<256x16xf32>
    %37 = tpu.matmul %35, %36, %cst_42 {dimension_numbers = #tpu.dot_dimension_numbers<[1], [0], [0], [1], [0, 0, 1, 1], [], []>} : vector<256x32xbf16>, vector<32x16xbf16>, vector<256x16xf32> -> vector<256x16xf32>
    %c0_43 = arith.constant 0 : index
    %c0_44 = arith.constant 0 : index
    %38 = vector.load %arg3[%c0_43, %c0_44] : memref<1x16xf32, #tpu.memory_space<vmem>>, vector<1x16xf32>
    %39 = vector.broadcast %38 : vector<1x16xf32> to vector<256x16xf32>
    %40 = arith.mulf %37, %39 : vector<256x16xf32>
    %c0_45 = arith.constant 0 : index
    %c0_46 = arith.constant 0 : index
    %41 = vector.load %arg4[%c0_45, %c0_46] : memref<1x16xf32, #tpu.memory_space<vmem>>, vector<1x16xf32>
    %42 = vector.broadcast %41 : vector<1x16xf32> to vector<256x16xf32>
    %43 = arith.addf %40, %42 : vector<256x16xf32>
    %cst_47 = arith.constant 0.000000e+00 : f32
    %44 = vector.broadcast %cst_47 : f32 to vector<256x16xf32>
    %45 = arith.maximumf %43, %44 : vector<256x16xf32>
    %c0_48 = arith.constant 0 : index
    %c0_49 = arith.constant 0 : index
    %46 = vector.load %arg20[%c0_48, %c0_49] : memref<256x64xf32, #tpu.memory_space<vmem>>, vector<256x16xf32>
    tpu.vector_store %arg20[%c0_48, %c0_49], %45 {strides = array<i32>} : memref<256x64xf32, #tpu.memory_space<vmem>>, vector<256x16xf32>,
    %c0_50 = arith.constant 0 : index
    %c0_51 = arith.constant 0 : index
    %47 = vector.load %arg20[%c0_50, %c0_51] : memref<256x64xf32, #tpu.memory_space<vmem>>, vector<239x16xf32>
    %c1 = arith.constant 1 : index
    %c0_52 = arith.constant 0 : index
    %48 = vector.load %arg20[%c1, %c0_52] : memref<256x64xf32, #tpu.memory_space<vmem>>, vector<239x16xf32>
    %49 = arith.maximumf %47, %48 : vector<239x16xf32>
    %c16 = arith.constant 16 : index
    %c0_53 = arith.constant 0 : index
    %50 = vector.load %arg20[%c16, %c0_53] : memref<256x64xf32, #tpu.memory_space<vmem>>, vector<239x16xf32>
    %c17_54 = arith.constant 17 : index
    %c0_55 = arith.constant 0 : index
    %51 = vector.load %arg20[%c17_54, %c0_55] : memref<256x64xf32, #tpu.memory_space<vmem>>, vector<239x16xf32>
    %52 = arith.maximumf %50, %51 : vector<239x16xf32>
    %53 = arith.maximumf %49, %52 : vector<239x16xf32>
    %c0_56 = arith.constant 0 : index
    %c0_57 = arith.constant 0 : index
    %54 = vector.load %arg20[%c0_56, %c0_57] : memref<256x64xf32, #tpu.memory_space<vmem>>, vector<239x16xf32>
    tpu.vector_store %arg20[%c0_56, %c0_57], %53 {strides = array<i32>} : memref<256x64xf32, #tpu.memory_space<vmem>>, vector<239x16xf32>,
    %c0_58 = arith.constant 0 : index
    %c0_59 = arith.constant 0 : index
    %55 = tpu.strided_load %arg20[%c0_58, %c0_59] {strides = array<i32: 2, 1>} : memref<256x64xf32, #tpu.memory_space<vmem>>, vector<8x16xf32>
    %c11_60 = arith.constant 11 : index
    %c0_61 = arith.constant 0 : index
    %56 = vector.load %arg17[%c11_60, %c0_61] : memref<110x16xf32, #tpu.memory_space<vmem>>, vector<8x16xf32>
    tpu.vector_store %arg17[%c11_60, %c0_61], %55 {strides = array<i32>} : memref<110x16xf32, #tpu.memory_space<vmem>>, vector<8x16xf32>,
    %c32 = arith.constant 32 : index
    %c0_62 = arith.constant 0 : index
    %57 = tpu.strided_load %arg20[%c32, %c0_62] {strides = array<i32: 2, 1>} : memref<256x64xf32, #tpu.memory_space<vmem>>, vector<8x16xf32>
    %c21 = arith.constant 21 : index
    %c0_63 = arith.constant 0 : index
    %58 = vector.load %arg17[%c21, %c0_63] : memref<110x16xf32, #tpu.memory_space<vmem>>, vector<8x16xf32>
    tpu.vector_store %arg17[%c21, %c0_63], %57 {strides = array<i32>} : memref<110x16xf32, #tpu.memory_space<vmem>>, vector<8x16xf32>,
    %c64 = arith.constant 64 : index
    %c0_64 = arith.constant 0 : index
    %59 = tpu.strided_load %arg20[%c64, %c0_64] {strides = array<i32: 2, 1>} : memref<256x64xf32, #tpu.memory_space<vmem>>, vector<8x16xf32>
    %c31 = arith.constant 31 : index
    %c0_65 = arith.constant 0 : index
    %60 = vector.load %arg17[%c31, %c0_65] : memref<110x16xf32, #tpu.memory_space<vmem>>, vector<8x16xf32>
    tpu.vector_store %arg17[%c31, %c0_65], %59 {strides = array<i32>} : memref<110x16xf32, #tpu.memory_space<vmem>>, vector<8x16xf32>,
    %c96 = arith.constant 96 : index
    %c0_66 = arith.constant 0 : index
    %61 = tpu.strided_load %arg20[%c96, %c0_66] {strides = array<i32: 2, 1>} : memref<256x64xf32, #tpu.memory_space<vmem>>, vector<8x16xf32>
    %c41 = arith.constant 41 : index
    %c0_67 = arith.constant 0 : index
    %62 = vector.load %arg17[%c41, %c0_67] : memref<110x16xf32, #tpu.memory_space<vmem>>, vector<8x16xf32>
    tpu.vector_store %arg17[%c41, %c0_67], %61 {strides = array<i32>} : memref<110x16xf32, #tpu.memory_space<vmem>>, vector<8x16xf32>,
    %c128 = arith.constant 128 : index
    %c0_68 = arith.constant 0 : index
    %63 = tpu.strided_load %arg20[%c128, %c0_68] {strides = array<i32: 2, 1>} : memref<256x64xf32, #tpu.memory_space<vmem>>, vector<8x16xf32>
    %c51 = arith.constant 51 : index
    %c0_69 = arith.constant 0 : index
    %64 = vector.load %arg17[%c51, %c0_69] : memref<110x16xf32, #tpu.memory_space<vmem>>, vector<8x16xf32>
    tpu.vector_store %arg17[%c51, %c0_69], %63 {strides = array<i32>} : memref<110x16xf32, #tpu.memory_space<vmem>>, vector<8x16xf32>,
    %c160 = arith.constant 160 : index
    %c0_70 = arith.constant 0 : index
    %65 = tpu.strided_load %arg20[%c160, %c0_70] {strides = array<i32: 2, 1>} : memref<256x64xf32, #tpu.memory_space<vmem>>, vector<8x16xf32>
    %c61 = arith.constant 61 : index
    %c0_71 = arith.constant 0 : index
    %66 = vector.load %arg17[%c61, %c0_71] : memref<110x16xf32, #tpu.memory_space<vmem>>, vector<8x16xf32>
    tpu.vector_store %arg17[%c61, %c0_71], %65 {strides = array<i32>} : memref<110x16xf32, #tpu.memory_space<vmem>>, vector<8x16xf32>,
    %c192 = arith.constant 192 : index
    %c0_72 = arith.constant 0 : index
    %67 = tpu.strided_load %arg20[%c192, %c0_72] {strides = array<i32: 2, 1>} : memref<256x64xf32, #tpu.memory_space<vmem>>, vector<8x16xf32>
    %c71 = arith.constant 71 : index
    %c0_73 = arith.constant 0 : index
    %68 = vector.load %arg17[%c71, %c0_73] : memref<110x16xf32, #tpu.memory_space<vmem>>, vector<8x16xf32>
    tpu.vector_store %arg17[%c71, %c0_73], %67 {strides = array<i32>} : memref<110x16xf32, #tpu.memory_space<vmem>>, vector<8x16xf32>,
    %c224 = arith.constant 224 : index
    %c0_74 = arith.constant 0 : index
    %69 = tpu.strided_load %arg20[%c224, %c0_74] {strides = array<i32: 2, 1>} : memref<256x64xf32, #tpu.memory_space<vmem>>, vector<8x16xf32>
    %c81 = arith.constant 81 : index
    %c0_75 = arith.constant 0 : index
    %70 = vector.load %arg17[%c81, %c0_75] : memref<110x16xf32, #tpu.memory_space<vmem>>, vector<8x16xf32>
    tpu.vector_store %arg17[%c81, %c0_75], %69 {strides = array<i32>} : memref<110x16xf32, #tpu.memory_space<vmem>>, vector<8x16xf32>,
    %c0_76 = arith.constant 0 : index
    %c0_77 = arith.constant 0 : index
    %71 = vector.load %arg17[%c0_76, %c0_77] : memref<110x16xf32, #tpu.memory_space<vmem>>, vector<80x16xf32>
    %72 = arith.truncf %71 : vector<80x16xf32> to vector<80x16xbf16>
    %c0_78 = arith.constant 0 : index
    %c0_79 = arith.constant 0 : index
    %73 = vector.load %arg5[%c0_78, %c0_79] : memref<144x32xbf16, #tpu.memory_space<vmem>>, vector<16x32xbf16>
    %cst_80 = arith.constant dense<0.000000e+00> : vector<80x32xf32>
    %74 = tpu.matmul %72, %73, %cst_80 {dimension_numbers = #tpu.dot_dimension_numbers<[1], [0], [0], [1], [0, 0, 1, 1], [], []>} : vector<80x16xbf16>, vector<16x32xbf16>, vector<80x32xf32> -> vector<80x32xf32>
    %c1_81 = arith.constant 1 : index
    %c0_82 = arith.constant 0 : index
    %75 = vector.load %arg17[%c1_81, %c0_82] : memref<110x16xf32, #tpu.memory_space<vmem>>, vector<80x16xf32>
    %76 = arith.truncf %75 : vector<80x16xf32> to vector<80x16xbf16>
    %c16_83 = arith.constant 16 : index
    %c0_84 = arith.constant 0 : index
    %77 = vector.load %arg5[%c16_83, %c0_84] : memref<144x32xbf16, #tpu.memory_space<vmem>>, vector<16x32xbf16>
    %cst_85 = arith.constant dense<0.000000e+00> : vector<80x32xf32>
    %78 = tpu.matmul %76, %77, %cst_85 {dimension_numbers = #tpu.dot_dimension_numbers<[1], [0], [0], [1], [0, 0, 1, 1], [], []>} : vector<80x16xbf16>, vector<16x32xbf16>, vector<80x32xf32> -> vector<80x32xf32>
    %79 = arith.addf %74, %78 : vector<80x32xf32>
    %c2 = arith.constant 2 : index
    %c0_86 = arith.constant 0 : index
    %80 = vector.load %arg17[%c2, %c0_86] : memref<110x16xf32, #tpu.memory_space<vmem>>, vector<80x16xf32>
    %81 = arith.truncf %80 : vector<80x16xf32> to vector<80x16xbf16>
    %c32_87 = arith.constant 32 : index
    %c0_88 = arith.constant 0 : index
    %82 = vector.load %arg5[%c32_87, %c0_88] : memref<144x32xbf16, #tpu.memory_space<vmem>>, vector<16x32xbf16>
    %cst_89 = arith.constant dense<0.000000e+00> : vector<80x32xf32>
    %83 = tpu.matmul %81, %82, %cst_89 {dimension_numbers = #tpu.dot_dimension_numbers<[1], [0], [0], [1], [0, 0, 1, 1], [], []>} : vector<80x16xbf16>, vector<16x32xbf16>, vector<80x32xf32> -> vector<80x32xf32>
    %84 = arith.addf %79, %83 : vector<80x32xf32>
    %c10 = arith.constant 10 : index
    %c0_90 = arith.constant 0 : index
    %85 = vector.load %arg17[%c10, %c0_90] : memref<110x16xf32, #tpu.memory_space<vmem>>, vector<80x16xf32>
    %86 = arith.truncf %85 : vector<80x16xf32> to vector<80x16xbf16>
    %c48 = arith.constant 48 : index
    %c0_91 = arith.constant 0 : index
    %87 = vector.load %arg5[%c48, %c0_91] : memref<144x32xbf16, #tpu.memory_space<vmem>>, vector<16x32xbf16>
    %cst_92 = arith.constant dense<0.000000e+00> : vector<80x32xf32>
    %88 = tpu.matmul %86, %87, %cst_92 {dimension_numbers = #tpu.dot_dimension_numbers<[1], [0], [0], [1], [0, 0, 1, 1], [], []>} : vector<80x16xbf16>, vector<16x32xbf16>, vector<80x32xf32> -> vector<80x32xf32>
    %89 = arith.addf %84, %88 : vector<80x32xf32>
    %c11_93 = arith.constant 11 : index
    %c0_94 = arith.constant 0 : index
    %90 = vector.load %arg17[%c11_93, %c0_94] : memref<110x16xf32, #tpu.memory_space<vmem>>, vector<80x16xf32>
    %91 = arith.truncf %90 : vector<80x16xf32> to vector<80x16xbf16>
    %c64_95 = arith.constant 64 : index
    %c0_96 = arith.constant 0 : index
    %92 = vector.load %arg5[%c64_95, %c0_96] : memref<144x32xbf16, #tpu.memory_space<vmem>>, vector<16x32xbf16>
    %cst_97 = arith.constant dense<0.000000e+00> : vector<80x32xf32>
    %93 = tpu.matmul %91, %92, %cst_97 {dimension_numbers = #tpu.dot_dimension_numbers<[1], [0], [0], [1], [0, 0, 1, 1], [], []>} : vector<80x16xbf16>, vector<16x32xbf16>, vector<80x32xf32> -> vector<80x32xf32>
    %94 = arith.addf %89, %93 : vector<80x32xf32>
    %c12 = arith.constant 12 : index
    %c0_98 = arith.constant 0 : index
    %95 = vector.load %arg17[%c12, %c0_98] : memref<110x16xf32, #tpu.memory_space<vmem>>, vector<80x16xf32>
    %96 = arith.truncf %95 : vector<80x16xf32> to vector<80x16xbf16>
    %c80 = arith.constant 80 : index
    %c0_99 = arith.constant 0 : index
    %97 = vector.load %arg5[%c80, %c0_99] : memref<144x32xbf16, #tpu.memory_space<vmem>>, vector<16x32xbf16>
    %cst_100 = arith.constant dense<0.000000e+00> : vector<80x32xf32>
    %98 = tpu.matmul %96, %97, %cst_100 {dimension_numbers = #tpu.dot_dimension_numbers<[1], [0], [0], [1], [0, 0, 1, 1], [], []>} : vector<80x16xbf16>, vector<16x32xbf16>, vector<80x32xf32> -> vector<80x32xf32>
    %99 = arith.addf %94, %98 : vector<80x32xf32>
    %c20 = arith.constant 20 : index
    %c0_101 = arith.constant 0 : index
    %100 = vector.load %arg17[%c20, %c0_101] : memref<110x16xf32, #tpu.memory_space<vmem>>, vector<80x16xf32>
    %101 = arith.truncf %100 : vector<80x16xf32> to vector<80x16xbf16>
    %c96_102 = arith.constant 96 : index
    %c0_103 = arith.constant 0 : index
    %102 = vector.load %arg5[%c96_102, %c0_103] : memref<144x32xbf16, #tpu.memory_space<vmem>>, vector<16x32xbf16>
    %cst_104 = arith.constant dense<0.000000e+00> : vector<80x32xf32>
    %103 = tpu.matmul %101, %102, %cst_104 {dimension_numbers = #tpu.dot_dimension_numbers<[1], [0], [0], [1], [0, 0, 1, 1], [], []>} : vector<80x16xbf16>, vector<16x32xbf16>, vector<80x32xf32> -> vector<80x32xf32>
    %104 = arith.addf %99, %103 : vector<80x32xf32>
    %c21_105 = arith.constant 21 : index
    %c0_106 = arith.constant 0 : index
    %105 = vector.load %arg17[%c21_105, %c0_106] : memref<110x16xf32, #tpu.memory_space<vmem>>, vector<80x16xf32>
    %106 = arith.truncf %105 : vector<80x16xf32> to vector<80x16xbf16>
    %c112 = arith.constant 112 : index
    %c0_107 = arith.constant 0 : index
    %107 = vector.load %arg5[%c112, %c0_107] : memref<144x32xbf16, #tpu.memory_space<vmem>>, vector<16x32xbf16>
    %cst_108 = arith.constant dense<0.000000e+00> : vector<80x32xf32>
    %108 = tpu.matmul %106, %107, %cst_108 {dimension_numbers = #tpu.dot_dimension_numbers<[1], [0], [0], [1], [0, 0, 1, 1], [], []>} : vector<80x16xbf16>, vector<16x32xbf16>, vector<80x32xf32> -> vector<80x32xf32>
    %109 = arith.addf %104, %108 : vector<80x32xf32>
    %c22 = arith.constant 22 : index
    %c0_109 = arith.constant 0 : index
    %110 = vector.load %arg17[%c22, %c0_109] : memref<110x16xf32, #tpu.memory_space<vmem>>, vector<80x16xf32>
    %111 = arith.truncf %110 : vector<80x16xf32> to vector<80x16xbf16>
    %c128_110 = arith.constant 128 : index
    %c0_111 = arith.constant 0 : index
    %112 = vector.load %arg5[%c128_110, %c0_111] : memref<144x32xbf16, #tpu.memory_space<vmem>>, vector<16x32xbf16>
    %cst_112 = arith.constant dense<0.000000e+00> : vector<80x32xf32>
    %113 = tpu.matmul %111, %112, %cst_112 {dimension_numbers = #tpu.dot_dimension_numbers<[1], [0], [0], [1], [0, 0, 1, 1], [], []>} : vector<80x16xbf16>, vector<16x32xbf16>, vector<80x32xf32> -> vector<80x32xf32>
    %114 = arith.addf %109, %113 : vector<80x32xf32>
    %c0_113 = arith.constant 0 : index
    %c0_114 = arith.constant 0 : index
    %115 = vector.load %arg6[%c0_113, %c0_114] : memref<1x32xf32, #tpu.memory_space<vmem>>, vector<1x32xf32>
    %116 = vector.broadcast %115 : vector<1x32xf32> to vector<80x32xf32>
    %117 = arith.mulf %114, %116 : vector<80x32xf32>
    %c0_115 = arith.constant 0 : index
    %c0_116 = arith.constant 0 : index
    %118 = vector.load %arg7[%c0_115, %c0_116] : memref<1x32xf32, #tpu.memory_space<vmem>>, vector<1x32xf32>
    %119 = vector.broadcast %118 : vector<1x32xf32> to vector<80x32xf32>
    %120 = arith.addf %117, %119 : vector<80x32xf32>
    %cst_117 = arith.constant 0.000000e+00 : f32
    %121 = vector.broadcast %cst_117 : f32 to vector<80x32xf32>
    %122 = arith.maximumf %120, %121 : vector<80x32xf32>
    %c0_118 = arith.constant 0 : index
    %c0_119 = arith.constant 0 : index
    %123 = vector.load %arg20[%c0_118, %c0_119] : memref<256x64xf32, #tpu.memory_space<vmem>>, vector<80x32xf32>
    tpu.vector_store %arg20[%c0_118, %c0_119], %122 {strides = array<i32>} : memref<256x64xf32, #tpu.memory_space<vmem>>, vector<80x32xf32>,
    %c0_120 = arith.constant 0 : index
    %c0_121 = arith.constant 0 : index
    %124 = vector.load %arg20[%c0_120, %c0_121] : memref<256x64xf32, #tpu.memory_space<vmem>>, vector<69x32xf32>
    %c1_122 = arith.constant 1 : index
    %c0_123 = arith.constant 0 : index
    %125 = vector.load %arg20[%c1_122, %c0_123] : memref<256x64xf32, #tpu.memory_space<vmem>>, vector<69x32xf32>
    %126 = arith.maximumf %124, %125 : vector<69x32xf32>
    %c10_124 = arith.constant 10 : index
    %c0_125 = arith.constant 0 : index
    %127 = vector.load %arg20[%c10_124, %c0_125] : memref<256x64xf32, #tpu.memory_space<vmem>>, vector<69x32xf32>
    %c11_126 = arith.constant 11 : index
    %c0_127 = arith.constant 0 : index
    %128 = vector.load %arg20[%c11_126, %c0_127] : memref<256x64xf32, #tpu.memory_space<vmem>>, vector<69x32xf32>
    %129 = arith.maximumf %127, %128 : vector<69x32xf32>
    %130 = arith.maximumf %126, %129 : vector<69x32xf32>
    %c0_128 = arith.constant 0 : index
    %c0_129 = arith.constant 0 : index
    %131 = vector.load %arg20[%c0_128, %c0_129] : memref<256x64xf32, #tpu.memory_space<vmem>>, vector<69x32xf32>
    tpu.vector_store %arg20[%c0_128, %c0_129], %130 {strides = array<i32>} : memref<256x64xf32, #tpu.memory_space<vmem>>, vector<69x32xf32>,
    %c0_130 = arith.constant 0 : index
    %c0_131 = arith.constant 0 : index
    %132 = tpu.strided_load %arg20[%c0_130, %c0_131] {strides = array<i32: 2, 1>} : memref<256x64xf32, #tpu.memory_space<vmem>>, vector<4x32xf32>
    %c7_132 = arith.constant 7 : index
    %c0_133 = arith.constant 0 : index
    %133 = vector.load %arg18[%c7_132, %c0_133] : memref<42x32xf32, #tpu.memory_space<vmem>>, vector<4x32xf32>
    tpu.vector_store %arg18[%c7_132, %c0_133], %132 {strides = array<i32>} : memref<42x32xf32, #tpu.memory_space<vmem>>, vector<4x32xf32>,
    %c20_134 = arith.constant 20 : index
    %c0_135 = arith.constant 0 : index
    %134 = tpu.strided_load %arg20[%c20_134, %c0_135] {strides = array<i32: 2, 1>} : memref<256x64xf32, #tpu.memory_space<vmem>>, vector<4x32xf32>
    %c13 = arith.constant 13 : index
    %c0_136 = arith.constant 0 : index
    %135 = vector.load %arg18[%c13, %c0_136] : memref<42x32xf32, #tpu.memory_space<vmem>>, vector<4x32xf32>
    tpu.vector_store %arg18[%c13, %c0_136], %134 {strides = array<i32>} : memref<42x32xf32, #tpu.memory_space<vmem>>, vector<4x32xf32>,
    %c40 = arith.constant 40 : index
    %c0_137 = arith.constant 0 : index
    %136 = tpu.strided_load %arg20[%c40, %c0_137] {strides = array<i32: 2, 1>} : memref<256x64xf32, #tpu.memory_space<vmem>>, vector<4x32xf32>
    %c19_138 = arith.constant 19 : index
    %c0_139 = arith.constant 0 : index
    %137 = vector.load %arg18[%c19_138, %c0_139] : memref<42x32xf32, #tpu.memory_space<vmem>>, vector<4x32xf32>
    tpu.vector_store %arg18[%c19_138, %c0_139], %136 {strides = array<i32>} : memref<42x32xf32, #tpu.memory_space<vmem>>, vector<4x32xf32>,
    %c60 = arith.constant 60 : index
    %c0_140 = arith.constant 0 : index
    %138 = tpu.strided_load %arg20[%c60, %c0_140] {strides = array<i32: 2, 1>} : memref<256x64xf32, #tpu.memory_space<vmem>>, vector<4x32xf32>
    %c25 = arith.constant 25 : index
    %c0_141 = arith.constant 0 : index
    %139 = vector.load %arg18[%c25, %c0_141] : memref<42x32xf32, #tpu.memory_space<vmem>>, vector<4x32xf32>
    tpu.vector_store %arg18[%c25, %c0_141], %138 {strides = array<i32>} : memref<42x32xf32, #tpu.memory_space<vmem>>, vector<4x32xf32>,
    %c0_142 = arith.constant 0 : index
    %c0_143 = arith.constant 0 : index
    %140 = vector.load %arg18[%c0_142, %c0_143] : memref<42x32xf32, #tpu.memory_space<vmem>>, vector<24x32xf32>
    %141 = arith.truncf %140 : vector<24x32xf32> to vector<24x32xbf16>
    %c0_144 = arith.constant 0 : index
    %c0_145 = arith.constant 0 : index
    %142 = vector.load %arg8[%c0_144, %c0_145] : memref<288x64xbf16, #tpu.memory_space<vmem>>, vector<32x64xbf16>
    %cst_146 = arith.constant dense<0.000000e+00> : vector<24x64xf32>
    %143 = tpu.matmul %141, %142, %cst_146 {dimension_numbers = #tpu.dot_dimension_numbers<[1], [0], [0], [1], [0, 0, 1, 1], [], []>} : vector<24x32xbf16>, vector<32x64xbf16>, vector<24x64xf32> -> vector<24x64xf32>
    %c1_147 = arith.constant 1 : index
    %c0_148 = arith.constant 0 : index
    %144 = vector.load %arg18[%c1_147, %c0_148] : memref<42x32xf32, #tpu.memory_space<vmem>>, vector<24x32xf32>
    %145 = arith.truncf %144 : vector<24x32xf32> to vector<24x32xbf16>
    %c32_149 = arith.constant 32 : index
    %c0_150 = arith.constant 0 : index
    %146 = vector.load %arg8[%c32_149, %c0_150] : memref<288x64xbf16, #tpu.memory_space<vmem>>, vector<32x64xbf16>
    %cst_151 = arith.constant dense<0.000000e+00> : vector<24x64xf32>
    %147 = tpu.matmul %145, %146, %cst_151 {dimension_numbers = #tpu.dot_dimension_numbers<[1], [0], [0], [1], [0, 0, 1, 1], [], []>} : vector<24x32xbf16>, vector<32x64xbf16>, vector<24x64xf32> -> vector<24x64xf32>
    %148 = arith.addf %143, %147 : vector<24x64xf32>
    %c2_152 = arith.constant 2 : index
    %c0_153 = arith.constant 0 : index
    %149 = vector.load %arg18[%c2_152, %c0_153] : memref<42x32xf32, #tpu.memory_space<vmem>>, vector<24x32xf32>
    %150 = arith.truncf %149 : vector<24x32xf32> to vector<24x32xbf16>
    %c64_154 = arith.constant 64 : index
    %c0_155 = arith.constant 0 : index
    %151 = vector.load %arg8[%c64_154, %c0_155] : memref<288x64xbf16, #tpu.memory_space<vmem>>, vector<32x64xbf16>
    %cst_156 = arith.constant dense<0.000000e+00> : vector<24x64xf32>
    %152 = tpu.matmul %150, %151, %cst_156 {dimension_numbers = #tpu.dot_dimension_numbers<[1], [0], [0], [1], [0, 0, 1, 1], [], []>} : vector<24x32xbf16>, vector<32x64xbf16>, vector<24x64xf32> -> vector<24x64xf32>
    %153 = arith.addf %148, %152 : vector<24x64xf32>
    %c6 = arith.constant 6 : index
    %c0_157 = arith.constant 0 : index
    %154 = vector.load %arg18[%c6, %c0_157] : memref<42x32xf32, #tpu.memory_space<vmem>>, vector<24x32xf32>
    %155 = arith.truncf %154 : vector<24x32xf32> to vector<24x32xbf16>
    %c96_158 = arith.constant 96 : index
    %c0_159 = arith.constant 0 : index
    %156 = vector.load %arg8[%c96_158, %c0_159] : memref<288x64xbf16, #tpu.memory_space<vmem>>, vector<32x64xbf16>
    %cst_160 = arith.constant dense<0.000000e+00> : vector<24x64xf32>
    %157 = tpu.matmul %155, %156, %cst_160 {dimension_numbers = #tpu.dot_dimension_numbers<[1], [0], [0], [1], [0, 0, 1, 1], [], []>} : vector<24x32xbf16>, vector<32x64xbf16>, vector<24x64xf32> -> vector<24x64xf32>
    %158 = arith.addf %153, %157 : vector<24x64xf32>
    %c7_161 = arith.constant 7 : index
    %c0_162 = arith.constant 0 : index
    %159 = vector.load %arg18[%c7_161, %c0_162] : memref<42x32xf32, #tpu.memory_space<vmem>>, vector<24x32xf32>
    %160 = arith.truncf %159 : vector<24x32xf32> to vector<24x32xbf16>
    %c128_163 = arith.constant 128 : index
    %c0_164 = arith.constant 0 : index
    %161 = vector.load %arg8[%c128_163, %c0_164] : memref<288x64xbf16, #tpu.memory_space<vmem>>, vector<32x64xbf16>
    %cst_165 = arith.constant dense<0.000000e+00> : vector<24x64xf32>
    %162 = tpu.matmul %160, %161, %cst_165 {dimension_numbers = #tpu.dot_dimension_numbers<[1], [0], [0], [1], [0, 0, 1, 1], [], []>} : vector<24x32xbf16>, vector<32x64xbf16>, vector<24x64xf32> -> vector<24x64xf32>
    %163 = arith.addf %158, %162 : vector<24x64xf32>
    %c8 = arith.constant 8 : index
    %c0_166 = arith.constant 0 : index
    %164 = vector.load %arg18[%c8, %c0_166] : memref<42x32xf32, #tpu.memory_space<vmem>>, vector<24x32xf32>
    %165 = arith.truncf %164 : vector<24x32xf32> to vector<24x32xbf16>
    %c160_167 = arith.constant 160 : index
    %c0_168 = arith.constant 0 : index
    %166 = vector.load %arg8[%c160_167, %c0_168] : memref<288x64xbf16, #tpu.memory_space<vmem>>, vector<32x64xbf16>
    %cst_169 = arith.constant dense<0.000000e+00> : vector<24x64xf32>
    %167 = tpu.matmul %165, %166, %cst_169 {dimension_numbers = #tpu.dot_dimension_numbers<[1], [0], [0], [1], [0, 0, 1, 1], [], []>} : vector<24x32xbf16>, vector<32x64xbf16>, vector<24x64xf32> -> vector<24x64xf32>
    %168 = arith.addf %163, %167 : vector<24x64xf32>
    %c12_170 = arith.constant 12 : index
    %c0_171 = arith.constant 0 : index
    %169 = vector.load %arg18[%c12_170, %c0_171] : memref<42x32xf32, #tpu.memory_space<vmem>>, vector<24x32xf32>
    %170 = arith.truncf %169 : vector<24x32xf32> to vector<24x32xbf16>
    %c192_172 = arith.constant 192 : index
    %c0_173 = arith.constant 0 : index
    %171 = vector.load %arg8[%c192_172, %c0_173] : memref<288x64xbf16, #tpu.memory_space<vmem>>, vector<32x64xbf16>
    %cst_174 = arith.constant dense<0.000000e+00> : vector<24x64xf32>
    %172 = tpu.matmul %170, %171, %cst_174 {dimension_numbers = #tpu.dot_dimension_numbers<[1], [0], [0], [1], [0, 0, 1, 1], [], []>} : vector<24x32xbf16>, vector<32x64xbf16>, vector<24x64xf32> -> vector<24x64xf32>
    %173 = arith.addf %168, %172 : vector<24x64xf32>
    %c13_175 = arith.constant 13 : index
    %c0_176 = arith.constant 0 : index
    %174 = vector.load %arg18[%c13_175, %c0_176] : memref<42x32xf32, #tpu.memory_space<vmem>>, vector<24x32xf32>
    %175 = arith.truncf %174 : vector<24x32xf32> to vector<24x32xbf16>
    %c224_177 = arith.constant 224 : index
    %c0_178 = arith.constant 0 : index
    %176 = vector.load %arg8[%c224_177, %c0_178] : memref<288x64xbf16, #tpu.memory_space<vmem>>, vector<32x64xbf16>
    %cst_179 = arith.constant dense<0.000000e+00> : vector<24x64xf32>
    %177 = tpu.matmul %175, %176, %cst_179 {dimension_numbers = #tpu.dot_dimension_numbers<[1], [0], [0], [1], [0, 0, 1, 1], [], []>} : vector<24x32xbf16>, vector<32x64xbf16>, vector<24x64xf32> -> vector<24x64xf32>
    %178 = arith.addf %173, %177 : vector<24x64xf32>
    %c14 = arith.constant 14 : index
    %c0_180 = arith.constant 0 : index
    %179 = vector.load %arg18[%c14, %c0_180] : memref<42x32xf32, #tpu.memory_space<vmem>>, vector<24x32xf32>
    %180 = arith.truncf %179 : vector<24x32xf32> to vector<24x32xbf16>
    %c256 = arith.constant 256 : index
    %c0_181 = arith.constant 0 : index
    %181 = vector.load %arg8[%c256, %c0_181] : memref<288x64xbf16, #tpu.memory_space<vmem>>, vector<32x64xbf16>
    %cst_182 = arith.constant dense<0.000000e+00> : vector<24x64xf32>
    %182 = tpu.matmul %180, %181, %cst_182 {dimension_numbers = #tpu.dot_dimension_numbers<[1], [0], [0], [1], [0, 0, 1, 1], [], []>} : vector<24x32xbf16>, vector<32x64xbf16>, vector<24x64xf32> -> vector<24x64xf32>
    %183 = arith.addf %178, %182 : vector<24x64xf32>
    %c0_183 = arith.constant 0 : index
    %c0_184 = arith.constant 0 : index
    %184 = vector.load %arg9[%c0_183, %c0_184] : memref<1x64xf32, #tpu.memory_space<vmem>>, vector<1x64xf32>
    %185 = vector.broadcast %184 : vector<1x64xf32> to vector<24x64xf32>
    %186 = arith.mulf %183, %185 : vector<24x64xf32>
    %c0_185 = arith.constant 0 : index
    %c0_186 = arith.constant 0 : index
    %187 = vector.load %arg10[%c0_185, %c0_186] : memref<1x64xf32, #tpu.memory_space<vmem>>, vector<1x64xf32>
    %188 = vector.broadcast %187 : vector<1x64xf32> to vector<24x64xf32>
    %189 = arith.addf %186, %188 : vector<24x64xf32>
    %cst_187 = arith.constant 0.000000e+00 : f32
    %190 = vector.broadcast %cst_187 : f32 to vector<24x64xf32>
    %191 = arith.maximumf %189, %190 : vector<24x64xf32>
    %c0_188 = arith.constant 0 : index
    %c0_189 = arith.constant 0 : index
    %192 = vector.load %arg20[%c0_188, %c0_189] : memref<256x64xf32, #tpu.memory_space<vmem>>, vector<24x64xf32>
    tpu.vector_store %arg20[%c0_188, %c0_189], %191 {strides = array<i32>} : memref<256x64xf32, #tpu.memory_space<vmem>>, vector<24x64xf32>,
    %c0_190 = arith.constant 0 : index
    %c0_191 = arith.constant 0 : index
    %193 = vector.load %arg20[%c0_190, %c0_191] : memref<256x64xf32, #tpu.memory_space<vmem>>, vector<17x64xf32>
    %c1_192 = arith.constant 1 : index
    %c0_193 = arith.constant 0 : index
    %194 = vector.load %arg20[%c1_192, %c0_193] : memref<256x64xf32, #tpu.memory_space<vmem>>, vector<17x64xf32>
    %195 = arith.maximumf %193, %194 : vector<17x64xf32>
    %c6_194 = arith.constant 6 : index
    %c0_195 = arith.constant 0 : index
    %196 = vector.load %arg20[%c6_194, %c0_195] : memref<256x64xf32, #tpu.memory_space<vmem>>, vector<17x64xf32>
    %c7_196 = arith.constant 7 : index
    %c0_197 = arith.constant 0 : index
    %197 = vector.load %arg20[%c7_196, %c0_197] : memref<256x64xf32, #tpu.memory_space<vmem>>, vector<17x64xf32>
    %198 = arith.maximumf %196, %197 : vector<17x64xf32>
    %199 = arith.maximumf %195, %198 : vector<17x64xf32>
    %c0_198 = arith.constant 0 : index
    %c0_199 = arith.constant 0 : index
    %200 = vector.load %arg20[%c0_198, %c0_199] : memref<256x64xf32, #tpu.memory_space<vmem>>, vector<17x64xf32>
    tpu.vector_store %arg20[%c0_198, %c0_199], %199 {strides = array<i32>} : memref<256x64xf32, #tpu.memory_space<vmem>>, vector<17x64xf32>,
    %c0_200 = arith.constant 0 : index
    %c0_201 = arith.constant 0 : index
    %201 = tpu.strided_load %arg20[%c0_200, %c0_201] {strides = array<i32: 2, 1>} : memref<256x64xf32, #tpu.memory_space<vmem>>, vector<2x64xf32>
    %c5 = arith.constant 5 : index
    %c0_202 = arith.constant 0 : index
    %202 = vector.load %arg19[%c5, %c0_202] : memref<20x64xf32, #tpu.memory_space<vmem>>, vector<2x64xf32>
    tpu.vector_store %arg19[%c5, %c0_202], %201 {strides = array<i32>} : memref<20x64xf32, #tpu.memory_space<vmem>>, vector<2x64xf32>,
    %c12_203 = arith.constant 12 : index
    %c0_204 = arith.constant 0 : index
    %203 = tpu.strided_load %arg20[%c12_203, %c0_204] {strides = array<i32: 2, 1>} : memref<256x64xf32, #tpu.memory_space<vmem>>, vector<2x64xf32>
    %c9 = arith.constant 9 : index
    %c0_205 = arith.constant 0 : index
    %204 = vector.load %arg19[%c9, %c0_205] : memref<20x64xf32, #tpu.memory_space<vmem>>, vector<2x64xf32>
    tpu.vector_store %arg19[%c9, %c0_205], %203 {strides = array<i32>} : memref<20x64xf32, #tpu.memory_space<vmem>>, vector<2x64xf32>,
    %c0_206 = arith.constant 0 : index
    %c0_207 = arith.constant 0 : index
    %205 = vector.load %arg19[%c0_206, %c0_207] : memref<20x64xf32, #tpu.memory_space<vmem>>, vector<8x64xf32>
    %206 = arith.truncf %205 : vector<8x64xf32> to vector<8x64xbf16>
    %c0_208 = arith.constant 0 : index
    %c0_209 = arith.constant 0 : index
    %207 = vector.load %arg11[%c0_208, %c0_209] : memref<576x128xbf16, #tpu.memory_space<vmem>>, vector<64x128xbf16>
    %cst_210 = arith.constant dense<0.000000e+00> : vector<8x128xf32>
    %208 = tpu.matmul %206, %207, %cst_210 {dimension_numbers = #tpu.dot_dimension_numbers<[1], [0], [0], [1], [0, 0, 1, 1], [], []>} : vector<8x64xbf16>, vector<64x128xbf16>, vector<8x128xf32> -> vector<8x128xf32>
    %c1_211 = arith.constant 1 : index
    %c0_212 = arith.constant 0 : index
    %209 = vector.load %arg19[%c1_211, %c0_212] : memref<20x64xf32, #tpu.memory_space<vmem>>, vector<8x64xf32>
    %210 = arith.truncf %209 : vector<8x64xf32> to vector<8x64xbf16>
    %c64_213 = arith.constant 64 : index
    %c0_214 = arith.constant 0 : index
    %211 = vector.load %arg11[%c64_213, %c0_214] : memref<576x128xbf16, #tpu.memory_space<vmem>>, vector<64x128xbf16>
    %cst_215 = arith.constant dense<0.000000e+00> : vector<8x128xf32>
    %212 = tpu.matmul %210, %211, %cst_215 {dimension_numbers = #tpu.dot_dimension_numbers<[1], [0], [0], [1], [0, 0, 1, 1], [], []>} : vector<8x64xbf16>, vector<64x128xbf16>, vector<8x128xf32> -> vector<8x128xf32>
    %213 = arith.addf %208, %212 : vector<8x128xf32>
    %c2_216 = arith.constant 2 : index
    %c0_217 = arith.constant 0 : index
    %214 = vector.load %arg19[%c2_216, %c0_217] : memref<20x64xf32, #tpu.memory_space<vmem>>, vector<8x64xf32>
    %215 = arith.truncf %214 : vector<8x64xf32> to vector<8x64xbf16>
    %c128_218 = arith.constant 128 : index
    %c0_219 = arith.constant 0 : index
    %216 = vector.load %arg11[%c128_218, %c0_219] : memref<576x128xbf16, #tpu.memory_space<vmem>>, vector<64x128xbf16>
    %cst_220 = arith.constant dense<0.000000e+00> : vector<8x128xf32>
    %217 = tpu.matmul %215, %216, %cst_220 {dimension_numbers = #tpu.dot_dimension_numbers<[1], [0], [0], [1], [0, 0, 1, 1], [], []>} : vector<8x64xbf16>, vector<64x128xbf16>, vector<8x128xf32> -> vector<8x128xf32>
    %218 = arith.addf %213, %217 : vector<8x128xf32>
    %c4 = arith.constant 4 : index
    %c0_221 = arith.constant 0 : index
    %219 = vector.load %arg19[%c4, %c0_221] : memref<20x64xf32, #tpu.memory_space<vmem>>, vector<8x64xf32>
    %220 = arith.truncf %219 : vector<8x64xf32> to vector<8x64xbf16>
    %c192_222 = arith.constant 192 : index
    %c0_223 = arith.constant 0 : index
    %221 = vector.load %arg11[%c192_222, %c0_223] : memref<576x128xbf16, #tpu.memory_space<vmem>>, vector<64x128xbf16>
    %cst_224 = arith.constant dense<0.000000e+00> : vector<8x128xf32>
    %222 = tpu.matmul %220, %221, %cst_224 {dimension_numbers = #tpu.dot_dimension_numbers<[1], [0], [0], [1], [0, 0, 1, 1], [], []>} : vector<8x64xbf16>, vector<64x128xbf16>, vector<8x128xf32> -> vector<8x128xf32>
    %223 = arith.addf %218, %222 : vector<8x128xf32>
    %c5_225 = arith.constant 5 : index
    %c0_226 = arith.constant 0 : index
    %224 = vector.load %arg19[%c5_225, %c0_226] : memref<20x64xf32, #tpu.memory_space<vmem>>, vector<8x64xf32>
    %225 = arith.truncf %224 : vector<8x64xf32> to vector<8x64xbf16>
    %c256_227 = arith.constant 256 : index
    %c0_228 = arith.constant 0 : index
    %226 = vector.load %arg11[%c256_227, %c0_228] : memref<576x128xbf16, #tpu.memory_space<vmem>>, vector<64x128xbf16>
    %cst_229 = arith.constant dense<0.000000e+00> : vector<8x128xf32>
    %227 = tpu.matmul %225, %226, %cst_229 {dimension_numbers = #tpu.dot_dimension_numbers<[1], [0], [0], [1], [0, 0, 1, 1], [], []>} : vector<8x64xbf16>, vector<64x128xbf16>, vector<8x128xf32> -> vector<8x128xf32>
    %228 = arith.addf %223, %227 : vector<8x128xf32>
    %c6_230 = arith.constant 6 : index
    %c0_231 = arith.constant 0 : index
    %229 = vector.load %arg19[%c6_230, %c0_231] : memref<20x64xf32, #tpu.memory_space<vmem>>, vector<8x64xf32>
    %230 = arith.truncf %229 : vector<8x64xf32> to vector<8x64xbf16>
    %c320 = arith.constant 320 : index
    %c0_232 = arith.constant 0 : index
    %231 = vector.load %arg11[%c320, %c0_232] : memref<576x128xbf16, #tpu.memory_space<vmem>>, vector<64x128xbf16>
    %cst_233 = arith.constant dense<0.000000e+00> : vector<8x128xf32>
    %232 = tpu.matmul %230, %231, %cst_233 {dimension_numbers = #tpu.dot_dimension_numbers<[1], [0], [0], [1], [0, 0, 1, 1], [], []>} : vector<8x64xbf16>, vector<64x128xbf16>, vector<8x128xf32> -> vector<8x128xf32>
    %233 = arith.addf %228, %232 : vector<8x128xf32>
    %c8_234 = arith.constant 8 : index
    %c0_235 = arith.constant 0 : index
    %234 = vector.load %arg19[%c8_234, %c0_235] : memref<20x64xf32, #tpu.memory_space<vmem>>, vector<8x64xf32>
    %235 = arith.truncf %234 : vector<8x64xf32> to vector<8x64xbf16>
    %c384 = arith.constant 384 : index
    %c0_236 = arith.constant 0 : index
    %236 = vector.load %arg11[%c384, %c0_236] : memref<576x128xbf16, #tpu.memory_space<vmem>>, vector<64x128xbf16>
    %cst_237 = arith.constant dense<0.000000e+00> : vector<8x128xf32>
    %237 = tpu.matmul %235, %236, %cst_237 {dimension_numbers = #tpu.dot_dimension_numbers<[1], [0], [0], [1], [0, 0, 1, 1], [], []>} : vector<8x64xbf16>, vector<64x128xbf16>, vector<8x128xf32> -> vector<8x128xf32>
    %238 = arith.addf %233, %237 : vector<8x128xf32>
    %c9_238 = arith.constant 9 : index
    %c0_239 = arith.constant 0 : index
    %239 = vector.load %arg19[%c9_238, %c0_239] : memref<20x64xf32, #tpu.memory_space<vmem>>, vector<8x64xf32>
    %240 = arith.truncf %239 : vector<8x64xf32> to vector<8x64xbf16>
    %c448 = arith.constant 448 : index
    %c0_240 = arith.constant 0 : index
    %241 = vector.load %arg11[%c448, %c0_240] : memref<576x128xbf16, #tpu.memory_space<vmem>>, vector<64x128xbf16>
    %cst_241 = arith.constant dense<0.000000e+00> : vector<8x128xf32>
    %242 = tpu.matmul %240, %241, %cst_241 {dimension_numbers = #tpu.dot_dimension_numbers<[1], [0], [0], [1], [0, 0, 1, 1], [], []>} : vector<8x64xbf16>, vector<64x128xbf16>, vector<8x128xf32> -> vector<8x128xf32>
    %243 = arith.addf %238, %242 : vector<8x128xf32>
    %c10_242 = arith.constant 10 : index
    %c0_243 = arith.constant 0 : index
    %244 = vector.load %arg19[%c10_242, %c0_243] : memref<20x64xf32, #tpu.memory_space<vmem>>, vector<8x64xf32>
    %245 = arith.truncf %244 : vector<8x64xf32> to vector<8x64xbf16>
    %c512 = arith.constant 512 : index
    %c0_244 = arith.constant 0 : index
    %246 = vector.load %arg11[%c512, %c0_244] : memref<576x128xbf16, #tpu.memory_space<vmem>>, vector<64x128xbf16>
    %cst_245 = arith.constant dense<0.000000e+00> : vector<8x128xf32>
    %247 = tpu.matmul %245, %246, %cst_245 {dimension_numbers = #tpu.dot_dimension_numbers<[1], [0], [0], [1], [0, 0, 1, 1], [], []>} : vector<8x64xbf16>, vector<64x128xbf16>, vector<8x128xf32> -> vector<8x128xf32>
    %248 = arith.addf %243, %247 : vector<8x128xf32>
    %c0_246 = arith.constant 0 : index
    %c0_247 = arith.constant 0 : index
    %249 = vector.load %arg12[%c0_246, %c0_247] : memref<1x128xf32, #tpu.memory_space<vmem>>, vector<1x128xf32>
    %250 = vector.broadcast %249 : vector<1x128xf32> to vector<8x128xf32>
    %251 = arith.mulf %248, %250 : vector<8x128xf32>
    %c0_248 = arith.constant 0 : index
    %c0_249 = arith.constant 0 : index
    %252 = vector.load %arg13[%c0_248, %c0_249] : memref<1x128xf32, #tpu.memory_space<vmem>>, vector<1x128xf32>
    %253 = vector.broadcast %252 : vector<1x128xf32> to vector<8x128xf32>
    %254 = arith.addf %251, %253 : vector<8x128xf32>
    %cst_250 = arith.constant 0.000000e+00 : f32
    %255 = vector.broadcast %cst_250 : f32 to vector<8x128xf32>
    %256 = arith.maximumf %254, %255 : vector<8x128xf32>
    %257 = arith.truncf %256 : vector<8x128xf32> to vector<8x128xbf16>
    %c0_251 = arith.constant 0 : index
    %c0_252 = arith.constant 0 : index
    %258 = vector.load %arg14[%c0_251, %c0_252] : memref<128x128xbf16, #tpu.memory_space<vmem>>, vector<128x128xbf16>
    %cst_253 = arith.constant dense<0.000000e+00> : vector<8x128xf32>
    %259 = tpu.matmul %257, %258, %cst_253 {dimension_numbers = #tpu.dot_dimension_numbers<[1], [0], [0], [1], [0, 0, 1, 1], [], []>} : vector<8x128xbf16>, vector<128x128xbf16>, vector<8x128xf32> -> vector<8x128xf32>
    %c0_254 = arith.constant 0 : index
    %c0_255 = arith.constant 0 : index
    %260 = vector.load %arg15[%c0_254, %c0_255] : memref<1x128xf32, #tpu.memory_space<vmem>>, vector<1x128xf32>
    %261 = vector.broadcast %260 : vector<1x128xf32> to vector<8x128xf32>
    %262 = arith.addf %259, %261 : vector<8x128xf32>
    %c0_256 = arith.constant 0 : index
    %c0_257 = arith.constant 0 : index
    %c0_258 = arith.constant 0 : index
    %263 = vector.load %arg16[%c0_256, %c0_257, %c0_258] : memref<1x8x128xf32, #tpu.memory_space<vmem>>, vector<1x8x128xf32>
    %264 = vector.shape_cast %263 : vector<1x8x128xf32> to vector<8x128xf32>
    %265 = vector.shape_cast %262 : vector<8x128xf32> to vector<1x8x128xf32>
    tpu.vector_store %arg16[%c0_256, %c0_257, %c0_258], %265 {strides = array<i32>} : memref<1x8x128xf32, #tpu.memory_space<vmem>>, vector<1x8x128xf32>,
    return
  }
  func.func @transform_0(%arg0: i32) -> (i32, i32, i32) {
    %c0_i32 = arith.constant 0 : i32
    %c0_i32_0 = arith.constant 0 : i32
    %c0_i32_1 = arith.constant 0 : i32
    return %arg0, %c0_i32, %c0_i32_0 : i32, i32, i32
  }
  func.func @transform_1(%arg0: i32) -> (i32, i32) {
    %c0_i32 = arith.constant 0 : i32
    %c0_i32_0 = arith.constant 0 : i32
    %c0_i32_1 = arith.constant 0 : i32
    return %c0_i32, %c0_i32_0 : i32, i32
  }
  func.func @transform_2(%arg0: i32) -> (i32, i32) {
    %c0_i32 = arith.constant 0 : i32
    %c0_i32_0 = arith.constant 0 : i32
    %c0_i32_1 = arith.constant 0 : i32
    return %c0_i32, %c0_i32_0 : i32, i32
  }
  func.func @transform_3(%arg0: i32) -> (i32, i32) {
    %c0_i32 = arith.constant 0 : i32
    %c0_i32_0 = arith.constant 0 : i32
    %c0_i32_1 = arith.constant 0 : i32
    return %c0_i32, %c0_i32_0 : i32, i32
  }
  func.func @transform_4(%arg0: i32) -> (i32, i32) {
    %c0_i32 = arith.constant 0 : i32
    %c0_i32_0 = arith.constant 0 : i32
    %c0_i32_1 = arith.constant 0 : i32
    return %c0_i32, %c0_i32_0 : i32, i32
  }
  func.func @transform_5(%arg0: i32) -> (i32, i32) {
    %c0_i32 = arith.constant 0 : i32
    %c0_i32_0 = arith.constant 0 : i32
    %c0_i32_1 = arith.constant 0 : i32
    return %c0_i32, %c0_i32_0 : i32, i32
  }
  func.func @transform_6(%arg0: i32) -> (i32, i32) {
    %c0_i32 = arith.constant 0 : i32
    %c0_i32_0 = arith.constant 0 : i32
    %c0_i32_1 = arith.constant 0 : i32
    return %c0_i32, %c0_i32_0 : i32, i32
  }
  func.func @transform_7(%arg0: i32) -> (i32, i32) {
    %c0_i32 = arith.constant 0 : i32
    %c0_i32_0 = arith.constant 0 : i32
    %c0_i32_1 = arith.constant 0 : i32
    return %c0_i32, %c0_i32_0 : i32, i32
  }
  func.func @transform_8(%arg0: i32) -> (i32, i32) {
    %c0_i32 = arith.constant 0 : i32
    %c0_i32_0 = arith.constant 0 : i32
    %c0_i32_1 = arith.constant 0 : i32
    return %c0_i32, %c0_i32_0 : i32, i32
  }
  func.func @transform_9(%arg0: i32) -> (i32, i32) {
    %c0_i32 = arith.constant 0 : i32
    %c0_i32_0 = arith.constant 0 : i32
    %c0_i32_1 = arith.constant 0 : i32
    return %c0_i32, %c0_i32_0 : i32, i32
  }
  func.func @transform_10(%arg0: i32) -> (i32, i32) {
    %c0_i32 = arith.constant 0 : i32
    %c0_i32_0 = arith.constant 0 : i32
    %c0_i32_1 = arith.constant 0 : i32
    return %c0_i32, %c0_i32_0 : i32, i32
  }
  func.func @transform_11(%arg0: i32) -> (i32, i32) {
    %c0_i32 = arith.constant 0 : i32
    %c0_i32_0 = arith.constant 0 : i32
    %c0_i32_1 = arith.constant 0 : i32
    return %c0_i32, %c0_i32_0 : i32, i32
  }
  func.func @transform_12(%arg0: i32) -> (i32, i32) {
    %c0_i32 = arith.constant 0 : i32
    %c0_i32_0 = arith.constant 0 : i32
    %c0_i32_1 = arith.constant 0 : i32
    return %c0_i32, %c0_i32_0 : i32, i32
  }
  func.func @transform_13(%arg0: i32) -> (i32, i32) {
    %c0_i32 = arith.constant 0 : i32
    %c0_i32_0 = arith.constant 0 : i32
    %c0_i32_1 = arith.constant 0 : i32
    return %c0_i32, %c0_i32_0 : i32, i32
  }
  func.func @transform_14(%arg0: i32) -> (i32, i32) {
    %c0_i32 = arith.constant 0 : i32
    %c0_i32_0 = arith.constant 0 : i32
    %c0_i32_1 = arith.constant 0 : i32
    return %c0_i32, %c0_i32_0 : i32, i32
  }
  func.func @transform_15(%arg0: i32) -> (i32, i32, i32) {
    %c0_i32 = arith.constant 0 : i32
    %c0_i32_0 = arith.constant 0 : i32
    %c0_i32_1 = arith.constant 0 : i32
    return %arg0, %c0_i32, %c0_i32_0 : i32, i32, i32
  }
}

</mosaic_0001>

<llo_original>
// kernel: missile_detector_forward.1
$region0: #{missile_detector_forward.1}
  #allocation0 [shape = 'u32[]', space=smem, size = 0x4, offset = 0x4, fixed_abs, tag = 'smem constant byte address 0x4 - core index']
  #allocation1 [shape = 'u32[144,128]{1,0:T(1,128)}', space=vmem, size = 0x12000, scoped, tag = 'internal scratch']
  #allocation2 [shape = 'f32[110,16]{1,0:T(8,128)}', space=vmem, size = 0xe000, scoped, tag = 'scratch operand']
  #allocation3 [shape = 'f32[42,32]{1,0:T(8,128)}', space=vmem, size = 0x6000, scoped, tag = 'scratch operand']
  #allocation4 [shape = 'f32[20,64]{1,0:T(8,128)}', space=vmem, size = 0x3000, scoped, tag = 'scratch operand']
  #allocation5 [shape = 'f32[256,64]{1,0:T(8,128)}', space=vmem, size = 0x20000, scoped, tag = 'scratch operand']
  %s0 = inlined_call_operand.vmem [shape: bf16[2,256,32], index: 0, kind: input, shape index: {}]
  %s1 = inlined_call_operand.vmem [shape: bf16[32,16], index: 1, kind: input, shape index: {}]
  %s2 = inlined_call_operand.vmem [shape: f32[1,16], index: 2, kind: input, shape index: {}]
  %s3 = inlined_call_operand.vmem [shape: f32[1,16], index: 3, kind: input, shape index: {}]
  %s4 = inlined_call_operand.vmem [shape: bf16[144,32], index: 4, kind: input, shape index: {}]
  %s5 = inlined_call_operand.vmem [shape: f32[1,32], index: 5, kind: input, shape index: {}]
  %s6 = inlined_call_operand.vmem [shape: f32[1,32], index: 6, kind: input, shape index: {}]
  %s7 = inlined_call_operand.vmem [shape: bf16[288,64], index: 7, kind: input, shape index: {}]
  %s8 = inlined_call_operand.vmem [shape: f32[1,64], index: 8, kind: input, shape index: {}]
  %s9 = inlined_call_operand.vmem [shape: f32[1,64], index: 9, kind: input, shape index: {}]
  %s10 = inlined_call_operand.vmem [shape: bf16[576,128], index: 10, kind: input, shape index: {}]
  %s11 = inlined_call_operand.vmem [shape: f32[1,128], index: 11, kind: input, shape index: {}]
  %s12 = inlined_call_operand.vmem [shape: f32[1,128], index: 12, kind: input, shape index: {}]
  %s13 = inlined_call_operand.vmem [shape: bf16[128,128], index: 13, kind: input, shape index: {}]
  %s14 = inlined_call_operand.vmem [shape: f32[1,128], index: 14, kind: input, shape index: {}]
  %s15 = inlined_call_operand.vmem [shape: f32[2,8,128], index: 15, kind: output, shape index: {}]
  %s16 = sld [smem:[#allocation0]]
  $region93: #{missile_detector_forward.1} parent=0
    _
  %s18 = ssub.s32 1, %s16
  %s19 = scalar_select 0, %s18, %s16
  loop: start=0, step=1, limit=4
  $region2: #{missile_detector_forward.1} parent=0 // loop_pre_header
    _
  $region3: #{missile_detector_forward.1} parent=0 // loop_header
    %s21 = sphi 0, %s25
    %p22 = scmp.ge.s32.totalorder %s21, 4
    %s31 = sphi 0, %s33
    %s34 = sphi 0, %s31
    %s35 = sphi 0, %s34
    %s51 = sphi 0, %s35
    %s55 = sphi 0, %s55
    %s57 = sphi 0, %s55
    %s58 = sphi 0, %s57
    %s72 = sphi 0, %s58
    %s76 = sphi 0, %s76
    %s78 = sphi 0, %s76
    %s79 = sphi 0, %s78
    %s93 = sphi 0, %s79
    %s97 = sphi 0, %s97
    %s99 = sphi 0, %s97
    %s100 = sphi 0, %s99
    %s114 = sphi 0, %s100
    %s118 = sphi 0, %s118
    %s120 = sphi 0, %s118
    %s121 = sphi 0, %s120
    %s135 = sphi 0, %s121
    %s139 = sphi 0, %s139
    %s141 = sphi 0, %s139
    %s142 = sphi 0, %s141
    %s156 = sphi 0, %s142
    %s160 = sphi 0, %s160
    %s162 = sphi 0, %s160
    %s163 = sphi 0, %s162
    %s177 = sphi 0, %s163
    %s181 = sphi 0, %s181
    %s183 = sphi 0, %s181
    %s184 = sphi 0, %s183
    %s198 = sphi 0, %s184
    %s202 = sphi 0, %s202
    %s204 = sphi 0, %s202
    %s205 = sphi 0, %s204
    %s219 = sphi 0, %s205
    %s223 = sphi 0, %s223
    %s225 = sphi 0, %s223
    %s226 = sphi 0, %s225
    %s240 = sphi 0, %s226
    %s244 = sphi 0, %s244
    %s246 = sphi 0, %s244
    %s247 = sphi 0, %s246
    %s261 = sphi 0, %s247
    %s265 = sphi 0, %s265
    %s267 = sphi 0, %s265
    %s268 = sphi 0, %s267
    %s282 = sphi 0, %s268
    %s286 = sphi 0, %s286
    %s288 = sphi 0, %s286
    %s289 = sphi 0, %s288
    %s303 = sphi 0, %s289
    %s307 = sphi 0, %s307
    %s309 = sphi 0, %s307
    %s310 = sphi 0, %s309
    %s324 = sphi 0, %s310
    %s328 = sphi 0, %s328
    %s330 = sphi 0, %s328
    %s331 = sphi 0, %s330
    %s345 = sphi 0, %s331
    %s351 = sphi 0, %s353
    %s354 = sphi 0, %s351
    %s355 = sphi 0, %s354
    %s371 = sphi 0, %s355
  $region4: #{missile_detector_forward.1} parent=0 // loop_header_branch
    %24 = sbr.rel (%p22) target = $region8
  $region5: #{missile_detector_forward.1} parent=0 // loop_body
    %s26 = ssub.s32 %s21, 1
    %s27 = ssub.s32 %s21, 2
    %s28 = sadd.s32 %s21, 1
    %s29 = ssub.s32 %s21, %s28
    %p30 = scmp.eq.s32.totalorder %s29, 0
    %s32 = sadd.s32 %s31, 1
    %s33 = scalar_select %p30, %s31, %s32
    %p36 = pneg %p30
    %p37 = scmp.eq.s32.totalorder %s21, 1
    %p38 = por %p36, %p37
    %p39 = scmp.ne.s32.totalorder %s31, %s34
    %p40 = scmp.eq.s32.totalorder %s21, 0
    %p41 = por %p39, %p40
    %p42 = scmp.ne.s32.totalorder %s31, %s34
    %p43 = scmp.eq.s32.totalorder %s26, 1
    %p44 = por %p42, %p43
    %p45 = scmp.ne.s32.totalorder %s34, %s35
    %p46 = scmp.eq.s32.totalorder %s26, 0
    %p47 = por %p45, %p46
    %p48 = scmp.ne.s32.totalorder %s34, %s35
    %p49 = scmp.eq.s32.totalorder %s27, 1
    %p50 = por %p48, %p49
    %p52 = scmp.ne.s32.totalorder %s35, %s51
    %p53 = scmp.eq.s32.totalorder %s27, 0
    %p54 = por %p52, %p53
    %s56 = sadd.s32 %s55, 1
    %p59 = scmp.eq.s32.totalorder %s21, 1
    %p60 = scmp.ne.s32.totalorder %s55, %s57
    %p61 = scmp.eq.s32.totalorder %s21, 0
    %p62 = por %p60, %p61
    %p63 = scmp.ne.s32.totalorder %s55, %s57
    %p64 = scmp.eq.s32.totalorder %s26, 1
    %p65 = por %p63, %p64
    %p66 = scmp.ne.s32.totalorder %s57, %s58
    %p67 = scmp.eq.s32.totalorder %s26, 0
    %p68 = por %p66, %p67
    %p69 = scmp.ne.s32.totalorder %s57, %s58
    %p70 = scmp.eq.s32.totalorder %s27, 1
    %p71 = por %p69, %p70
    %p73 = scmp.ne.s32.totalorder %s58, %s72
    %p74 = scmp.eq.s32.totalorder %s27, 0
    %p75 = por %p73, %p74
    %s77 = sadd.s32 %s76, 1
    %p80 = scmp.eq.s32.totalorder %s21, 1
    %p81 = scmp.ne.s32.totalorder %s76, %s78
    %p82 = scmp.eq.s32.totalorder %s21, 0
    %p83 = por %p81, %p82
    %p84 = scmp.ne.s32.totalorder %s76, %s78
    %p85 = scmp.eq.s32.totalorder %s26, 1
    %p86 = por %p84, %p85
    %p87 = scmp.ne.s32.totalorder %s78, %s79
    %p88 = scmp.eq.s32.totalorder %s26, 0
    %p89 = por %p87, %p88
    %p90 = scmp.ne.s32.totalorder %s78, %s79
    %p91 = scmp.eq.s32.totalorder %s27, 1
    %p92 = por %p90, %p91
    %p94 = scmp.ne.s32.totalorder %s79, %s93
    %p95 = scmp.eq.s32.totalorder %s27, 0
    %p96 = por %p94, %p95
    %s98 = sadd.s32 %s97, 1
    %p101 = scmp.eq.s32.totalorder %s21, 1
    %p102 = scmp.ne.s32.totalorder %s97, %s99
    %p103 = scmp.eq.s32.totalorder %s21, 0
    %p104 = por %p102, %p103
    %p105 = scmp.ne.s32.totalorder %s97, %s99
    %p106 = scmp.eq.s32.totalorder %s26, 1
    %p107 = por %p105, %p106
    %p108 = scmp.ne.s32.totalorder %s99, %s100
    %p109 = scmp.eq.s32.totalorder %s26, 0
    %p110 = por %p108, %p109
    %p111 = scmp.ne.s32.totalorder %s99, %s100
    %p112 = scmp.eq.s32.totalorder %s27, 1
    %p113 = por %p111, %p112
    %p115 = scmp.ne.s32.totalorder %s100, %s114
    %p116 = scmp.eq.s32.totalorder %s27, 0
    %p117 = por %p115, %p116
    %s119 = sadd.s32 %s118, 1
    %p122 = scmp.eq.s32.totalorder %s21, 1
    %p123 = scmp.ne.s32.totalorder %s118, %s120
    %p124 = scmp.eq.s32.totalorder %s21, 0
    %p125 = por %p123, %p124
    %p126 = scmp.ne.s32.totalorder %s118, %s120
    %p127 = scmp.eq.s32.totalorder %s26, 1
    %p128 = por %p126, %p127
    %p129 = scmp.ne.s32.totalorder %s120, %s121
    %p130 = scmp.eq.s32.totalorder %s26, 0
    %p131 = por %p129, %p130
    %p132 = scmp.ne.s32.totalorder %s120, %s121
    %p133 = scmp.eq.s32.totalorder %s27, 1
    %p134 = por %p132, %p133
    %p136 = scmp.ne.s32.totalorder %s121, %s135
    %p137 = scmp.eq.s32.totalorder %s27, 0
    %p138 = por %p136, %p137
    %s140 = sadd.s32 %s139, 1
    %p143 = scmp.eq.s32.totalorder %s21, 1
    %p144 = scmp.ne.s32.totalorder %s139, %s141
    %p145 = scmp.eq.s32.totalorder %s21, 0
    %p146 = por %p144, %p145
    %p147 = scmp.ne.s32.totalorder %s139, %s141
    %p148 = scmp.eq.s32.totalorder %s26, 1
    %p149 = por %p147, %p148
    %p150 = scmp.ne.s32.totalorder %s141, %s142
    %p151 = scmp.eq.s32.totalorder %s26, 0
    %p152 = por %p150, %p151
    %p153 = scmp.ne.s32.totalorder %s141, %s142
    %p154 = scmp.eq.s32.totalorder %s27, 1
    %p155 = por %p153, %p154
    %p157 = scmp.ne.s32.totalorder %s142, %s156
    %p158 = scmp.eq.s32.totalorder %s27, 0
    %p159 = por %p157, %p158
    %s161 = sadd.s32 %s160, 1
    %p164 = scmp.eq.s32.totalorder %s21, 1
    %p165 = scmp.ne.s32.totalorder %s160, %s162
    %p166 = scmp.eq.s32.totalorder %s21, 0
    %p167 = por %p165, %p166
    %p168 = scmp.ne.s32.totalorder %s160, %s162
    %p169 = scmp.eq.s32.totalorder %s26, 1
    %p170 = por %p168, %p169
    %p171 = scmp.ne.s32.totalorder %s162, %s163
    %p172 = scmp.eq.s32.totalorder %s26, 0
    %p173 = por %p171, %p172
    %p174 = scmp.ne.s32.totalorder %s162, %s163
    %p175 = scmp.eq.s32.totalorder %s27, 1
    %p176 = por %p174, %p175
    %p178 = scmp.ne.s32.totalorder %s163, %s177
    %p179 = scmp.eq.s32.totalorder %s27, 0
    %p180 = por %p178, %p179
    %s182 = sadd.s32 %s181, 1
    %p185 = scmp.eq.s32.totalorder %s21, 1
    %p186 = scmp.ne.s32.totalorder %s181, %s183
    %p187 = scmp.eq.s32.totalorder %s21, 0
    %p188 = por %p186, %p187
    %p189 = scmp.ne.s32.totalorder %s181, %s183
    %p190 = scmp.eq.s32.totalorder %s26, 1
    %p191 = por %p189, %p190
    %p192 = scmp.ne.s32.totalorder %s183, %s184
    %p193 = scmp.eq.s32.totalorder %s26, 0
    %p194 = por %p192, %p193
    %p195 = scmp.ne.s32.totalorder %s183, %s184
    %p196 = scmp.eq.s32.totalorder %s27, 1
    %p197 = por %p195, %p196
    %p199 = scmp.ne.s32.totalorder %s184, %s198
    %p200 = scmp.eq.s32.totalorder %s27, 0
    %p201 = por %p199, %p200
    %s203 = sadd.s32 %s202, 1
    %p206 = scmp.eq.s32.totalorder %s21, 1
    %p207 = scmp.ne.s32.totalorder %s202, %s204
    %p208 = scmp.eq.s32.totalorder %s21, 0
    %p209 = por %p207, %p208
    %p210 = scmp.ne.s32.totalorder %s202, %s204
    %p211 = scmp.eq.s32.totalorder %s26, 1
    %p212 = por %p210, %p211
    %p213 = scmp.ne.s32.totalorder %s204, %s205
    %p214 = scmp.eq.s32.totalorder %s26, 0
    %p215 = por %p213, %p214
    %p216 = scmp.ne.s32.totalorder %s204, %s205
    %p217 = scmp.eq.s32.totalorder %s27, 1
    %p218 = por %p216, %p217
    %p220 = scmp.ne.s32.totalorder %s205, %s219
    %p221 = scmp.eq.s32.totalorder %s27, 0
    %p222 = por %p220, %p221
    %s224 = sadd.s32 %s223, 1
    %p227 = scmp.eq.s32.totalorder %s21, 1
    %p228 = scmp.ne.s32.totalorder %s223, %s225
    %p229 = scmp.eq.s32.totalorder %s21, 0
    %p230 = por %p228, %p229
    %p231 = scmp.ne.s32.totalorder %s223, %s225
    %p232 = scmp.eq.s32.totalorder %s26, 1
    %p233 = por %p231, %p232
    %p234 = scmp.ne.s32.totalorder %s225, %s226
    %p235 = scmp.eq.s32.totalorder %s26, 0
    %p236 = por %p234, %p235
    %p237 = scmp.ne.s32.totalorder %s225, %s226
    %p238 = scmp.eq.s32.totalorder %s27, 1
    %p239 = por %p237, %p238
    %p241 = scmp.ne.s32.totalorder %s226, %s240
    %p242 = scmp.eq.s32.totalorder %s27, 0
    %p243 = por %p241, %p242
    %s245 = sadd.s32 %s244, 1
    %p248 = scmp.eq.s32.totalorder %s21, 1
    %p249 = scmp.ne.s32.totalorder %s244, %s246
    %p250 = scmp.eq.s32.totalorder %s21, 0
    %p251 = por %p249, %p250
    %p252 = scmp.ne.s32.totalorder %s244, %s246
    %p253 = scmp.eq.s32.totalorder %s26, 1
    %p254 = por %p252, %p253
    %p255 = scmp.ne.s32.totalorder %s246, %s247
    %p256 = scmp.eq.s32.totalorder %s26, 0
    %p257 = por %p255, %p256
    %p258 = scmp.ne.s32.totalorder %s246, %s247
    %p259 = scmp.eq.s32.totalorder %s27, 1
    %p260 = por %p258, %p259
    %p262 = scmp.ne.s32.totalorder %s247, %s261
    %p263 = scmp.eq.s32.totalorder %s27, 0
    %p264 = por %p262, %p263
    %s266 = sadd.s32 %s265, 1
    %p269 = scmp.eq.s32.totalorder %s21, 1
    %p270 = scmp.ne.s32.totalorder %s265, %s267
    %p271 = scmp.eq.s32.totalorder %s21, 0
    %p272 = por %p270, %p271
    %p273 = scmp.ne.s32.totalorder %s265, %s267
    %p274 = scmp.eq.s32.totalorder %s26, 1
    %p275 = por %p273, %p274
    %p276 = scmp.ne.s32.totalorder %s267, %s268
    %p277 = scmp.eq.s32.totalorder %s26, 0
    %p278 = por %p276, %p277
    %p279 = scmp.ne.s32.totalorder %s267, %s268
    %p280 = scmp.eq.s32.totalorder %s27, 1
    %p281 = por %p279, %p280
    %p283 = scmp.ne.s32.totalorder %s268, %s282
    %p284 = scmp.eq.s32.totalorder %s27, 0
    %p285 = por %p283, %p284
    %s287 = sadd.s32 %s286, 1
    %p290 = scmp.eq.s32.totalorder %s21, 1
    %p291 = scmp.ne.s32.totalorder %s286, %s288
    %p292 = scmp.eq.s32.totalorder %s21, 0
    %p293 = por %p291, %p292
    %p294 = scmp.ne.s32.totalorder %s286, %s288
    %p295 = scmp.eq.s32.totalorder %s26, 1
    %p296 = por %p294, %p295
    %p297 = scmp.ne.s32.totalorder %s288, %s289
    %p298 = scmp.eq.s32.totalorder %s26, 0
    %p299 = por %p297, %p298
    %p300 = scmp.ne.s32.totalorder %s288, %s289
    %p301 = scmp.eq.s32.totalorder %s27, 1
    %p302 = por %p300, %p301
    %p304 = scmp.ne.s32.totalorder %s289, %s303
    %p305 = scmp.eq.s32.totalorder %s27, 0
    %p306 = por %p304, %p305
    %s308 = sadd.s32 %s307, 1
    %p311 = scmp.eq.s32.totalorder %s21, 1
    %p312 = scmp.ne.s32.totalorder %s307, %s309
    %p313 = scmp.eq.s32.totalorder %s21, 0
    %p314 = por %p312, %p313
    %p315 = scmp.ne.s32.totalorder %s307, %s309
    %p316 = scmp.eq.s32.totalorder %s26, 1
    %p317 = por %p315, %p316
    %p318 = scmp.ne.s32.totalorder %s309, %s310
    %p319 = scmp.eq.s32.totalorder %s26, 0
    %p320 = por %p318, %p319
    %p321 = scmp.ne.s32.totalorder %s309, %s310
    %p322 = scmp.eq.s32.totalorder %s27, 1
    %p323 = por %p321, %p322
    %p325 = scmp.ne.s32.totalorder %s310, %s324
    %p326 = scmp.eq.s32.totalorder %s27, 0
    %p327 = por %p325, %p326
    %s329 = sadd.s32 %s328, 1
    %p332 = scmp.eq.s32.totalorder %s21, 1
    %p333 = scmp.ne.s32.totalorder %s328, %s330
    %p334 = scmp.eq.s32.totalorder %s21, 0
    %p335 = por %p333, %p334
    %p336 = scmp.ne.s32.totalorder %s328, %s330
    %p337 = scmp.eq.s32.totalorder %s26, 1
    %p338 = por %p336, %p337
    %p339 = scmp.ne.s32.totalorder %s330, %s331
    %p340 = scmp.eq.s32.totalorder %s26, 0
    %p341 = por %p339, %p340
    %p342 = scmp.ne.s32.totalorder %s330, %s331
    %p343 = scmp.eq.s32.totalorder %s27, 1
    %p344 = por %p342, %p343
    %p346 = scmp.ne.s32.totalorder %s331, %s345
    %p347 = scmp.eq.s32.totalorder %s27, 0
    %p348 = por %p346, %p347
    %s349 = ssub.s32 %s21, %s28
    %p350 = scmp.eq.s32.totalorder %s349, 0
    %s352 = sadd.s32 %s351, 1
    %s353 = scalar_select %p350, %s351, %s352
    %p356 = pneg %p350
    %p357 = scmp.eq.s32.totalorder %s21, 1
    %p358 = por %p356, %p357
    %p359 = scmp.ne.s32.totalorder %s351, %s354
    %p360 = scmp.eq.s32.totalorder %s21, 0
    %p361 = por %p359, %p360
    %p362 = scmp.ne.s32.totalorder %s351, %s354
    %p363 = scmp.eq.s32.totalorder %s26, 1
    %p364 = por %p362, %p363
    %p365 = scmp.ne.s32.totalorder %s354, %s355
    %p366 = scmp.eq.s32.totalorder %s26, 0
    %p367 = por %p365, %p366
    %p368 = scmp.ne.s32.totalorder %s354, %s355
    %p369 = scmp.eq.s32.totalorder %s27, 1
    %p370 = por %p368, %p369
    %p372 = scmp.ne.s32.totalorder %s355, %s371
    %p373 = scmp.eq.s32.totalorder %s27, 0
    %p374 = por %p372, %p373
    %p375 = scmp.le.s32.totalorder 1, %s21
    %p376 = scmp.lt.s32.totalorder %s21, 3
    %p377 = pnand %p375, %p376
    %p378 = pneg %p377
    // Predicated region
    $region9: #{missile_detector_forward.1} parent=5 // pred_check
      _
    $region10: #{missile_detector_forward.1} parent=5 // pred_check_branch
      %380 = sbr.rel (%p377) target = $region12
    $region11: #{missile_detector_forward.1} parent=5 // pred_region
      %s381 = ssub.s32 %s21, 1
      // Predicated region
      $region13: #{missile_detector_forward.1} parent=11 // pred_check
        %p382 = pneg %p68
      $region14: #{missile_detector_forward.1} parent=11 // pred_check_branch
        %384 = sbr.rel (%p382) target = $region16
      $region15: #{missile_detector_forward.1} parent=11 // pred_region
        _
      $region16: #{missile_detector_forward.1} parent=11 // pred_fallthru
        _
      // Predicated region
      $region17: #{missile_detector_forward.1} parent=11 // pred_check
        %p385 = pneg %p89
      $region18: #{missile_detector_forward.1} parent=11 // pred_check_branch
        %387 = sbr.rel (%p385) target = $region20
      $region19: #{missile_detector_forward.1} parent=11 // pred_region
        _
      $region20: #{missile_detector_forward.1} parent=11 // pred_fallthru
        _
      // Predicated region
      $region21: #{missile_detector_forward.1} parent=11 // pred_check
        %p388 = pneg %p110
      $region22: #{missile_detector_forward.1} parent=11 // pred_check_branch
        %390 = sbr.rel (%p388) target = $region24
      $region23: #{missile_detector_forward.1} parent=11 // pred_region
        _
      $region24: #{missile_detector_forward.1} parent=11 // pred_fallthru
        _
      // Predicated region
      $region25: #{missile_detector_forward.1} parent=11 // pred_check
        %p391 = pneg %p131
      $region26: #{missile_detector_forward.1} parent=11 // pred_check_branch
        %393 = sbr.rel (%p391) target = $region28
      $region27: #{missile_detector_forward.1} parent=11 // pred_region
        _
      $region28: #{missile_detector_forward.1} parent=11 // pred_fallthru
        _
      // Predicated region
      $region29: #{missile_detector_forward.1} parent=11 // pred_check
        %p394 = pneg %p152
      $region30: #{missile_detector_forward.1} parent=11 // pred_check_branch
        %396 = sbr.rel (%p394) target = $region32
      $region31: #{missile_detector_forward.1} parent=11 // pred_region
        _
      $region32: #{missile_detector_forward.1} parent=11 // pred_fallthru
        _
      // Predicated region
      $region33: #{missile_detector_forward.1} parent=11 // pred_check
        %p397 = pneg %p173
      $region34: #{missile_detector_forward.1} parent=11 // pred_check_branch
        %399 = sbr.rel (%p397) target = $region36
      $region35: #{missile_detector_forward.1} parent=11 // pred_region
        _
      $region36: #{missile_detector_forward.1} parent=11 // pred_fallthru
        _
      // Predicated region
      $region37: #{missile_detector_forward.1} parent=11 // pred_check
        %p400 = pneg %p194
      $region38: #{missile_detector_forward.1} parent=11 // pred_check_branch
        %402 = sbr.rel (%p400) target = $region40
      $region39: #{missile_detector_forward.1} parent=11 // pred_region
        _
      $region40: #{missile_detector_forward.1} parent=11 // pred_fallthru
        _
      // Predicated region
      $region41: #{missile_detector_forward.1} parent=11 // pred_check
        %p403 = pneg %p215
      $region42: #{missile_detector_forward.1} parent=11 // pred_check_branch
        %405 = sbr.rel (%p403) target = $region44
      $region43: #{missile_detector_forward.1} parent=11 // pred_region
        _
      $region44: #{missile_detector_forward.1} parent=11 // pred_fallthru
        _
      // Predicated region
      $region45: #{missile_detector_forward.1} parent=11 // pred_check
        %p406 = pneg %p236
      $region46: #{missile_detector_forward.1} parent=11 // pred_check_branch
        %408 = sbr.rel (%p406) target = $region48
      $region47: #{missile_detector_forward.1} parent=11 // pred_region
        _
      $region48: #{missile_detector_forward.1} parent=11 // pred_fallthru
        _
      // Predicated region
      $region49: #{missile_detector_forward.1} parent=11 // pred_check
        %p409 = pneg %p257
      $region50: #{missile_detector_forward.1} parent=11 // pred_check_branch
        %411 = sbr.rel (%p409) target = $region52
      $region51: #{missile_detector_forward.1} parent=11 // pred_region
        _
      $region52: #{missile_detector_forward.1} parent=11 // pred_fallthru
        _
      // Predicated region
      $region53: #{missile_detector_forward.1} parent=11 // pred_check
        %p412 = pneg %p278
      $region54: #{missile_detector_forward.1} parent=11 // pred_check_branch
        %414 = sbr.rel (%p412) target = $region56
      $region55: #{missile_detector_forward.1} parent=11 // pred_region
        _
      $region56: #{missile_detector_forward.1} parent=11 // pred_fallthru
        _
      // Predicated region
      $region57: #{missile_detector_forward.1} parent=11 // pred_check
        %p415 = pneg %p299
      $region58: #{missile_detector_forward.1} parent=11 // pred_check_branch
        %417 = sbr.rel (%p415) target = $region60
      $region59: #{missile_detector_forward.1} parent=11 // pred_region
        _
      $region60: #{missile_detector_forward.1} parent=11 // pred_fallthru
        _
      // Predicated region
      $region61: #{missile_detector_forward.1} parent=11 // pred_check
        %p418 = pneg %p320
      $region62: #{missile_detector_forward.1} parent=11 // pred_check_branch
        %420 = sbr.rel (%p418) target = $region64
      $region63: #{missile_detector_forward.1} parent=11 // pred_region
        _
      $region64: #{missile_detector_forward.1} parent=11 // pred_fallthru
        _
      // Predicated region
      $region65: #{missile_detector_forward.1} parent=11 // pred_check
        %p421 = pneg %p341
      $region66: #{missile_detector_forward.1} parent=11 // pred_check_branch
        %423 = sbr.rel (%p421) target = $region68
      $region67: #{missile_detector_forward.1} parent=11 // pred_region
        _
      $region68: #{missile_detector_forward.1} parent=11 // pred_fallthru
        _
    $region12: #{missile_detector_forward.1} parent=5 // pred_fallthru
      _
    %p424 = scmp.lt.s32.totalorder %s21, 2
    // Predicated region
    $region69: #{missile_detector_forward.1} parent=5 // pred_check
      %p425 = pneg %p424
    $region70: #{missile_detector_forward.1} parent=5 // pred_check_branch
      %427 = sbr.rel (%p425) target = $region72
    $region71: #{missile_detector_forward.1} parent=5 // pred_region
      // Predicated region
      $region73: #{missile_detector_forward.1} parent=71 // pred_check
        %p428 = pneg %p41
      $region74: #{missile_detector_forward.1} parent=71 // pred_check_branch
        %430 = sbr.rel (%p428) target = $region76
      $region75: #{missile_detector_forward.1} parent=71 // pred_region
        %p431 = scmp.lt.s32.totalorder %s21, 1
        %s432 = scalar_select %p431, %s21, 1
        %s433 = smul.addr %s432, 32
        %s434 = smul.addr %s433, 4
        %s435 = scalar_lea.vmem %s0, %s434
      $region76: #{missile_detector_forward.1} parent=71 // pred_fallthru
        _
    $region72: #{missile_detector_forward.1} parent=5 // pred_fallthru
      _
    %p436 = scmp.le.s32.totalorder 1, %s21
    %p437 = scmp.lt.s32.totalorder %s21, 3
    %p438 = pnand %p436, %p437
    %p439 = pneg %p438
    // Predicated region
    $region77: #{missile_detector_forward.1} parent=5 // pred_check
      _
    $region78: #{missile_detector_forward.1} parent=5 // pred_check_branch
      %441 = sbr.rel (%p438) target = $region80
    $region79: #{missile_detector_forward.1} parent=5 // pred_region
      %s442 = ssub.s32 %s21, 1
      %p443 = scmp.lt.s32.totalorder %s26, 1
      %s444 = scalar_select %p443, %s26, 1
      %s445 = smul.addr %s444, 32
      %s446 = smul.addr %s445, 4
      %s447 = scalar_lea.vmem %s0, %s446
      %p448 = pneg %p47
      %p449 = pneg %p44
      %p450 = pneg %p68
      %p451 = pneg %p65
      %p452 = pneg %p89
      %p453 = pneg %p86
      %p454 = pneg %p110
      %p455 = pneg %p107
      %p456 = pneg %p131
      %p457 = pneg %p128
      %p458 = pneg %p152
      %p459 = pneg %p149
      %p460 = pneg %p173
      %p461 = pneg %p170
      %p462 = pneg %p194
      %p463 = pneg %p191
      %p464 = pneg %p215
      %p465 = pneg %p212
      %p466 = pneg %p236
      %p467 = pneg %p233
      %p468 = pneg %p257
      %p469 = pneg %p254
      %p470 = pneg %p278
      %p471 = pneg %p275
      %p472 = pneg %p299
      %p473 = pneg %p296
      %p474 = pneg %p320
      %p475 = pneg %p317
      %p476 = pneg %p341
      %p477 = pneg %p338
      %p478 = pneg %p367
      %p479 = pneg %p364
      %p480 = scmp.lt.s32.totalorder %s26, 1
      %s481 = scalar_select %p480, %s26, 1
      %s482 = smul.addr %s481, 8
      %s483 = scalar_lea.vmem %s15, %s482
      %p484 = scmp.lt.s32.totalorder %s26, 1
      %s485 = scalar_select %p484, %s26, 1
      %s486 = smul.addr %s485, 32
      %s487 = smul.addr %s486, 4
      %s488 = scalar_lea.vmem %s0, %s487
      %p489 = scmp.lt.s32.totalorder %s26, 1
      %s490 = scalar_select %p489, %s26, 1
      %s491 = smul.addr %s490, 8
      %s492 = scalar_lea.vmem %s15, %s491
      %vm494 = vcmask 130048
      %495 = vst.msk [vmem:[#allocation2] sm:$0xff] %vm494, 0.0
      %vm496 = vcmask 124928
      %497 = vst.msk [vmem:[#allocation2 + $0x8] sm:$0x7] %vm496, 0.0
      %vm498 = vcmask 123904
      %499 = vst.msk [vmem:[#allocation2 + $0x13] sm:$0x3] %vm498, 0.0
      %500 = vst.msk [vmem:[#allocation2 + $0x1d] sm:$0x3] %vm498, 0.0
      %501 = vst.msk [vmem:[#allocation2 + $0x27] sm:$0x3] %vm498, 0.0
      %502 = vst.msk [vmem:[#allocation2 + $0x31] sm:$0x3] %vm498, 0.0
      %503 = vst.msk [vmem:[#allocation2 + $0x3b] sm:$0x3] %vm498, 0.0
      %504 = vst.msk [vmem:[#allocation2 + $0x45] sm:$0x3] %vm498, 0.0
      %505 = vst.msk [vmem:[#allocation2 + $0x4f] sm:$0x3] %vm498, 0.0
      %506 = vst.msk [vmem:[#allocation2 + $0x59] sm:$0xff] %vm494, 0.0
      %507 = vst.msk [vmem:[#allocation2 + $0x61] sm:$0xff] %vm494, 0.0
      %vm508 = vcmask 126976
      %509 = vst.msk [vmem:[#allocation2 + $0x69] sm:$0x1f] %vm508, 0.0
      %vm510 = vcmask 260096
      %511 = vst.msk [vmem:[#allocation3] sm:$0x7f] %vm510, 0.0
      %vm512 = vcmask 254976
      %513 = vst.msk [vmem:[#allocation3 + $0xb] sm:$0x3] %vm512, 0.0
      %514 = vst.msk [vmem:[#allocation3 + $0x11] sm:$0x3] %vm512, 0.0
      %515 = vst.msk [vmem:[#allocation3 + $0x17] sm:$0x3] %vm512, 0.0
      %vm516 = vcmask 261120
      %517 = vst.msk [vmem:[#allocation3 + $0x1d] sm:$0xff] %vm516, 0.0
      %vm518 = vcmask 258048
      %519 = vst.msk [vmem:[#allocation3 + $0x25] sm:$0x1f] %vm518, 0.0
      %vm520 = vcmask 520192
      %521 = vst.msk [vmem:[#allocation4] sm:$0x1f] %vm520, 0.0
      %vm522 = vcmask 517120
      %523 = vst.msk [vmem:[#allocation4 + $0x7] sm:$0x3] %vm522, 0.0
      %vm524 = vcmask 523264
      %525 = vst.msk [vmem:[#allocation4 + $0xb] sm:$0xff] %vm524, 0.0
      %vm526 = vcmask 516096
      %527 = vst.msk [vmem:[#allocation4 + $0x13] sm:$0x1] %vm526, 0.0
      %v528 = vld [vmem:[%s488] sm:$0xf]
      %v529 = vld [vmem:[%s488 + $0x4] sm:$0xf]
      %v530 = vld [vmem:[%s488 + $0x8] sm:$0xf]
      %v531 = vld [vmem:[%s488 + $0xc] sm:$0xf]
      %v532 = vld [vmem:[%s488 + $0x10] sm:$0xf]
      %v533 = vld [vmem:[%s488 + $0x14] sm:$0xf]
      %v534 = vld [vmem:[%s488 + $0x18] sm:$0xf]
      %v535 = vld [vmem:[%s488 + $0x1c] sm:$0xf]
      %v536 = vld [vmem:[%s488 + $0x20] sm:$0xf]
      %v537 = vld [vmem:[%s488 + $0x24] sm:$0xf]
      %v538 = vld [vmem:[%s488 + $0x28] sm:$0xf]
      %v539 = vld [vmem:[%s488 + $0x2c] sm:$0xf]
      %v540 = vld [vmem:[%s488 + $0x30] sm:$0xf]
      %v541 = vld [vmem:[%s488 + $0x34] sm:$0xf]
      %v542 = vld [vmem:[%s488 + $0x38] sm:$0xf]
      %v543 = vld [vmem:[%s488 + $0x3c] sm:$0xf]
      %v544 = vld [vmem:[%s488 + $0x40] sm:$0xf]
      %v545 = vld [vmem:[%s488 + $0x44] sm:$0xf]
      %v546 = vld [vmem:[%s488 + $0x48] sm:$0xf]
      %v547 = vld [vmem:[%s488 + $0x4c] sm:$0xf]
      %v548 = vld [vmem:[%s488 + $0x50] sm:$0xf]
      %v549 = vld [vmem:[%s488 + $0x54] sm:$0xf]
      %v550 = vld [vmem:[%s488 + $0x58] sm:$0xf]
      %v551 = vld [vmem:[%s488 + $0x5c] sm:$0xf]
      %v552 = vld [vmem:[%s488 + $0x60] sm:$0xf]
      %v553 = vld [vmem:[%s488 + $0x64] sm:$0xf]
      %v554 = vld [vmem:[%s488 + $0x68] sm:$0xf]
      %v555 = vld [vmem:[%s488 + $0x6c] sm:$0xf]
      %v556 = vld [vmem:[%s488 + $0x70] sm:$0xf]
      %v557 = vld [vmem:[%s488 + $0x74] sm:$0xf]
      %v558 = vld [vmem:[%s488 + $0x78] sm:$0xf]
      %v559 = vld [vmem:[%s488 + $0x7c] sm:$0xf]
      %v560 = vld [vmem:[%s1] sm:$0xf]
      %v561 = vld [vmem:[%s1 + $0x4] sm:$0xf]
      %v562 = vld [vmem:[%s1 + $0x8] sm:$0xf]
      %v563 = vld [vmem:[%s1 + $0xc] sm:$0xf]
      %v596 = vunpack.c.l.b16 %v528
      %v597 = vunpack.c.l.b16 %v529
      %v598 = vunpack.c.l.b16 %v530
      %v599 = vunpack.c.l.b16 %v531
      %v600 = vunpack.c.l.b16 %v532
      %v601 = vunpack.c.l.b16 %v533
      %v602 = vunpack.c.l.b16 %v534
      %v603 = vunpack.c.l.b16 %v535
      %v604 = vunpack.c.l.b16 %v536
      %v605 = vunpack.c.l.b16 %v537
      %v606 = vunpack.c.l.b16 %v538
      %v607 = vunpack.c.l.b16 %v539
      %v608 = vunpack.c.l.b16 %v540
      %v609 = vunpack.c.l.b16 %v541
      %v610 = vunpack.c.l.b16 %v542
      %v611 = vunpack.c.l.b16 %v543
      %v612 = vunpack.c.l.b16 %v544
      %v613 = vunpack.c.l.b16 %v545
      %v614 = vunpack.c.l.b16 %v546
      %v615 = vunpack.c.l.b16 %v547
      %v616 = vunpack.c.l.b16 %v548
      %v617 = vunpack.c.l.b16 %v549
      %v618 = vunpack.c.l.b16 %v550
      %v619 = vunpack.c.l.b16 %v551
      %v620 = vunpack.c.l.b16 %v552
      %v621 = vunpack.c.l.b16 %v553
      %v622 = vunpack.c.l.b16 %v554
      %v623 = vunpack.c.l.b16 %v555
      %v624 = vunpack.c.l.b16 %v556
      %v625 = vunpack.c.l.b16 %v557
      %v626 = vunpack.c.l.b16 %v558
      %v627 = vunpack.c.l.b16 %v559
      %v628 = vpack.c.b16 %v597, %v596
      %v629 = vpack.c.b16 %v599, %v598
      %v630 = vpack.c.b16 %v601, %v600
      %v631 = vpack.c.b16 %v603, %v602
      %v632 = vpack.c.b16 %v605, %v604
      %v633 = vpack.c.b16 %v607, %v606
      %v634 = vpack.c.b16 %v609, %v608
      %v635 = vpack.c.b16 %v611, %v610
      %v636 = vpack.c.b16 %v613, %v612
      %v637 = vpack.c.b16 %v615, %v614
      %v638 = vpack.c.b16 %v617, %v616
      %v639 = vpack.c.b16 %v619, %v618
      %v640 = vpack.c.b16 %v621, %v620
      %v641 = vpack.c.b16 %v623, %v622
      %v642 = vpack.c.b16 %v625, %v624
      %v643 = vpack.c.b16 %v627, %v626
      %v648 = vunpack.c.l.b16 %v560
      %v649 = vunpack.c.l.b16 %v561
      %v650 = vunpack.c.l.b16 %v562
      %v651 = vunpack.c.l.b16 %v563
      %v652 = vpack.c.b16 %v649, %v648
      %v653 = vpack.c.b16 %v651, %v650
      %v657 = vsel %vm516, %v628, 0
      %v660 = vsel %vm516, %v629, 0
      %v663 = vsel %vm516, %v630, 0
      %v666 = vsel %vm516, %v631, 0
      %v669 = vsel %vm516, %v632, 0
      %v672 = vsel %vm516, %v633, 0
      %v675 = vsel %vm516, %v634, 0
      %v678 = vsel %vm516, %v635, 0
      %v681 = vsel %vm516, %v636, 0
      %v684 = vsel %vm516, %v637, 0
      %v687 = vsel %vm516, %v638, 0
      %v690 = vsel %vm516, %v639, 0
      %v693 = vsel %vm516, %v640, 0
      %v696 = vsel %vm516, %v641, 0
      %v699 = vsel %vm516, %v642, 0
      %v702 = vsel %vm516, %v643, 0
      %704 = vmatprep.subr.bf16.mxu0 0
      %705 = vmatpush1.bf16.msra.mxu0 %v652
      %706 = vmatprep.subr.bf16.mxu0 0
      %707 = vmatpush1.bf16.msra.mxu0 %v653
      %708 = vmatprep.subr.bf16.mxu0 0
      %709 = vmatpush1.bf16.msra.mxu0 0
      %710 = vmatprep.subr.bf16.mxu0 0
      %711 = vmatpush1.bf16.msra.mxu0 0
      %712 = vmatprep.subr.bf16.mxu0 0
      %713 = vmatpush1.bf16.msra.mxu0 0
      %714 = vmatprep.subr.bf16.mxu0 0
      %715 = vmatpush1.bf16.msra.mxu0 0
      %716 = vmatprep.subr.bf16.mxu0 0
      %717 = vmatpush1.bf16.msra.mxu0 0
      %718 = vmatprep.subr.bf16.mxu0 0
      %719 = vmatpush1.bf16.msra.mxu0 0
      %720 = vmatprep.subr.bf16.mxu0 0
      %721 = vmatpush1.bf16.msra.mxu0 0
      %722 = vmatprep.subr.bf16.mxu0 0
      %723 = vmatpush1.bf16.msra.mxu0 0
      %724 = vmatprep.subr.bf16.mxu0 0
      %725 = vmatpush1.bf16.msra.mxu0 0
      %726 = vmatprep.subr.bf16.mxu0 0
      %727 = vmatpush1.bf16.msra.mxu0 0
      %728 = vmatprep.subr.bf16.mxu0 0
      %729 = vmatpush1.bf16.msra.mxu0 0
      %730 = vmatprep.subr.bf16.mxu0 0
      %731 = vmatpush1.bf16.msra.mxu0 0
      %732 = vmatprep.subr.bf16.mxu0 0
      %733 = vmatpush1.bf16.msra.mxu0 0
      %734 = vmatprep.subr.bf16.mxu0 0
      %735 = vmatpush1.bf16.msra.mxu0 0
      %736 = vmatprep.mubr.bf16.mxu0 0
      %737 = vmatmul.mubr.bf16.gmra.mrb[0].mxu0 %v657
      %v738 = vpop.f32.mrb[0].mxu0
      %v739 = vadd.f32 0.0, %v738
      %v740 = vpop.f32.mrb[0].mxu0
      %v741 = vpop.f32.mrb[0].mxu0
      %v742 = vadd.f32 0.0, %v741
      %v743 = vpop.f32.mrb[0].mxu0
      %744 = vmatprep.mubr.bf16.mxu0 0
      %745 = vmatmul.mubr.bf16.gmra.mrb[0].mxu0 %v660
      %v746 = vpop.f32.mrb[0].mxu0
      %v747 = vadd.f32 0.0, %v746
      %v748 = vpop.f32.mrb[0].mxu0
      %v749 = vpop.f32.mrb[0].mxu0
      %v750 = vadd.f32 0.0, %v749
      %v751 = vpop.f32.mrb[0].mxu0
      %752 = vmatprep.mubr.bf16.mxu0 0
      %753 = vmatmul.mubr.bf16.gmra.mrb[0].mxu0 %v663
      %v754 = vpop.f32.mrb[0].mxu0
      %v755 = vadd.f32 0.0, %v754
      %v756 = vpop.f32.mrb[0].mxu0
      %v757 = vpop.f32.mrb[0].mxu0
      %v758 = vadd.f32 0.0, %v757
      %v759 = vpop.f32.mrb[0].mxu0
      %760 = vmatprep.mubr.bf16.mxu0 0
      %761 = vmatmul.mubr.bf16.gmra.mrb[0].mxu0 %v666
      %v762 = vpop.f32.mrb[0].mxu0
      %v763 = vadd.f32 0.0, %v762
      %v764 = vpop.f32.mrb[0].mxu0
      %v765 = vpop.f32.mrb[0].mxu0
      %v766 = vadd.f32 0.0, %v765
      %v767 = vpop.f32.mrb[0].mxu0
      %768 = vmatprep.mubr.bf16.mxu0 0
      %769 = vmatmul.mubr.bf16.gmra.mrb[0].mxu0 %v669
      %v770 = vpop.f32.mrb[0].mxu0
      %v771 = vadd.f32 0.0, %v770
      %v772 = vpop.f32.mrb[0].mxu0
      %v773 = vpop.f32.mrb[0].mxu0
      %v774 = vadd.f32 0.0, %v773
      %v775 = vpop.f32.mrb[0].mxu0
      %776 = vmatprep.mubr.bf16.mxu0 0
      %777 = vmatmul.mubr.bf16.gmra.mrb[0].mxu0 %v672
      %v778 = vpop.f32.mrb[0].mxu0
      %v779 = vadd.f32 0.0, %v778
      %v780 = vpop.f32.mrb[0].mxu0
      %v781 = vpop.f32.mrb[0].mxu0
      %v782 = vadd.f32 0.0, %v781
      %v783 = vpop.f32.mrb[0].mxu0
      %784 = vmatprep.mubr.bf16.mxu0 0
      %785 = vmatmul.mubr.bf16.gmra.mrb[0].mxu0 %v675
      %v786 = vpop.f32.mrb[0].mxu0
      %v787 = vadd.f32 0.0, %v786
      %v788 = vpop.f32.mrb[0].mxu0
      %v789 = vpop.f32.mrb[0].mxu0
      %v790 = vadd.f32 0.0, %v789
      %v791 = vpop.f32.mrb[0].mxu0
      %792 = vmatprep.mubr.bf16.mxu0 0
      %793 = vmatmul.mubr.bf16.gmra.mrb[0].mxu0 %v678
      %v794 = vpop.f32.mrb[0].mxu0
      %v795 = vadd.f32 0.0, %v794
      %v796 = vpop.f32.mrb[0].mxu0
      %v797 = vpop.f32.mrb[0].mxu0
      %v798 = vadd.f32 0.0, %v797
      %v799 = vpop.f32.mrb[0].mxu0
      %800 = vmatprep.mubr.bf16.mxu0 0
      %801 = vmatmul.mubr.bf16.gmra.mrb[0].mxu0 %v681
      %v802 = vpop.f32.mrb[0].mxu0
      %v803 = vadd.f32 0.0, %v802
      %v804 = vpop.f32.mrb[0].mxu0
      %v805 = vpop.f32.mrb[0].mxu0
      %v806 = vadd.f32 0.0, %v805
      %v807 = vpop.f32.mrb[0].mxu0
      %808 = vmatprep.mubr.bf16.mxu0 0
      %809 = vmatmul.mubr.bf16.gmra.mrb[0].mxu0 %v684
      %v810 = vpop.f32.mrb[0].mxu0
      %v811 = vadd.f32 0.0, %v810
      %v812 = vpop.f32.mrb[0].mxu0
      %v813 = vpop.f32.mrb[0].mxu0
      %v814 = vadd.f32 0.0, %v813
      %v815 = vpop.f32.mrb[0].mxu0
      %816 = vmatprep.mubr.bf16.mxu0 0
      %817 = vmatmul.mubr.bf16.gmra.mrb[0].mxu0 %v687
      %v818 = vpop.f32.mrb[0].mxu0
      %v819 = vadd.f32 0.0, %v818
      %v820 = vpop.f32.mrb[0].mxu0
      %v821 = vpop.f32.mrb[0].mxu0
      %v822 = vadd.f32 0.0, %v821
      %v823 = vpop.f32.mrb[0].mxu0
      %824 = vmatprep.mubr.bf16.mxu0 0
      %825 = vmatmul.mubr.bf16.gmra.mrb[0].mxu0 %v690
      %v826 = vpop.f32.mrb[0].mxu0
      %v827 = vadd.f32 0.0, %v826
      %v828 = vpop.f32.mrb[0].mxu0
      %v829 = vpop.f32.mrb[0].mxu0
      %v830 = vadd.f32 0.0, %v829
      %v831 = vpop.f32.mrb[0].mxu0
      %832 = vmatprep.mubr.bf16.mxu0 0
      %833 = vmatmul.mubr.bf16.gmra.mrb[0].mxu0 %v693
      %v834 = vpop.f32.mrb[0].mxu0
      %v835 = vadd.f32 0.0, %v834
      %v836 = vpop.f32.mrb[0].mxu0
      %v837 = vpop.f32.mrb[0].mxu0
      %v838 = vadd.f32 0.0, %v837
      %v839 = vpop.f32.mrb[0].mxu0
      %840 = vmatprep.mubr.bf16.mxu0 0
      %841 = vmatmul.mubr.bf16.gmra.mrb[0].mxu0 %v696
      %v842 = vpop.f32.mrb[0].mxu0
      %v843 = vadd.f32 0.0, %v842
      %v844 = vpop.f32.mrb[0].mxu0
      %v845 = vpop.f32.mrb[0].mxu0
      %v846 = vadd.f32 0.0, %v845
      %v847 = vpop.f32.mrb[0].mxu0
      %848 = vmatprep.mubr.bf16.mxu0 0
      %849 = vmatmul.mubr.bf16.gmra.mrb[0].mxu0 %v699
      %v850 = vpop.f32.mrb[0].mxu0
      %v851 = vadd.f32 0.0, %v850
      %v852 = vpop.f32.mrb[0].mxu0
      %v853 = vpop.f32.mrb[0].mxu0
      %v854 = vadd.f32 0.0, %v853
      %v855 = vpop.f32.mrb[0].mxu0
      %856 = vmatprep.mubr.bf16.mxu0 0
      %857 = vmatmul.mubr.bf16.gmra.mrb[0].mxu0 %v702
      %v858 = vpop.f32.mrb[0].mxu0
      %v859 = vadd.f32 0.0, %v858
      %v860 = vpop.f32.mrb[0].mxu0
      %v861 = vpop.f32.mrb[0].mxu0
      %v862 = vadd.f32 0.0, %v861
      %v863 = vpop.f32.mrb[0].mxu0
      %864 = vdwg.mxu0
      %v865 = vld [vmem:[%s2] sm:$0x1]
      %v867 = vlaneseq
      %v868 = vshrl.u32 %v867, 7
      %v869 = vsub.s32 0, %v868
      %v870 = vrot.slane %v865, %v869
      %v872 = vmul.f32 %v739, %v870
      %v873 = vmul.f32 %v742, %v870
      %v874 = vmul.f32 %v747, %v870
      %v875 = vmul.f32 %v750, %v870
      %v876 = vmul.f32 %v755, %v870
      %v877 = vmul.f32 %v758, %v870
      %v878 = vmul.f32 %v763, %v870
      %v879 = vmul.f32 %v766, %v870
      %v880 = vmul.f32 %v771, %v870
      %v881 = vmul.f32 %v774, %v870
      %v882 = vmul.f32 %v779, %v870
      %v883 = vmul.f32 %v782, %v870
      %v884 = vmul.f32 %v787, %v870
      %v885 = vmul.f32 %v790, %v870
      %v886 = vmul.f32 %v795, %v870
      %v887 = vmul.f32 %v798, %v870
      %v888 = vmul.f32 %v803, %v870
      %v889 = vmul.f32 %v806, %v870
      %v890 = vmul.f32 %v811, %v870
      %v891 = vmul.f32 %v814, %v870
      %v892 = vmul.f32 %v819, %v870
      %v893 = vmul.f32 %v822, %v870
      %v894 = vmul.f32 %v827, %v870
      %v895 = vmul.f32 %v830, %v870
      %v896 = vmul.f32 %v835, %v870
      %v897 = vmul.f32 %v838, %v870
      %v898 = vmul.f32 %v843, %v870
      %v899 = vmul.f32 %v846, %v870
      %v900 = vmul.f32 %v851, %v870
      %v901 = vmul.f32 %v854, %v870
      %v902 = vmul.f32 %v859, %v870
      %v903 = vmul.f32 %v862, %v870
      %v904 = vld [vmem:[%s3] sm:$0x1]
      %v906 = vlaneseq
      %v907 = vshrl.u32 %v906, 7
      %v908 = vsub.s32 0, %v907
      %v909 = vrot.slane %v904, %v908
      %v911 = vadd.f32 %v872, %v909
      %v912 = vadd.f32 %v873, %v909
      %v913 = vadd.f32 %v874, %v909
      %v914 = vadd.f32 %v875, %v909
      %v915 = vadd.f32 %v876, %v909
      %v916 = vadd.f32 %v877, %v909
      %v917 = vadd.f32 %v878, %v909
      %v918 = vadd.f32 %v879, %v909
      %v919 = vadd.f32 %v880, %v909
      %v920 = vadd.f32 %v881, %v909
      %v921 = vadd.f32 %v882, %v909
      %v922 = vadd.f32 %v883, %v909
      %v923 = vadd.f32 %v884, %v909
      %v924 = vadd.f32 %v885, %v909
      %v925 = vadd.f32 %v886, %v909
      %v926 = vadd.f32 %v887, %v909
      %v927 = vadd.f32 %v888, %v909
      %v928 = vadd.f32 %v889, %v909
      %v929 = vadd.f32 %v890, %v909
      %v930 = vadd.f32 %v891, %v909
      %v931 = vadd.f32 %v892, %v909
      %v932 = vadd.f32 %v893, %v909
      %v933 = vadd.f32 %v894, %v909
      %v934 = vadd.f32 %v895, %v909
      %v935 = vadd.f32 %v896, %v909
      %v936 = vadd.f32 %v897, %v909
      %v937 = vadd.f32 %v898, %v909
      %v938 = vadd.f32 %v899, %v909
      %v939 = vadd.f32 %v900, %v909
      %v940 = vadd.f32 %v901, %v909
      %v941 = vadd.f32 %v902, %v909
      %v942 = vadd.f32 %v903, %v909
      %v943 = vmax.f32 %v911, 0.0
      %v944 = vmax.f32 %v912, 0.0
      %v945 = vmax.f32 %v913, 0.0
      %v946 = vmax.f32 %v914, 0.0
      %v947 = vmax.f32 %v915, 0.0
      %v948 = vmax.f32 %v916, 0.0
      %v949 = vmax.f32 %v917, 0.0
      %v950 = vmax.f32 %v918, 0.0
      %v951 = vmax.f32 %v919, 0.0
      %v952 = vmax.f32 %v920, 0.0
      %v953 = vmax.f32 %v921, 0.0
      %v954 = vmax.f32 %v922, 0.0
      %v955 = vmax.f32 %v923, 0.0
      %v956 = vmax.f32 %v924, 0.0
      %v957 = vmax.f32 %v925, 0.0
      %v958 = vmax.f32 %v926, 0.0
      %v959 = vmax.f32 %v927, 0.0
      %v960 = vmax.f32 %v928, 0.0
      %v961 = vmax.f32 %v929, 0.0
      %v962 = vmax.f32 %v930, 0.0
      %v963 = vmax.f32 %v931, 0.0
      %v964 = vmax.f32 %v932, 0.0
      %v965 = vmax.f32 %v933, 0.0
      %v966 = vmax.f32 %v934, 0.0
      %v967 = vmax.f32 %v935, 0.0
      %v968 = vmax.f32 %v936, 0.0
      %v969 = vmax.f32 %v937, 0.0
      %v970 = vmax.f32 %v938, 0.0
      %v971 = vmax.f32 %v939, 0.0
      %v972 = vmax.f32 %v940, 0.0
      %v973 = vmax.f32 %v941, 0.0
      %v974 = vmax.f32 %v942, 0.0
      %975 = vst.msk [vmem:[#allocation5] sm:$0xff] %vm494, %v943
      %976 = vst.msk [vmem:[#allocation5 + $0x8] sm:$0xff] %vm494, %v944
      %977 = vst.msk [vmem:[#allocation5 + $0x10] sm:$0xff] %vm494, %v945
      %978 = vst.msk [vmem:[#allocation5 + $0x18] sm:$0xff] %vm494, %v946
      %979 = vst.msk [vmem:[#allocation5 + $0x20] sm:$0xff] %vm494, %v947
      %980 = vst.msk [vmem:[#allocation5 + $0x28] sm:$0xff] %vm494, %v948
      %981 = vst.msk [vmem:[#allocation5 + $0x30] sm:$0xff] %vm494, %v949
      %982 = vst.msk [vmem:[#allocation5 + $0x38] sm:$0xff] %vm494, %v950
      %983 = vst.msk [vmem:[#allocation5 + $0x40] sm:$0xff] %vm494, %v951
      %984 = vst.msk [vmem:[#allocation5 + $0x48] sm:$0xff] %vm494, %v952
      %985 = vst.msk [vmem:[#allocation5 + $0x50] sm:$0xff] %vm494, %v953
      %986 = vst.msk [vmem:[#allocation5 + $0x58] sm:$0xff] %vm494, %v954
      %987 = vst.msk [vmem:[#allocation5 + $0x60] sm:$0xff] %vm494, %v955
      %988 = vst.msk [vmem:[#allocation5 + $0x68] sm:$0xff] %vm494, %v956
      %989 = vst.msk [vmem:[#allocation5 + $0x70] sm:$0xff] %vm494, %v957
      %990 = vst.msk [vmem:[#allocation5 + $0x78] sm:$0xff] %vm494, %v958
      %991 = vst.msk [vmem:[#allocation5 + $0x80] sm:$0xff] %vm494, %v959
      %992 = vst.msk [vmem:[#allocation5 + $0x88] sm:$0xff] %vm494, %v960
      %993 = vst.msk [vmem:[#allocation5 + $0x90] sm:$0xff] %vm494, %v961
      %994 = vst.msk [vmem:[#allocation5 + $0x98] sm:$0xff] %vm494, %v962
      %995 = vst.msk [vmem:[#allocation5 + $0xa0] sm:$0xff] %vm494, %v963
      %996 = vst.msk [vmem:[#allocation5 + $0xa8] sm:$0xff] %vm494, %v964
      %997 = vst.msk [vmem:[#allocation5 + $0xb0] sm:$0xff] %vm494, %v965
      %998 = vst.msk [vmem:[#allocation5 + $0xb8] sm:$0xff] %vm494, %v966
      %999 = vst.msk [vmem:[#allocation5 + $0xc0] sm:$0xff] %vm494, %v967
      %1000 = vst.msk [vmem:[#allocation5 + $0xc8] sm:$0xff] %vm494, %v968
      %1001 = vst.msk [vmem:[#allocation5 + $0xd0] sm:$0xff] %vm494, %v969
      %1002 = vst.msk [vmem:[#allocation5 + $0xd8] sm:$0xff] %vm494, %v970
      %1003 = vst.msk [vmem:[#allocation5 + $0xe0] sm:$0xff] %vm494, %v971
      %1004 = vst.msk [vmem:[#allocation5 + $0xe8] sm:$0xff] %vm494, %v972
      %1005 = vst.msk [vmem:[#allocation5 + $0xf0] sm:$0xff] %vm494, %v973
      %1006 = vst.msk [vmem:[#allocation5 + $0xf8] sm:$0xff] %vm494, %v974
      %v1007 = vld [vmem:[#allocation5] sm:$0xff]
      %v1008 = vld [vmem:[#allocation5 + $0x8] sm:$0xff]
      %v1009 = vld [vmem:[#allocation5 + $0x10] sm:$0xff]
      %v1010 = vld [vmem:[#allocation5 + $0x18] sm:$0xff]
      %v1011 = vld [vmem:[#allocation5 + $0x20] sm:$0xff]
      %v1012 = vld [vmem:[#allocation5 + $0x28] sm:$0xff]
      %v1013 = vld [vmem:[#allocation5 + $0x30] sm:$0xff]
      %v1014 = vld [vmem:[#allocation5 + $0x38] sm:$0xff]
      %v1015 = vld [vmem:[#allocation5 + $0x40] sm:$0xff]
      %v1016 = vld [vmem:[#allocation5 + $0x48] sm:$0xff]
      %v1017 = vld [vmem:[#allocation5 + $0x50] sm:$0xff]
      %v1018 = vld [vmem:[#allocation5 + $0x58] sm:$0xff]
      %v1019 = vld [vmem:[#allocation5 + $0x60] sm:$0xff]
      %v1020 = vld [vmem:[#allocation5 + $0x68] sm:$0xff]
      %v1021 = vld [vmem:[#allocation5 + $0x70] sm:$0xff]
      %v1022 = vld [vmem:[#allocation5 + $0x78] sm:$0xff]
      %v1023 = vld [vmem:[#allocation5 + $0x80] sm:$0xff]
      %v1024 = vld [vmem:[#allocation5 + $0x88] sm:$0xff]
      %v1025 = vld [vmem:[#allocation5 + $0x90] sm:$0xff]
      %v1026 = vld [vmem:[#allocation5 + $0x98] sm:$0xff]
      %v1027 = vld [vmem:[#allocation5 + $0xa0] sm:$0xff]
      %v1028 = vld [vmem:[#allocation5 + $0xa8] sm:$0xff]
      %v1029 = vld [vmem:[#allocation5 + $0xb0] sm:$0xff]
      %v1030 = vld [vmem:[#allocation5 + $0xb8] sm:$0xff]
      %v1031 = vld [vmem:[#allocation5 + $0xc0] sm:$0xff]
      %v1032 = vld [vmem:[#allocation5 + $0xc8] sm:$0xff]
      %v1033 = vld [vmem:[#allocation5 + $0xd0] sm:$0xff]
      %v1034 = vld [vmem:[#allocation5 + $0xd8] sm:$0xff]
      %v1035 = vld [vmem:[#allocation5 + $0xe0] sm:$0xff]
      %v1036 = vld [vmem:[#allocation5 + $0xe8] sm:$0x7f]
      %v1037 = vld [vmem:[#allocation5 + $0x1] sm:$0xff]
      %v1038 = vld [vmem:[#allocation5 + $0x9] sm:$0xff]
      %v1039 = vld [vmem:[#allocation5 + $0x11] sm:$0xff]
      %v1040 = vld [vmem:[#allocation5 + $0x19] sm:$0xff]
      %v1041 = vld [vmem:[#allocation5 + $0x21] sm:$0xff]
      %v1042 = vld [vmem:[#allocation5 + $0x29] sm:$0xff]
      %v1043 = vld [vmem:[#allocation5 + $0x31] sm:$0xff]
      %v1044 = vld [vmem:[#allocation5 + $0x39] sm:$0xff]
      %v1045 = vld [vmem:[#allocation5 + $0x41] sm:$0xff]
      %v1046 = vld [vmem:[#allocation5 + $0x49] sm:$0xff]
      %v1047 = vld [vmem:[#allocation5 + $0x51] sm:$0xff]
      %v1048 = vld [vmem:[#allocation5 + $0x59] sm:$0xff]
      %v1049 = vld [vmem:[#allocation5 + $0x61] sm:$0xff]
      %v1050 = vld [vmem:[#allocation5 + $0x69] sm:$0xff]
      %v1051 = vld [vmem:[#allocation5 + $0x71] sm:$0xff]
      %v1052 = vld [vmem:[#allocation5 + $0x79] sm:$0xff]
      %v1053 = vld [vmem:[#allocation5 + $0x81] sm:$0xff]
      %v1054 = vld [vmem:[#allocation5 + $0x89] sm:$0xff]
      %v1055 = vld [vmem:[#allocation5 + $0x91] sm:$0xff]
      %v1056 = vld [vmem:[#allocation5 + $0x99] sm:$0xff]
      %v1057 = vld [vmem:[#allocation5 + $0xa1] sm:$0xff]
      %v1058 = vld [vmem:[#allocation5 + $0xa9] sm:$0xff]
      %v1059 = vld [vmem:[#allocation5 + $0xb1] sm:$0xff]
      %v1060 = vld [vmem:[#allocation5 + $0xb9] sm:$0xff]
      %v1061 = vld [vmem:[#allocation5 + $0xc1] sm:$0xff]
      %v1062 = vld [vmem:[#allocation5 + $0xc9] sm:$0xff]
      %v1063 = vld [vmem:[#allocation5 + $0xd1] sm:$0xff]
      %v1064 = vld [vmem:[#allocation5 + $0xd9] sm:$0xff]
      %v1065 = vld [vmem:[#allocation5 + $0xe1] sm:$0xff]
      %v1066 = vld [vmem:[#allocation5 + $0xe9] sm:$0x7f]
      %v1067 = vmax.f32 %v1007, %v1037
      %v1068 = vmax.f32 %v1008, %v1038
      %v1069 = vmax.f32 %v1009, %v1039
      %v1070 = vmax.f32 %v1010, %v1040
      %v1071 = vmax.f32 %v1011, %v1041
      %v1072 = vmax.f32 %v1012, %v1042
      %v1073 = vmax.f32 %v1013, %v1043
      %v1074 = vmax.f32 %v1014, %v1044
      %v1075 = vmax.f32 %v1015, %v1045
      %v1076 = vmax.f32 %v1016, %v1046
      %v1077 = vmax.f32 %v1017, %v1047
      %v1078 = vmax.f32 %v1018, %v1048
      %v1079 = vmax.f32 %v1019, %v1049
      %v1080 = vmax.f32 %v1020, %v1050
      %v1081 = vmax.f32 %v1021, %v1051
      %v1082 = vmax.f32 %v1022, %v1052
      %v1083 = vmax.f32 %v1023, %v1053
      %v1084 = vmax.f32 %v1024, %v1054
      %v1085 = vmax.f32 %v1025, %v1055
      %v1086 = vmax.f32 %v1026, %v1056
      %v1087 = vmax.f32 %v1027, %v1057
      %v1088 = vmax.f32 %v1028, %v1058
      %v1089 = vmax.f32 %v1029, %v1059
      %v1090 = vmax.f32 %v1030, %v1060
      %v1091 = vmax.f32 %v1031, %v1061
      %v1092 = vmax.f32 %v1032, %v1062
      %v1093 = vmax.f32 %v1033, %v1063
      %v1094 = vmax.f32 %v1034, %v1064
      %v1095 = vmax.f32 %v1035, %v1065
      %v1096 = vmax.f32 %v1036, %v1066
      %v1097 = vld [vmem:[#allocation5 + $0xe8] sm:$0xff]
      %v1098 = vld [vmem:[#allocation5 + $0xf0] sm:$0xff]
      %v1099 = vld [vmem:[#allocation5 + $0xf8] sm:$0x7f]
      %v1100 = vld [vmem:[#allocation5 + $0xe9] sm:$0xff]
      %v1101 = vld [vmem:[#allocation5 + $0xf1] sm:$0xff]
      %v1102 = vld [vmem:[#allocation5 + $0xf9] sm:$0x7f]
      %v1103 = vmax.f32 %v1097, %v1100
      %v1104 = vmax.f32 %v1098, %v1101
      %v1105 = vmax.f32 %v1099, %v1102
      %v1106 = vmax.f32 %v1067, %v1069
      %v1107 = vmax.f32 %v1068, %v1070
      %v1108 = vmax.f32 %v1069, %v1071
      %v1109 = vmax.f32 %v1070, %v1072
      %v1110 = vmax.f32 %v1071, %v1073
      %v1111 = vmax.f32 %v1072, %v1074
      %v1112 = vmax.f32 %v1073, %v1075
      %v1113 = vmax.f32 %v1074, %v1076
      %v1114 = vmax.f32 %v1075, %v1077
      %v1115 = vmax.f32 %v1076, %v1078
      %v1116 = vmax.f32 %v1077, %v1079
      %v1117 = vmax.f32 %v1078, %v1080
      %v1118 = vmax.f32 %v1079, %v1081
      %v1119 = vmax.f32 %v1080, %v1082
      %v1120 = vmax.f32 %v1081, %v1083
      %v1121 = vmax.f32 %v1082, %v1084
      %v1122 = vmax.f32 %v1083, %v1085
      %v1123 = vmax.f32 %v1084, %v1086
      %v1124 = vmax.f32 %v1085, %v1087
      %v1125 = vmax.f32 %v1086, %v1088
      %v1126 = vmax.f32 %v1087, %v1089
      %v1127 = vmax.f32 %v1088, %v1090
      %v1128 = vmax.f32 %v1089, %v1091
      %v1129 = vmax.f32 %v1090, %v1092
      %v1130 = vmax.f32 %v1091, %v1093
      %v1131 = vmax.f32 %v1092, %v1094
      %v1132 = vmax.f32 %v1093, %v1095
      %v1133 = vmax.f32 %v1094, %v1103
      %v1134 = vmax.f32 %v1095, %v1104
      %v1135 = vmax.f32 %v1096, %v1105
      %1136 = vst.msk [vmem:[#allocation5] sm:$0xff] %vm494, %v1106
      %1137 = vst.msk [vmem:[#allocation5 + $0x8] sm:$0xff] %vm494, %v1107
      %1138 = vst.msk [vmem:[#allocation5 + $0x10] sm:$0xff] %vm494, %v1108
      %1139 = vst.msk [vmem:[#allocation5 + $0x18] sm:$0xff] %vm494, %v1109
      %1140 = vst.msk [vmem:[#allocation5 + $0x20] sm:$0xff] %vm494, %v1110
      %1141 = vst.msk [vmem:[#allocation5 + $0x28] sm:$0xff] %vm494, %v1111
      %1142 = vst.msk [vmem:[#allocation5 + $0x30] sm:$0xff] %vm494, %v1112
      %1143 = vst.msk [vmem:[#allocation5 + $0x38] sm:$0xff] %vm494, %v1113
      %1144 = vst.msk [vmem:[#allocation5 + $0x40] sm:$0xff] %vm494, %v1114
      %1145 = vst.msk [vmem:[#allocation5 + $0x48] sm:$0xff] %vm494, %v1115
      %1146 = vst.msk [vmem:[#allocation5 + $0x50] sm:$0xff] %vm494, %v1116
      %1147 = vst.msk [vmem:[#allocation5 + $0x58] sm:$0xff] %vm494, %v1117
      %1148 = vst.msk [vmem:[#allocation5 + $0x60] sm:$0xff] %vm494, %v1118
      %1149 = vst.msk [vmem:[#allocation5 + $0x68] sm:$0xff] %vm494, %v1119
      %1150 = vst.msk [vmem:[#allocation5 + $0x70] sm:$0xff] %vm494, %v1120
      %1151 = vst.msk [vmem:[#allocation5 + $0x78] sm:$0xff] %vm494, %v1121
      %1152 = vst.msk [vmem:[#allocation5 + $0x80] sm:$0xff] %vm494, %v1122
      %1153 = vst.msk [vmem:[#allocation5 + $0x88] sm:$0xff] %vm494, %v1123
      %1154 = vst.msk [vmem:[#allocation5 + $0x90] sm:$0xff] %vm494, %v1124
      %1155 = vst.msk [vmem:[#allocation5 + $0x98] sm:$0xff] %vm494, %v1125
      %1156 = vst.msk [vmem:[#allocation5 + $0xa0] sm:$0xff] %vm494, %v1126
      %1157 = vst.msk [vmem:[#allocation5 + $0xa8] sm:$0xff] %vm494, %v1127
      %1158 = vst.msk [vmem:[#allocation5 + $0xb0] sm:$0xff] %vm494, %v1128
      %1159 = vst.msk [vmem:[#allocation5 + $0xb8] sm:$0xff] %vm494, %v1129
      %1160 = vst.msk [vmem:[#allocation5 + $0xc0] sm:$0xff] %vm494, %v1130
      %1161 = vst.msk [vmem:[#allocation5 + $0xc8] sm:$0xff] %vm494, %v1131
      %1162 = vst.msk [vmem:[#allocation5 + $0xd0] sm:$0xff] %vm494, %v1132
      %1163 = vst.msk [vmem:[#allocation5 + $0xd8] sm:$0xff] %vm494, %v1133
      %1164 = vst.msk [vmem:[#allocation5 + $0xe0] sm:$0xff] %vm494, %v1134
      %vm1165 = vcmask 129024
      %1166 = vst.msk [vmem:[#allocation5 + $0xe8] sm:$0x7f] %vm1165, %v1135
      %v1167 = vld [vmem:[#allocation5] ss:$2 sm:$0xff]
      %1168 = vst.msk [vmem:[#allocation2 + $0xb] sm:$0xff] %vm494, %v1167
      %s1169 = scalar_lea.vmem [#allocation5], 32
      %v1170 = vld [vmem:[%s1169] ss:$2 sm:$0xff]
      %1171 = vst.msk [vmem:[#allocation2 + $0x15] sm:$0xff] %vm494, %v1170
      %s1172 = scalar_lea.vmem [#allocation5], 64
      %v1173 = vld [vmem:[%s1172] ss:$2 sm:$0xff]
      %1174 = vst.msk [vmem:[#allocation2 + $0x1f] sm:$0xff] %vm494, %v1173
      %s1175 = scalar_lea.vmem [#allocation5], 96
      %v1176 = vld [vmem:[%s1175] ss:$2 sm:$0xff]
      %1177 = vst.msk [vmem:[#allocation2 + $0x29] sm:$0xff] %vm494, %v1176
      %s1178 = scalar_lea.vmem [#allocation5], 128
      %v1179 = vld [vmem:[%s1178] ss:$2 sm:$0xff]
      %1180 = vst.msk [vmem:[#allocation2 + $0x33] sm:$0xff] %vm494, %v1179
      %s1181 = scalar_lea.vmem [#allocation5], 160
      %v1182 = vld [vmem:[%s1181] ss:$2 sm:$0xff]
      %1183 = vst.msk [vmem:[#allocation2 + $0x3d] sm:$0xff] %vm494, %v1182
      %s1184 = scalar_lea.vmem [#allocation5], 192
      %v1185 = vld [vmem:[%s1184] ss:$2 sm:$0xff]
      %1186 = vst.msk [vmem:[#allocation2 + $0x47] sm:$0xff] %vm494, %v1185
      %s1187 = scalar_lea.vmem [#allocation5], 224
      %v1188 = vld [vmem:[%s1187] ss:$2 sm:$0xff]
      %1189 = vst.msk [vmem:[#allocation2 + $0x51] sm:$0xff] %vm494, %v1188
      %v1190 = vld [vmem:[#allocation2] sm:$0xff]
      %v1191 = vld [vmem:[#allocation2 + $0x8] sm:$0xff]
      %v1192 = vld [vmem:[#allocation2 + $0x10] sm:$0xff]
      %v1193 = vld [vmem:[#allocation2 + $0x18] sm:$0xff]
      %v1194 = vld [vmem:[#allocation2 + $0x20] sm:$0xff]
      %v1195 = vld [vmem:[#allocation2 + $0x28] sm:$0xff]
      %v1196 = vld [vmem:[#allocation2 + $0x30] sm:$0xff]
      %v1197 = vld [vmem:[#allocation2 + $0x38] sm:$0xff]
      %v1198 = vld [vmem:[#allocation2 + $0x40] sm:$0xff]
      %v1199 = vld [vmem:[#allocation2 + $0x48] sm:$0xff]
      %v1200 = vpack.c.bf16 %v1191, %v1190
      %v1201 = vpack.c.bf16 %v1193, %v1192
      %v1202 = vpack.c.bf16 %v1195, %v1194
      %v1203 = vpack.c.bf16 %v1197, %v1196
      %v1204 = vpack.c.bf16 %v1199, %v1198
      %v1205 = vld [vmem:[%s4] sm:$0xf]
      %v1206 = vld [vmem:[%s4 + $0x4] sm:$0xf]
      %v1207 = vld [vmem:[#allocation2 + $0x1] sm:$0xff]
      %v1208 = vld [vmem:[#allocation2 + $0x9] sm:$0xff]
      %v1209 = vld [vmem:[#allocation2 + $0x11] sm:$0xff]
      %v1210 = vld [vmem:[#allocation2 + $0x19] sm:$0xff]
      %v1211 = vld [vmem:[#allocation2 + $0x21] sm:$0xff]
      %v1212 = vld [vmem:[#allocation2 + $0x29] sm:$0xff]
      %v1213 = vld [vmem:[#allocation2 + $0x31] sm:$0xff]
      %v1214 = vld [vmem:[#allocation2 + $0x39] sm:$0xff]
      %v1215 = vld [vmem:[#allocation2 + $0x41] sm:$0xff]
      %v1216 = vld [vmem:[#allocation2 + $0x49] sm:$0xff]
      %v1217 = vpack.c.bf16 %v1208, %v1207
      %v1218 = vpack.c.bf16 %v1210, %v1209
      %v1219 = vpack.c.bf16 %v1212, %v1211
      %v1220 = vpack.c.bf16 %v1214, %v1213
      %v1221 = vpack.c.bf16 %v1216, %v1215
      %v1222 = vld [vmem:[%s4 + $0x8] sm:$0xf]
      %v1223 = vld [vmem:[%s4 + $0xc] sm:$0xf]
      %v1226 = vunpack.c.l.b16 %v1222
      %v1227 = vunpack.c.l.b16 %v1223
      %v1228 = vpack.c.b16 %v1227, %v1226
      %v1231 = vsel %vm494, %v1217, 0
      %v1234 = vsel %vm494, %v1218, 0
      %v1237 = vsel %vm494, %v1219, 0
      %v1240 = vsel %vm494, %v1220, 0
      %v1243 = vsel %vm494, %v1221, 0
      %1245 = vmatprep.subr.bf16.mxu0 0
      %1246 = vmatpush1.bf16.msra.mxu0 %v1228
      %1247 = vmatprep.subr.bf16.mxu0 0
      %1248 = vmatpush1.bf16.msra.mxu0 0
      %1249 = vmatprep.subr.bf16.mxu0 0
      %1250 = vmatpush1.bf16.msra.mxu0 0
      %1251 = vmatprep.subr.bf16.mxu0 0
      %1252 = vmatpush1.bf16.msra.mxu0 0
      %1253 = vmatprep.subr.bf16.mxu0 0
      %1254 = vmatpush1.bf16.msra.mxu0 0
      %1255 = vmatprep.subr.bf16.mxu0 0
      %1256 = vmatpush1.bf16.msra.mxu0 0
      %1257 = vmatprep.subr.bf16.mxu0 0
      %1258 = vmatpush1.bf16.msra.mxu0 0
      %1259 = vmatprep.subr.bf16.mxu0 0
      %1260 = vmatpush1.bf16.msra.mxu0 0
      %1261 = vmatprep.subr.bf16.mxu0 0
      %1262 = vmatpush1.bf16.msra.mxu0 0
      %1263 = vmatprep.subr.bf16.mxu0 0
      %1264 = vmatpush1.bf16.msra.mxu0 0
      %1265 = vmatprep.subr.bf16.mxu0 0
      %1266 = vmatpush1.bf16.msra.mxu0 0
      %1267 = vmatprep.subr.bf16.mxu0 0
      %1268 = vmatpush1.bf16.msra.mxu0 0
      %1269 = vmatprep.subr.bf16.mxu0 0
      %1270 = vmatpush1.bf16.msra.mxu0 0
      %1271 = vmatprep.subr.bf16.mxu0 0
      %1272 = vmatpush1.bf16.msra.mxu0 0
      %1273 = vmatprep.subr.bf16.mxu0 0
      %1274 = vmatpush1.bf16.msra.mxu0 0
      %1275 = vmatprep.subr.bf16.mxu0 0
      %1276 = vmatpush1.bf16.msra.mxu0 0
      %1277 = vmatprep.mubr.bf16.mxu0 0
      %1278 = vmatmul.mubr.bf16.gmra.mrb[0].mxu0 %v1231
      %v1279 = vpop.f32.mrb[0].mxu0
      %v1280 = vadd.f32 0.0, %v1279
      %v1281 = vpop.f32.mrb[0].mxu0
      %v1282 = vpop.f32.mrb[0].mxu0
      %v1283 = vadd.f32 0.0, %v1282
      %v1284 = vpop.f32.mrb[0].mxu0
      %1285 = vmatprep.mubr.bf16.mxu0 0
      %1286 = vmatmul.mubr.bf16.gmra.mrb[0].mxu0 %v1234
      %v1287 = vpop.f32.mrb[0].mxu0
      %v1288 = vadd.f32 0.0, %v1287
      %v1289 = vpop.f32.mrb[0].mxu0
      %v1290 = vpop.f32.mrb[0].mxu0
      %v1291 = vadd.f32 0.0, %v1290
      %v1292 = vpop.f32.mrb[0].mxu0
      %1293 = vmatprep.mubr.bf16.mxu0 0
      %1294 = vmatmul.mubr.bf16.gmra.mrb[0].mxu0 %v1237
      %v1295 = vpop.f32.mrb[0].mxu0
      %v1296 = vadd.f32 0.0, %v1295
      %v1297 = vpop.f32.mrb[0].mxu0
      %v1298 = vpop.f32.mrb[0].mxu0
      %v1299 = vadd.f32 0.0, %v1298
      %v1300 = vpop.f32.mrb[0].mxu0
      %1301 = vmatprep.mubr.bf16.mxu0 0
      %1302 = vmatmul.mubr.bf16.gmra.mrb[0].mxu0 %v1240
      %v1303 = vpop.f32.mrb[0].mxu0
      %v1304 = vadd.f32 0.0, %v1303
      %v1305 = vpop.f32.mrb[0].mxu0
      %v1306 = vpop.f32.mrb[0].mxu0
      %v1307 = vadd.f32 0.0, %v1306
      %v1308 = vpop.f32.mrb[0].mxu0
      %1309 = vmatprep.mubr.bf16.mxu0 0
      %1310 = vmatmul.mubr.bf16.gmra.mrb[0].mxu0 %v1243
      %v1311 = vpop.f32.mrb[0].mxu0
      %v1312 = vadd.f32 0.0, %v1311
      %v1313 = vpop.f32.mrb[0].mxu0
      %v1314 = vpop.f32.mrb[0].mxu0
      %v1315 = vadd.f32 0.0, %v1314
      %v1316 = vpop.f32.mrb[0].mxu0
      %1317 = vdwg.mxu0
      %v1320 = vunpack.c.l.b16 %v1205
      %v1321 = vunpack.c.l.b16 %v1206
      %v1322 = vpack.c.b16 %v1321, %v1320
      %v1325 = vsel %vm494, %v1200, 0
      %v1328 = vsel %vm494, %v1201, 0
      %v1331 = vsel %vm494, %v1202, 0
      %v1334 = vsel %vm494, %v1203, 0
      %v1337 = vsel %vm494, %v1204, 0
      %1339 = vmatprep.subr.bf16.mxu0 0
      %1340 = vmatpush1.bf16.msra.mxu0 %v1322
      %1341 = vmatprep.subr.bf16.mxu0 0
      %1342 = vmatpush1.bf16.msra.mxu0 0
      %1343 = vmatprep.subr.bf16.mxu0 0
      %1344 = vmatpush1.bf16.msra.mxu0 0
      %1345 = vmatprep.subr.bf16.mxu0 0
      %1346 = vmatpush1.bf16.msra.mxu0 0
      %1347 = vmatprep.subr.bf16.mxu0 0
      %1348 = vmatpush1.bf16.msra.mxu0 0
      %1349 = vmatprep.subr.bf16.mxu0 0
      %1350 = vmatpush1.bf16.msra.mxu0 0
      %1351 = vmatprep.subr.bf16.mxu0 0
      %1352 = vmatpush1.bf16.msra.mxu0 0
      %1353 = vmatprep.subr.bf16.mxu0 0
      %1354 = vmatpush1.bf16.msra.mxu0 0
      %1355 = vmatprep.subr.bf16.mxu0 0
      %1356 = vmatpush1.bf16.msra.mxu0 0
      %1357 = vmatprep.subr.bf16.mxu0 0
      %1358 = vmatpush1.bf16.msra.mxu0 0
      %1359 = vmatprep.subr.bf16.mxu0 0
      %1360 = vmatpush1.bf16.msra.mxu0 0
      %1361 = vmatprep.subr.bf16.mxu0 0
      %1362 = vmatpush1.bf16.msra.mxu0 0
      %1363 = vmatprep.subr.bf16.mxu0 0
      %1364 = vmatpush1.bf16.msra.mxu0 0
      %1365 = vmatprep.subr.bf16.mxu0 0
      %1366 = vmatpush1.bf16.msra.mxu0 0
      %1367 = vmatprep.subr.bf16.mxu0 0
      %1368 = vmatpush1.bf16.msra.mxu0 0
      %1369 = vmatprep.subr.bf16.mxu0 0
      %1370 = vmatpush1.bf16.msra.mxu0 0
      %1371 = vmatprep.mubr.bf16.mxu0 0
      %1372 = vmatmul.mubr.bf16.gmra.mrb[0].mxu0 %v1325
      %v1373 = vpop.f32.mrb[0].mxu0
      %v1374 = vadd.f32 %v1280, %v1373
      %v1375 = vpop.f32.mrb[0].mxu0
      %v1376 = vpop.f32.mrb[0].mxu0
      %v1377 = vadd.f32 %v1283, %v1376
      %v1378 = vpop.f32.mrb[0].mxu0
      %1379 = vmatprep.mubr.bf16.mxu0 0
      %1380 = vmatmul.mubr.bf16.gmra.mrb[0].mxu0 %v1328
      %v1381 = vpop.f32.mrb[0].mxu0
      %v1382 = vadd.f32 %v1288, %v1381
      %v1383 = vpop.f32.mrb[0].mxu0
      %v1384 = vpop.f32.mrb[0].mxu0
      %v1385 = vadd.f32 %v1291, %v1384
      %v1386 = vpop.f32.mrb[0].mxu0
      %1387 = vmatprep.mubr.bf16.mxu0 0
      %1388 = vmatmul.mubr.bf16.gmra.mrb[0].mxu0 %v1331
      %v1389 = vpop.f32.mrb[0].mxu0
      %v1390 = vadd.f32 %v1296, %v1389
      %v1391 = vpop.f32.mrb[0].mxu0
      %v1392 = vpop.f32.mrb[0].mxu0
      %v1393 = vadd.f32 %v1299, %v1392
      %v1394 = vpop.f32.mrb[0].mxu0
      %1395 = vmatprep.mubr.bf16.mxu0 0
      %1396 = vmatmul.mubr.bf16.gmra.mrb[0].mxu0 %v1334
      %v1397 = vpop.f32.mrb[0].mxu0
      %v1398 = vadd.f32 %v1304, %v1397
      %v1399 = vpop.f32.mrb[0].mxu0
      %v1400 = vpop.f32.mrb[0].mxu0
      %v1401 = vadd.f32 %v1307, %v1400
      %v1402 = vpop.f32.mrb[0].mxu0
      %1403 = vmatprep.mubr.bf16.mxu0 0
      %1404 = vmatmul.mubr.bf16.gmra.mrb[0].mxu0 %v1337
      %v1405 = vpop.f32.mrb[0].mxu0
      %v1406 = vadd.f32 %v1312, %v1405
      %v1407 = vpop.f32.mrb[0].mxu0
      %v1408 = vpop.f32.mrb[0].mxu0
      %v1409 = vadd.f32 %v1315, %v1408
      %v1410 = vpop.f32.mrb[0].mxu0
      %1411 = vdwg.mxu0
      %v1412 = vld [vmem:[#allocation2 + $0x2] sm:$0xff]
      %v1413 = vld [vmem:[#allocation2 + $0xa] sm:$0xff]
      %v1414 = vld [vmem:[#allocation2 + $0x12] sm:$0xff]
      %v1415 = vld [vmem:[#allocation2 + $0x1a] sm:$0xff]
      %v1416 = vld [vmem:[#allocation2 + $0x22] sm:$0xff]
      %v1417 = vld [vmem:[#allocation2 + $0x2a] sm:$0xff]
      %v1418 = vld [vmem:[#allocation2 + $0x32] sm:$0xff]
      %v1419 = vld [vmem:[#allocation2 + $0x3a] sm:$0xff]
      %v1420 = vld [vmem:[#allocation2 + $0x42] sm:$0xff]
      %v1421 = vld [vmem:[#allocation2 + $0x4a] sm:$0xff]
      %v1422 = vpack.c.bf16 %v1413, %v1412
      %v1423 = vpack.c.bf16 %v1415, %v1414
      %v1424 = vpack.c.bf16 %v1417, %v1416
      %v1425 = vpack.c.bf16 %v1419, %v1418
      %v1426 = vpack.c.bf16 %v1421, %v1420
      %v1427 = vld [vmem:[%s4 + $0x10] sm:$0xf]
      %v1428 = vld [vmem:[%s4 + $0x14] sm:$0xf]
      %v1431 = vunpack.c.l.b16 %v1427
      %v1432 = vunpack.c.l.b16 %v1428
      %v1433 = vpack.c.b16 %v1432, %v1431
      %v1436 = vsel %vm494, %v1422, 0
      %v1439 = vsel %vm494, %v1423, 0
      %v1442 = vsel %vm494, %v1424, 0
      %v1445 = vsel %vm494, %v1425, 0
      %v1448 = vsel %vm494, %v1426, 0
      %1450 = vmatprep.subr.bf16.mxu0 0
      %1451 = vmatpush1.bf16.msra.mxu0 %v1433
      %1452 = vmatprep.subr.bf16.mxu0 0
      %1453 = vmatpush1.bf16.msra.mxu0 0
      %1454 = vmatprep.subr.bf16.mxu0 0
      %1455 = vmatpush1.bf16.msra.mxu0 0
      %1456 = vmatprep.subr.bf16.mxu0 0
      %1457 = vmatpush1.bf16.msra.mxu0 0
      %1458 = vmatprep.subr.bf16.mxu0 0
      %1459 = vmatpush1.bf16.msra.mxu0 0
      %1460 = vmatprep.subr.bf16.mxu0 0
      %1461 = vmatpush1.bf16.msra.mxu0 0
      %1462 = vmatprep.subr.bf16.mxu0 0
      %1463 = vmatpush1.bf16.msra.mxu0 0
      %1464 = vmatprep.subr.bf16.mxu0 0
      %1465 = vmatpush1.bf16.msra.mxu0 0
      %1466 = vmatprep.subr.bf16.mxu0 0
      %1467 = vmatpush1.bf16.msra.mxu0 0
      %1468 = vmatprep.subr.bf16.mxu0 0
      %1469 = vmatpush1.bf16.msra.mxu0 0
      %1470 = vmatprep.subr.bf16.mxu0 0
      %1471 = vmatpush1.bf16.msra.mxu0 0
      %1472 = vmatprep.subr.bf16.mxu0 0
      %1473 = vmatpush1.bf16.msra.mxu0 0
      %1474 = vmatprep.subr.bf16.mxu0 0
      %1475 = vmatpush1.bf16.msra.mxu0 0
      %1476 = vmatprep.subr.bf16.mxu0 0
      %1477 = vmatpush1.bf16.msra.mxu0 0
      %1478 = vmatprep.subr.bf16.mxu0 0
      %1479 = vmatpush1.bf16.msra.mxu0 0
      %1480 = vmatprep.subr.bf16.mxu0 0
      %1481 = vmatpush1.bf16.msra.mxu0 0
      %1482 = vmatprep.mubr.bf16.mxu0 0
      %1483 = vmatmul.mubr.bf16.gmra.mrb[0].mxu0 %v1436
      %v1484 = vpop.f32.mrb[0].mxu0
      %v1485 = vadd.f32 0.0, %v1484
      %v1486 = vpop.f32.mrb[0].mxu0
      %v1487 = vpop.f32.mrb[0].mxu0
      %v1488 = vadd.f32 0.0, %v1487
      %v1489 = vpop.f32.mrb[0].mxu0
      %1490 = vmatprep.mubr.bf16.mxu0 0
      %1491 = vmatmul.mubr.bf16.gmra.mrb[0].mxu0 %v1439
      %v1492 = vpop.f32.mrb[0].mxu0
      %v1493 = vadd.f32 0.0, %v1492
      %v1494 = vpop.f32.mrb[0].mxu0
      %v1495 = vpop.f32.mrb[0].mxu0
      %v1496 = vadd.f32 0.0, %v1495
      %v1497 = vpop.f32.mrb[0].mxu0
      %1498 = vmatprep.mubr.bf16.mxu0 0
      %1499 = vmatmul.mubr.bf16.gmra.mrb[0].mxu0 %v1442
      %v1500 = vpop.f32.mrb[0].mxu0
      %v1501 = vadd.f32 0.0, %v1500
      %v1502 = vpop.f32.mrb[0].mxu0
      %v1503 = vpop.f32.mrb[0].mxu0
      %v1504 = vadd.f32 0.0, %v1503
      %v1505 = vpop.f32.mrb[0].mxu0
      %1506 = vmatprep.mubr.bf16.mxu0 0
      %1507 = vmatmul.mubr.bf16.gmra.mrb[0].mxu0 %v1445
      %v1508 = vpop.f32.mrb[0].mxu0
      %v1509 = vadd.f32 0.0, %v1508
      %v1510 = vpop.f32.mrb[0].mxu0
      %v1511 = vpop.f32.mrb[0].mxu0
      %v1512 = vadd.f32 0.0, %v1511
      %v1513 = vpop.f32.mrb[0].mxu0
      %1514 = vmatprep.mubr.bf16.mxu0 0
      %1515 = vmatmul.mubr.bf16.gmra.mrb[0].mxu0 %v1448
      %v1516 = vpop.f32.mrb[0].mxu0
      %v1517 = vadd.f32 0.0, %v1516
      %v1518 = vpop.f32.mrb[0].mxu0
      %v1519 = vpop.f32.mrb[0].mxu0
      %v1520 = vadd.f32 0.0, %v1519
      %v1521 = vpop.f32.mrb[0].mxu0
      %1522 = vdwg.mxu0
      %v1523 = vadd.f32 %v1374, %v1485
      %v1524 = vadd.f32 %v1377, %v1488
      %v1525 = vadd.f32 %v1382, %v1493
      %v1526 = vadd.f32 %v1385, %v1496
      %v1527 = vadd.f32 %v1390, %v1501
      %v1528 = vadd.f32 %v1393, %v1504
      %v1529 = vadd.f32 %v1398, %v1509
      %v1530 = vadd.f32 %v1401, %v1512
      %v1531 = vadd.f32 %v1406, %v1517
      %v1532 = vadd.f32 %v1409, %v1520
      %v1533 = vld [vmem:[#allocation2 + $0xa] sm:$0xff]
      %v1534 = vld [vmem:[#allocation2 + $0x12] sm:$0xff]
      %v1535 = vld [vmem:[#allocation2 + $0x1a] sm:$0xff]
      %v1536 = vld [vmem:[#allocation2 + $0x22] sm:$0xff]
      %v1537 = vld [vmem:[#allocation2 + $0x2a] sm:$0xff]
      %v1538 = vld [vmem:[#allocation2 + $0x32] sm:$0xff]
      %v1539 = vld [vmem:[#allocation2 + $0x3a] sm:$0xff]
      %v1540 = vld [vmem:[#allocation2 + $0x42] sm:$0xff]
      %v1541 = vld [vmem:[#allocation2 + $0x4a] sm:$0xff]
      %v1542 = vld [vmem:[#allocation2 + $0x52] sm:$0xff]
      %v1543 = vpack.c.bf16 %v1534, %v1533
      %v1544 = vpack.c.bf16 %v1536, %v1535
      %v1545 = vpack.c.bf16 %v1538, %v1537
      %v1546 = vpack.c.bf16 %v1540, %v1539
      %v1547 = vpack.c.bf16 %v1542, %v1541
      %v1548 = vld [vmem:[%s4 + $0x18] sm:$0xf]
      %v1549 = vld [vmem:[%s4 + $0x1c] sm:$0xf]
      %v1552 = vunpack.c.l.b16 %v1548
      %v1553 = vunpack.c.l.b16 %v1549
      %v1554 = vpack.c.b16 %v1553, %v1552
      %v1557 = vsel %vm494, %v1543, 0
      %v1560 = vsel %vm494, %v1544, 0
      %v1563 = vsel %vm494, %v1545, 0
      %v1566 = vsel %vm494, %v1546, 0
      %v1569 = vsel %vm494, %v1547, 0
      %1571 = vmatprep.subr.bf16.mxu0 0
      %1572 = vmatpush1.bf16.msra.mxu0 %v1554
      %1573 = vmatprep.subr.bf16.mxu0 0
      %1574 = vmatpush1.bf16.msra.mxu0 0
      %1575 = vmatprep.subr.bf16.mxu0 0
      %1576 = vmatpush1.bf16.msra.mxu0 0
      %1577 = vmatprep.subr.bf16.mxu0 0
      %1578 = vmatpush1.bf16.msra.mxu0 0
      %1579 = vmatprep.subr.bf16.mxu0 0
      %1580 = vmatpush1.bf16.msra.mxu0 0
      %1581 = vmatprep.subr.bf16.mxu0 0
      %1582 = vmatpush1.bf16.msra.mxu0 0
      %1583 = vmatprep.subr.bf16.mxu0 0
      %1584 = vmatpush1.bf16.msra.mxu0 0
      %1585 = vmatprep.subr.bf16.mxu0 0
      %1586 = vmatpush1.bf16.msra.mxu0 0
      %1587 = vmatprep.subr.bf16.mxu0 0
      %1588 = vmatpush1.bf16.msra.mxu0 0
      %1589 = vmatprep.subr.bf16.mxu0 0
      %1590 = vmatpush1.bf16.msra.mxu0 0
      %1591 = vmatprep.subr.bf16.mxu0 0
      %1592 = vmatpush1.bf16.msra.mxu0 0
      %1593 = vmatprep.subr.bf16.mxu0 0
      %1594 = vmatpush1.bf16.msra.mxu0 0
      %1595 = vmatprep.subr.bf16.mxu0 0
      %1596 = vmatpush1.bf16.msra.mxu0 0
      %1597 = vmatprep.subr.bf16.mxu0 0
      %1598 = vmatpush1.bf16.msra.mxu0 0
      %1599 = vmatprep.subr.bf16.mxu0 0
      %1600 = vmatpush1.bf16.msra.mxu0 0
      %1601 = vmatprep.subr.bf16.mxu0 0
      %1602 = vmatpush1.bf16.msra.mxu0 0
      %1603 = vmatprep.mubr.bf16.mxu0 0
      %1604 = vmatmul.mubr.bf16.gmra.mrb[0].mxu0 %v1557
      %v1605 = vpop.f32.mrb[0].mxu0
      %v1606 = vadd.f32 0.0, %v1605
      %v1607 = vpop.f32.mrb[0].mxu0
      %v1608 = vpop.f32.mrb[0].mxu0
      %v1609 = vadd.f32 0.0, %v1608
      %v1610 = vpop.f32.mrb[0].mxu0
      %1611 = vmatprep.mubr.bf16.mxu0 0
      %1612 = vmatmul.mubr.bf16.gmra.mrb[0].mxu0 %v1560
      %v1613 = vpop.f32.mrb[0].mxu0
      %v1614 = vadd.f32 0.0, %v1613
      %v1615 = vpop.f32.mrb[0].mxu0
      %v1616 = vpop.f32.mrb[0].mxu0
      %v1617 = vadd.f32 0.0, %v1616
      %v1618 = vpop.f32.mrb[0].mxu0
      %1619 = vmatprep.mubr.bf16.mxu0 0
      %1620 = vmatmul.mubr.bf16.gmra.mrb[0].mxu0 %v1563
      %v1621 = vpop.f32.mrb[0].mxu0
      %v1622 = vadd.f32 0.0, %v1621
      %v1623 = vpop.f32.mrb[0].mxu0
      %v1624 = vpop.f32.mrb[0].mxu0
      %v1625 = vadd.f32 0.0, %v1624
      %v1626 = vpop.f32.mrb[0].mxu0
      %1627 = vmatprep.mubr.bf16.mxu0 0
      %1628 = vmatmul.mubr.bf16.gmra.mrb[0].mxu0 %v1566
      %v1629 = vpop.f32.mrb[0].mxu0
      %v1630 = vadd.f32 0.0, %v1629
      %v1631 = vpop.f32.mrb[0].mxu0
      %v1632 = vpop.f32.mrb[0].mxu0
      %v1633 = vadd.f32 0.0, %v1632
      %v1634 = vpop.f32.mrb[0].mxu0
      %1635 = vmatprep.mubr.bf16.mxu0 0
      %1636 = vmatmul.mubr.bf16.gmra.mrb[0].mxu0 %v1569
      %v1637 = vpop.f32.mrb[0].mxu0
      %v1638 = vadd.f32 0.0, %v1637
      %v1639 = vpop.f32.mrb[0].mxu0
      %v1640 = vpop.f32.mrb[0].mxu0
      %v1641 = vadd.f32 0.0, %v1640
      %v1642 = vpop.f32.mrb[0].mxu0
      %1643 = vdwg.mxu0
      %v1644 = vadd.f32 %v1523, %v1606
      %v1645 = vadd.f32 %v1524, %v1609
      %v1646 = vadd.f32 %v1525, %v1614
      %v1647 = vadd.f32 %v1526, %v1617
      %v1648 = vadd.f32 %v1527, %v1622
      %v1649 = vadd.f32 %v1528, %v1625
      %v1650 = vadd.f32 %v1529, %v1630
      %v1651 = vadd.f32 %v1530, %v1633
      %v1652 = vadd.f32 %v1531, %v1638
      %v1653 = vadd.f32 %v1532, %v1641
      %v1654 = vld [vmem:[#allocation2 + $0xb] sm:$0xff]
      %v1655 = vld [vmem:[#allocation2 + $0x13] sm:$0xff]
      %v1656 = vld [vmem:[#allocation2 + $0x1b] sm:$0xff]
      %v1657 = vld [vmem:[#allocation2 + $0x23] sm:$0xff]
      %v1658 = vld [vmem:[#allocation2 + $0x2b] sm:$0xff]
      %v1659 = vld [vmem:[#allocation2 + $0x33] sm:$0xff]
      %v1660 = vld [vmem:[#allocation2 + $0x3b] sm:$0xff]
      %v1661 = vld [vmem:[#allocation2 + $0x43] sm:$0xff]
      %v1662 = vld [vmem:[#allocation2 + $0x4b] sm:$0xff]
      %v1663 = vld [vmem:[#allocation2 + $0x53] sm:$0xff]
      %v1664 = vpack.c.bf16 %v1655, %v1654
      %v1665 = vpack.c.bf16 %v1657, %v1656
      %v1666 = vpack.c.bf16 %v1659, %v1658
      %v1667 = vpack.c.bf16 %v1661, %v1660
      %v1668 = vpack.c.bf16 %v1663, %v1662
      %v1669 = vld [vmem:[%s4 + $0x20] sm:$0xf]
      %v1670 = vld [vmem:[%s4 + $0x24] sm:$0xf]
      %v1673 = vunpack.c.l.b16 %v1669
      %v1674 = vunpack.c.l.b16 %v1670
      %v1675 = vpack.c.b16 %v1674, %v1673
      %v1678 = vsel %vm494, %v1664, 0
      %v1681 = vsel %vm494, %v1665, 0
      %v1684 = vsel %vm494, %v1666, 0
      %v1687 = vsel %vm494, %v1667, 0
      %v1690 = vsel %vm494, %v1668, 0
      %1692 = vmatprep.subr.bf16.mxu0 0
      %1693 = vmatpush1.bf16.msra.mxu0 %v1675
      %1694 = vmatprep.subr.bf16.mxu0 0
      %1695 = vmatpush1.bf16.msra.mxu0 0
      %1696 = vmatprep.subr.bf16.mxu0 0
      %1697 = vmatpush1.bf16.msra.mxu0 0
      %1698 = vmatprep.subr.bf16.mxu0 0
      %1699 = vmatpush1.bf16.msra.mxu0 0
      %1700 = vmatprep.subr.bf16.mxu0 0
      %1701 = vmatpush1.bf16.msra.mxu0 0
      %1702 = vmatprep.subr.bf16.mxu0 0
      %1703 = vmatpush1.bf16.msra.mxu0 0
      %1704 = vmatprep.subr.bf16.mxu0 0
      %1705 = vmatpush1.bf16.msra.mxu0 0
      %1706 = vmatprep.subr.bf16.mxu0 0
      %1707 = vmatpush1.bf16.msra.mxu0 0
      %1708 = vmatprep.subr.bf16.mxu0 0
      %1709 = vmatpush1.bf16.msra.mxu0 0
      %1710 = vmatprep.subr.bf16.mxu0 0
      %1711 = vmatpush1.bf16.msra.mxu0 0
      %1712 = vmatprep.subr.bf16.mxu0 0
      %1713 = vmatpush1.bf16.msra.mxu0 0
      %1714 = vmatprep.subr.bf16.mxu0 0
      %1715 = vmatpush1.bf16.msra.mxu0 0
      %1716 = vmatprep.subr.bf16.mxu0 0
      %1717 = vmatpush1.bf16.msra.mxu0 0
      %1718 = vmatprep.subr.bf16.mxu0 0
      %1719 = vmatpush1.bf16.msra.mxu0 0
      %1720 = vmatprep.subr.bf16.mxu0 0
      %1721 = vmatpush1.bf16.msra.mxu0 0
      %1722 = vmatprep.subr.bf16.mxu0 0
      %1723 = vmatpush1.bf16.msra.mxu0 0
      %1724 = vmatprep.mubr.bf16.mxu0 0
      %1725 = vmatmul.mubr.bf16.gmra.mrb[0].mxu0 %v1678
      %v1726 = vpop.f32.mrb[0].mxu0
      %v1727 = vadd.f32 0.0, %v1726
      %v1728 = vpop.f32.mrb[0].mxu0
      %v1729 = vpop.f32.mrb[0].mxu0
      %v1730 = vadd.f32 0.0, %v1729
      %v1731 = vpop.f32.mrb[0].mxu0
      %1732 = vmatprep.mubr.bf16.mxu0 0
      %1733 = vmatmul.mubr.bf16.gmra.mrb[0].mxu0 %v1681
      %v1734 = vpop.f32.mrb[0].mxu0
      %v1735 = vadd.f32 0.0, %v1734
      %v1736 = vpop.f32.mrb[0].mxu0
      %v1737 = vpop.f32.mrb[0].mxu0
      %v1738 = vadd.f32 0.0, %v1737
      %v1739 = vpop.f32.mrb[0].mxu0
      %1740 = vmatprep.mubr.bf16.mxu0 0
      %1741 = vmatmul.mubr.bf16.gmra.mrb[0].mxu0 %v1684
      %v1742 = vpop.f32.mrb[0].mxu0
      %v1743 = vadd.f32 0.0, %v1742
      %v1744 = vpop.f32.mrb[0].mxu0
      %v1745 = vpop.f32.mrb[0].mxu0
      %v1746 = vadd.f32 0.0, %v1745
      %v1747 = vpop.f32.mrb[0].mxu0
      %1748 = vmatprep.mubr.bf16.mxu0 0
      %1749 = vmatmul.mubr.bf16.gmra.mrb[0].mxu0 %v1687
      %v1750 = vpop.f32.mrb[0].mxu0
      %v1751 = vadd.f32 0.0, %v1750
      %v1752 = vpop.f32.mrb[0].mxu0
      %v1753 = vpop.f32.mrb[0].mxu0
      %v1754 = vadd.f32 0.0, %v1753
      %v1755 = vpop.f32.mrb[0].mxu0
      %1756 = vmatprep.mubr.bf16.mxu0 0
      %1757 = vmatmul.mubr.bf16.gmra.mrb[0].mxu0 %v1690
      %v1758 = vpop.f32.mrb[0].mxu0
      %v1759 = vadd.f32 0.0, %v1758
      %v1760 = vpop.f32.mrb[0].mxu0
      %v1761 = vpop.f32.mrb[0].mxu0
      %v1762 = vadd.f32 0.0, %v1761
      %v1763 = vpop.f32.mrb[0].mxu0
      %1764 = vdwg.mxu0
      %v1765 = vadd.f32 %v1644, %v1727
      %v1766 = vadd.f32 %v1645, %v1730
      %v1767 = vadd.f32 %v1646, %v1735
      %v1768 = vadd.f32 %v1647, %v1738
      %v1769 = vadd.f32 %v1648, %v1743
      %v1770 = vadd.f32 %v1649, %v1746
      %v1771 = vadd.f32 %v1650, %v1751
      %v1772 = vadd.f32 %v1651, %v1754
      %v1773 = vadd.f32 %v1652, %v1759
      %v1774 = vadd.f32 %v1653, %v1762
      %v1775 = vld [vmem:[#allocation2 + $0xc] sm:$0xff]
      %v1776 = vld [vmem:[#allocation2 + $0x14] sm:$0xff]
      %v1777 = vld [vmem:[#allocation2 + $0x1c] sm:$0xff]
      %v1778 = vld [vmem:[#allocation2 + $0x24] sm:$0xff]
      %v1779 = vld [vmem:[#allocation2 + $0x2c] sm:$0xff]
      %v1780 = vld [vmem:[#allocation2 + $0x34] sm:$0xff]
      %v1781 = vld [vmem:[#allocation2 + $0x3c] sm:$0xff]
      %v1782 = vld [vmem:[#allocation2 + $0x44] sm:$0xff]
      %v1783 = vld [vmem:[#allocation2 + $0x4c] sm:$0xff]
      %v1784 = vld [vmem:[#allocation2 + $0x54] sm:$0xff]
      %v1785 = vpack.c.bf16 %v1776, %v1775
      %v1786 = vpack.c.bf16 %v1778, %v1777
      %v1787 = vpack.c.bf16 %v1780, %v1779
      %v1788 = vpack.c.bf16 %v1782, %v1781
      %v1789 = vpack.c.bf16 %v1784, %v1783
      %v1790 = vld [vmem:[%s4 + $0x28] sm:$0xf]
      %v1791 = vld [vmem:[%s4 + $0x2c] sm:$0xf]
      %v1794 = vunpack.c.l.b16 %v1790
      %v1795 = vunpack.c.l.b16 %v1791
      %v1796 = vpack.c.b16 %v1795, %v1794
      %v1799 = vsel %vm494, %v1785, 0
      %v1802 = vsel %vm494, %v1786, 0
      %v1805 = vsel %vm494, %v1787, 0
      %v1808 = vsel %vm494, %v1788, 0
      %v1811 = vsel %vm494, %v1789, 0
      %1813 = vmatprep.subr.bf16.mxu0 0
      %1814 = vmatpush1.bf16.msra.mxu0 %v1796
      %1815 = vmatprep.subr.bf16.mxu0 0
      %1816 = vmatpush1.bf16.msra.mxu0 0
      %1817 = vmatprep.subr.bf16.mxu0 0
      %1818 = vmatpush1.bf16.msra.mxu0 0
      %1819 = vmatprep.subr.bf16.mxu0 0
      %1820 = vmatpush1.bf16.msra.mxu0 0
      %1821 = vmatprep.subr.bf16.mxu0 0
      %1822 = vmatpush1.bf16.msra.mxu0 0
      %1823 = vmatprep.subr.bf16.mxu0 0
      %1824 = vmatpush1.bf16.msra.mxu0 0
      %1825 = vmatprep.subr.bf16.mxu0 0
      %1826 = vmatpush1.bf16.msra.mxu0 0
      %1827 = vmatprep.subr.bf16.mxu0 0
      %1828 = vmatpush1.bf16.msra.mxu0 0
      %1829 = vmatprep.subr.bf16.mxu0 0
      %1830 = vmatpush1.bf16.msra.mxu0 0
      %1831 = vmatprep.subr.bf16.mxu0 0
      %1832 = vmatpush1.bf16.msra.mxu0 0
      %1833 = vmatprep.subr.bf16.mxu0 0
      %1834 = vmatpush1.bf16.msra.mxu0 0
      %1835 = vmatprep.subr.bf16.mxu0 0
      %1836 = vmatpush1.bf16.msra.mxu0 0
      %1837 = vmatprep.subr.bf16.mxu0 0
      %1838 = vmatpush1.bf16.msra.mxu0 0
      %1839 = vmatprep.subr.bf16.mxu0 0
      %1840 = vmatpush1.bf16.msra.mxu0 0
      %1841 = vmatprep.subr.bf16.mxu0 0
      %1842 = vmatpush1.bf16.msra.mxu0 0
      %1843 = vmatprep.subr.bf16.mxu0 0
      %1844 = vmatpush1.bf16.msra.mxu0 0
      %1845 = vmatprep.mubr.bf16.mxu0 0
      %1846 = vmatmul.mubr.bf16.gmra.mrb[0].mxu0 %v1799
      %v1847 = vpop.f32.mrb[0].mxu0
      %v1848 = vadd.f32 0.0, %v1847
      %v1849 = vpop.f32.mrb[0].mxu0
      %v1850 = vpop.f32.mrb[0].mxu0
      %v1851 = vadd.f32 0.0, %v1850
      %v1852 = vpop.f32.mrb[0].mxu0
      %1853 = vmatprep.mubr.bf16.mxu0 0
      %1854 = vmatmul.mubr.bf16.gmra.mrb[0].mxu0 %v1802
      %v1855 = vpop.f32.mrb[0].mxu0
      %v1856 = vadd.f32 0.0, %v1855
      %v1857 = vpop.f32.mrb[0].mxu0
      %v1858 = vpop.f32.mrb[0].mxu0
      %v1859 = vadd.f32 0.0, %v1858
      %v1860 = vpop.f32.mrb[0].mxu0
      %1861 = vmatprep.mubr.bf16.mxu0 0
      %1862 = vmatmul.mubr.bf16.gmra.mrb[0].mxu0 %v1805
      %v1863 = vpop.f32.mrb[0].mxu0
      %v1864 = vadd.f32 0.0, %v1863
      %v1865 = vpop.f32.mrb[0].mxu0
      %v1866 = vpop.f32.mrb[0].mxu0
      %v1867 = vadd.f32 0.0, %v1866
      %v1868 = vpop.f32.mrb[0].mxu0
      %1869 = vmatprep.mubr.bf16.mxu0 0
      %1870 = vmatmul.mubr.bf16.gmra.mrb[0].mxu0 %v1808
      %v1871 = vpop.f32.mrb[0].mxu0
      %v1872 = vadd.f32 0.0, %v1871
      %v1873 = vpop.f32.mrb[0].mxu0
      %v1874 = vpop.f32.mrb[0].mxu0
      %v1875 = vadd.f32 0.0, %v1874
      %v1876 = vpop.f32.mrb[0].mxu0
      %1877 = vmatprep.mubr.bf16.mxu0 0
      %1878 = vmatmul.mubr.bf16.gmra.mrb[0].mxu0 %v1811
      %v1879 = vpop.f32.mrb[0].mxu0
      %v1880 = vadd.f32 0.0, %v1879
      %v1881 = vpop.f32.mrb[0].mxu0
      %v1882 = vpop.f32.mrb[0].mxu0
      %v1883 = vadd.f32 0.0, %v1882
      %v1884 = vpop.f32.mrb[0].mxu0
      %1885 = vdwg.mxu0
      %v1886 = vadd.f32 %v1765, %v1848
      %v1887 = vadd.f32 %v1766, %v1851
      %v1888 = vadd.f32 %v1767, %v1856
      %v1889 = vadd.f32 %v1768, %v1859
      %v1890 = vadd.f32 %v1769, %v1864
      %v1891 = vadd.f32 %v1770, %v1867
      %v1892 = vadd.f32 %v1771, %v1872
      %v1893 = vadd.f32 %v1772, %v1875
      %v1894 = vadd.f32 %v1773, %v1880
      %v1895 = vadd.f32 %v1774, %v1883
      %v1896 = vld [vmem:[#allocation2 + $0x14] sm:$0xff]
      %v1897 = vld [vmem:[#allocation2 + $0x1c] sm:$0xff]
      %v1898 = vld [vmem:[#allocation2 + $0x24] sm:$0xff]
      %v1899 = vld [vmem:[#allocation2 + $0x2c] sm:$0xff]
      %v1900 = vld [vmem:[#allocation2 + $0x34] sm:$0xff]
      %v1901 = vld [vmem:[#allocation2 + $0x3c] sm:$0xff]
      %v1902 = vld [vmem:[#allocation2 + $0x44] sm:$0xff]
      %v1903 = vld [vmem:[#allocation2 + $0x4c] sm:$0xff]
      %v1904 = vld [vmem:[#allocation2 + $0x54] sm:$0xff]
      %v1905 = vld [vmem:[#allocation2 + $0x5c] sm:$0xff]
      %v1906 = vpack.c.bf16 %v1897, %v1896
      %v1907 = vpack.c.bf16 %v1899, %v1898
      %v1908 = vpack.c.bf16 %v1901, %v1900
      %v1909 = vpack.c.bf16 %v1903, %v1902
      %v1910 = vpack.c.bf16 %v1905, %v1904
      %v1911 = vld [vmem:[%s4 + $0x30] sm:$0xf]
      %v1912 = vld [vmem:[%s4 + $0x34] sm:$0xf]
      %v1915 = vunpack.c.l.b16 %v1911
      %v1916 = vunpack.c.l.b16 %v1912
      %v1917 = vpack.c.b16 %v1916, %v1915
      %v1920 = vsel %vm494, %v1906, 0
      %v1923 = vsel %vm494, %v1907, 0
      %v1926 = vsel %vm494, %v1908, 0
      %v1929 = vsel %vm494, %v1909, 0
      %v1932 = vsel %vm494, %v1910, 0
      %1934 = vmatprep.subr.bf16.mxu0 0
      %1935 = vmatpush1.bf16.msra.mxu0 %v1917
      %1936 = vmatprep.subr.bf16.mxu0 0
      %1937 = vmatpush1.bf16.msra.mxu0 0
      %1938 = vmatprep.subr.bf16.mxu0 0
      %1939 = vmatpush1.bf16.msra.mxu0 0
      %1940 = vmatprep.subr.bf16.mxu0 0
      %1941 = vmatpush1.bf16.msra.mxu0 0
      %1942 = vmatprep.subr.bf16.mxu0 0
      %1943 = vmatpush1.bf16.msra.mxu0 0
      %1944 = vmatprep.subr.bf16.mxu0 0
      %1945 = vmatpush1.bf16.msra.mxu0 0
      %1946 = vmatprep.subr.bf16.mxu0 0
      %1947 = vmatpush1.bf16.msra.mxu0 0
      %1948 = vmatprep.subr.bf16.mxu0 0
      %1949 = vmatpush1.bf16.msra.mxu0 0
      %1950 = vmatprep.subr.bf16.mxu0 0
      %1951 = vmatpush1.bf16.msra.mxu0 0
      %1952 = vmatprep.subr.bf16.mxu0 0
      %1953 = vmatpush1.bf16.msra.mxu0 0
      %1954 = vmatprep.subr.bf16.mxu0 0
      %1955 = vmatpush1.bf16.msra.mxu0 0
      %1956 = vmatprep.subr.bf16.mxu0 0
      %1957 = vmatpush1.bf16.msra.mxu0 0
      %1958 = vmatprep.subr.bf16.mxu0 0
      %1959 = vmatpush1.bf16.msra.mxu0 0
      %1960 = vmatprep.subr.bf16.mxu0 0
      %1961 = vmatpush1.bf16.msra.mxu0 0
      %1962 = vmatprep.subr.bf16.mxu0 0
      %1963 = vmatpush1.bf16.msra.mxu0 0
      %1964 = vmatprep.subr.bf16.mxu0 0
      %1965 = vmatpush1.bf16.msra.mxu0 0
      %1966 = vmatprep.mubr.bf16.mxu0 0
      %1967 = vmatmul.mubr.bf16.gmra.mrb[0].mxu0 %v1920
      %v1968 = vpop.f32.mrb[0].mxu0
      %v1969 = vadd.f32 0.0, %v1968
      %v1970 = vpop.f32.mrb[0].mxu0
      %v1971 = vpop.f32.mrb[0].mxu0
      %v1972 = vadd.f32 0.0, %v1971
      %v1973 = vpop.f32.mrb[0].mxu0
      %1974 = vmatprep.mubr.bf16.mxu0 0
      %1975 = vmatmul.mubr.bf16.gmra.mrb[0].mxu0 %v1923
      %v1976 = vpop.f32.mrb[0].mxu0
      %v1977 = vadd.f32 0.0, %v1976
      %v1978 = vpop.f32.mrb[0].mxu0
      %v1979 = vpop.f32.mrb[0].mxu0
      %v1980 = vadd.f32 0.0, %v1979
      %v1981 = vpop.f32.mrb[0].mxu0
      %1982 = vmatprep.mubr.bf16.mxu0 0
      %1983 = vmatmul.mubr.bf16.gmra.mrb[0].mxu0 %v1926
      %v1984 = vpop.f32.mrb[0].mxu0
      %v1985 = vadd.f32 0.0, %v1984
      %v1986 = vpop.f32.mrb[0].mxu0
      %v1987 = vpop.f32.mrb[0].mxu0
      %v1988 = vadd.f32 0.0, %v1987
      %v1989 = vpop.f32.mrb[0].mxu0
      %1990 = vmatprep.mubr.bf16.mxu0 0
      %1991 = vmatmul.mubr.bf16.gmra.mrb[0].mxu0 %v1929
      %v1992 = vpop.f32.mrb[0].mxu0
      %v1993 = vadd.f32 0.0, %v1992
      %v1994 = vpop.f32.mrb[0].mxu0
      %v1995 = vpop.f32.mrb[0].mxu0
      %v1996 = vadd.f32 0.0, %v1995
      %v1997 = vpop.f32.mrb[0].mxu0
      %1998 = vmatprep.mubr.bf16.mxu0 0
      %1999 = vmatmul.mubr.bf16.gmra.mrb[0].mxu0 %v1932
      %v2000 = vpop.f32.mrb[0].mxu0
      %v2001 = vadd.f32 0.0, %v2000
      %v2002 = vpop.f32.mrb[0].mxu0
      %v2003 = vpop.f32.mrb[0].mxu0
      %v2004 = vadd.f32 0.0, %v2003
      %v2005 = vpop.f32.mrb[0].mxu0
      %2006 = vdwg.mxu0
      %v2007 = vadd.f32 %v1886, %v1969
      %v2008 = vadd.f32 %v1887, %v1972
      %v2009 = vadd.f32 %v1888, %v1977
      %v2010 = vadd.f32 %v1889, %v1980
      %v2011 = vadd.f32 %v1890, %v1985
      %v2012 = vadd.f32 %v1891, %v1988
      %v2013 = vadd.f32 %v1892, %v1993
      %v2014 = vadd.f32 %v1893, %v1996
      %v2015 = vadd.f32 %v1894, %v2001
      %v2016 = vadd.f32 %v1895, %v2004
      %v2017 = vld [vmem:[#allocation2 + $0x15] sm:$0xff]
      %v2018 = vld [vmem:[#allocation2 + $0x1d] sm:$0xff]
      %v2019 = vld [vmem:[#allocation2 + $0x25] sm:$0xff]
      %v2020 = vld [vmem:[#allocation2 + $0x2d] sm:$0xff]
      %v2021 = vld [vmem:[#allocation2 + $0x35] sm:$0xff]
      %v2022 = vld [vmem:[#allocation2 + $0x3d] sm:$0xff]
      %v2023 = vld [vmem:[#allocation2 + $0x45] sm:$0xff]
      %v2024 = vld [vmem:[#allocation2 + $0x4d] sm:$0xff]
      %v2025 = vld [vmem:[#allocation2 + $0x55] sm:$0xff]
      %v2026 = vld [vmem:[#allocation2 + $0x5d] sm:$0xff]
      %v2027 = vpack.c.bf16 %v2018, %v2017
      %v2028 = vpack.c.bf16 %v2020, %v2019
      %v2029 = vpack.c.bf16 %v2022, %v2021
      %v2030 = vpack.c.bf16 %v2024, %v2023
      %v2031 = vpack.c.bf16 %v2026, %v2025
      %v2032 = vld [vmem:[%s4 + $0x38] sm:$0xf]
      %v2033 = vld [vmem:[%s4 + $0x3c] sm:$0xf]
      %v2036 = vunpack.c.l.b16 %v2032
      %v2037 = vunpack.c.l.b16 %v2033
      %v2038 = vpack.c.b16 %v2037, %v2036
      %v2041 = vsel %vm494, %v2027, 0
      %v2044 = vsel %vm494, %v2028, 0
      %v2047 = vsel %vm494, %v2029, 0
      %v2050 = vsel %vm494, %v2030, 0
      %v2053 = vsel %vm494, %v2031, 0
      %2055 = vmatprep.subr.bf16.mxu0 0
      %2056 = vmatpush1.bf16.msra.mxu0 %v2038
      %2057 = vmatprep.subr.bf16.mxu0 0
      %2058 = vmatpush1.bf16.msra.mxu0 0
      %2059 = vmatprep.subr.bf16.mxu0 0
      %2060 = vmatpush1.bf16.msra.mxu0 0
      %2061 = vmatprep.subr.bf16.mxu0 0
      %2062 = vmatpush1.bf16.msra.mxu0 0
      %2063 = vmatprep.subr.bf16.mxu0 0
      %2064 = vmatpush1.bf16.msra.mxu0 0
      %2065 = vmatprep.subr.bf16.mxu0 0
      %2066 = vmatpush1.bf16.msra.mxu0 0
      %2067 = vmatprep.subr.bf16.mxu0 0
      %2068 = vmatpush1.bf16.msra.mxu0 0
      %2069 = vmatprep.subr.bf16.mxu0 0
      %2070 = vmatpush1.bf16.msra.mxu0 0
      %2071 = vmatprep.subr.bf16.mxu0 0
      %2072 = vmatpush1.bf16.msra.mxu0 0
      %2073 = vmatprep.subr.bf16.mxu0 0
      %2074 = vmatpush1.bf16.msra.mxu0 0
      %2075 = vmatprep.subr.bf16.mxu0 0
      %2076 = vmatpush1.bf16.msra.mxu0 0
      %2077 = vmatprep.subr.bf16.mxu0 0
      %2078 = vmatpush1.bf16.msra.mxu0 0
      %2079 = vmatprep.subr.bf16.mxu0 0
      %2080 = vmatpush1.bf16.msra.mxu0 0
      %2081 = vmatprep.subr.bf16.mxu0 0
      %2082 = vmatpush1.bf16.msra.mxu0 0
      %2083 = vmatprep.subr.bf16.mxu0 0
      %2084 = vmatpush1.bf16.msra.mxu0 0
      %2085 = vmatprep.subr.bf16.mxu0 0
      %2086 = vmatpush1.bf16.msra.mxu0 0
      %2087 = vmatprep.mubr.bf16.mxu0 0
      %2088 = vmatmul.mubr.bf16.gmra.mrb[0].mxu0 %v2041
      %v2089 = vpop.f32.mrb[0].mxu0
      %v2090 = vadd.f32 0.0, %v2089
      %v2091 = vpop.f32.mrb[0].mxu0
      %v2092 = vpop.f32.mrb[0].mxu0
      %v2093 = vadd.f32 0.0, %v2092
      %v2094 = vpop.f32.mrb[0].mxu0
      %2095 = vmatprep.mubr.bf16.mxu0 0
      %2096 = vmatmul.mubr.bf16.gmra.mrb[0].mxu0 %v2044
      %v2097 = vpop.f32.mrb[0].mxu0
      %v2098 = vadd.f32 0.0, %v2097
      %v2099 = vpop.f32.mrb[0].mxu0
      %v2100 = vpop.f32.mrb[0].mxu0
      %v2101 = vadd.f32 0.0, %v2100
      %v2102 = vpop.f32.mrb[0].mxu0
      %2103 = vmatprep.mubr.bf16.mxu0 0
      %2104 = vmatmul.mubr.bf16.gmra.mrb[0].mxu0 %v2047
      %v2105 = vpop.f32.mrb[0].mxu0
      %v2106 = vadd.f32 0.0, %v2105
      %v2107 = vpop.f32.mrb[0].mxu0
      %v2108 = vpop.f32.mrb[0].mxu0
      %v2109 = vadd.f32 0.0, %v2108
      %v2110 = vpop.f32.mrb[0].mxu0
      %2111 = vmatprep.mubr.bf16.mxu0 0
      %2112 = vmatmul.mubr.bf16.gmra.mrb[0].mxu0 %v2050
      %v2113 = vpop.f32.mrb[0].mxu0
      %v2114 = vadd.f32 0.0, %v2113
      %v2115 = vpop.f32.mrb[0].mxu0
      %v2116 = vpop.f32.mrb[0].mxu0
      %v2117 = vadd.f32 0.0, %v2116
      %v2118 = vpop.f32.mrb[0].mxu0
      %2119 = vmatprep.mubr.bf16.mxu0 0
      %2120 = vmatmul.mubr.bf16.gmra.mrb[0].mxu0 %v2053
      %v2121 = vpop.f32.mrb[0].mxu0
      %v2122 = vadd.f32 0.0, %v2121
      %v2123 = vpop.f32.mrb[0].mxu0
      %v2124 = vpop.f32.mrb[0].mxu0
      %v2125 = vadd.f32 0.0, %v2124
      %v2126 = vpop.f32.mrb[0].mxu0
      %2127 = vdwg.mxu0
      %v2128 = vadd.f32 %v2007, %v2090
      %v2129 = vadd.f32 %v2008, %v2093
      %v2130 = vadd.f32 %v2009, %v2098
      %v2131 = vadd.f32 %v2010, %v2101
      %v2132 = vadd.f32 %v2011, %v2106
      %v2133 = vadd.f32 %v2012, %v2109
      %v2134 = vadd.f32 %v2013, %v2114
      %v2135 = vadd.f32 %v2014, %v2117
      %v2136 = vadd.f32 %v2015, %v2122
      %v2137 = vadd.f32 %v2016, %v2125
      %v2138 = vld [vmem:[#allocation2 + $0x16] sm:$0xff]
      %v2139 = vld [vmem:[#allocation2 + $0x1e] sm:$0xff]
      %v2140 = vld [vmem:[#allocation2 + $0x26] sm:$0xff]
      %v2141 = vld [vmem:[#allocation2 + $0x2e] sm:$0xff]
      %v2142 = vld [vmem:[#allocation2 + $0x36] sm:$0xff]
      %v2143 = vld [vmem:[#allocation2 + $0x3e] sm:$0xff]
      %v2144 = vld [vmem:[#allocation2 + $0x46] sm:$0xff]
      %v2145 = vld [vmem:[#allocation2 + $0x4e] sm:$0xff]
      %v2146 = vld [vmem:[#allocation2 + $0x56] sm:$0xff]
      %v2147 = vld [vmem:[#allocation2 + $0x5e] sm:$0xff]
      %v2148 = vpack.c.bf16 %v2139, %v2138
      %v2149 = vpack.c.bf16 %v2141, %v2140
      %v2150 = vpack.c.bf16 %v2143, %v2142
      %v2151 = vpack.c.bf16 %v2145, %v2144
      %v2152 = vpack.c.bf16 %v2147, %v2146
      %v2153 = vld [vmem:[%s4 + $0x40] sm:$0xf]
      %v2154 = vld [vmem:[%s4 + $0x44] sm:$0xf]
      %v2157 = vunpack.c.l.b16 %v2153
      %v2158 = vunpack.c.l.b16 %v2154
      %v2159 = vpack.c.b16 %v2158, %v2157
      %v2162 = vsel %vm494, %v2148, 0
      %v2165 = vsel %vm494, %v2149, 0
      %v2168 = vsel %vm494, %v2150, 0
      %v2171 = vsel %vm494, %v2151, 0
      %v2174 = vsel %vm494, %v2152, 0
      %2176 = vmatprep.subr.bf16.mxu0 0
      %2177 = vmatpush1.bf16.msra.mxu0 %v2159
      %2178 = vmatprep.subr.bf16.mxu0 0
      %2179 = vmatpush1.bf16.msra.mxu0 0
      %2180 = vmatprep.subr.bf16.mxu0 0
      %2181 = vmatpush1.bf16.msra.mxu0 0
      %2182 = vmatprep.subr.bf16.mxu0 0
      %2183 = vmatpush1.bf16.msra.mxu0 0
      %2184 = vmatprep.subr.bf16.mxu0 0
      %2185 = vmatpush1.bf16.msra.mxu0 0
      %2186 = vmatprep.subr.bf16.mxu0 0
      %2187 = vmatpush1.bf16.msra.mxu0 0
      %2188 = vmatprep.subr.bf16.mxu0 0
      %2189 = vmatpush1.bf16.msra.mxu0 0
      %2190 = vmatprep.subr.bf16.mxu0 0
      %2191 = vmatpush1.bf16.msra.mxu0 0
      %2192 = vmatprep.subr.bf16.mxu0 0
      %2193 = vmatpush1.bf16.msra.mxu0 0
      %2194 = vmatprep.subr.bf16.mxu0 0
      %2195 = vmatpush1.bf16.msra.mxu0 0
      %2196 = vmatprep.subr.bf16.mxu0 0
      %2197 = vmatpush1.bf16.msra.mxu0 0
      %2198 = vmatprep.subr.bf16.mxu0 0
      %2199 = vmatpush1.bf16.msra.mxu0 0
      %2200 = vmatprep.subr.bf16.mxu0 0
      %2201 = vmatpush1.bf16.msra.mxu0 0
      %2202 = vmatprep.subr.bf16.mxu0 0
      %2203 = vmatpush1.bf16.msra.mxu0 0
      %2204 = vmatprep.subr.bf16.mxu0 0
      %2205 = vmatpush1.bf16.msra.mxu0 0
      %2206 = vmatprep.subr.bf16.mxu0 0
      %2207 = vmatpush1.bf16.msra.mxu0 0
      %2208 = vmatprep.mubr.bf16.mxu0 0
      %2209 = vmatmul.mubr.bf16.gmra.mrb[0].mxu0 %v2162
      %v2210 = vpop.f32.mrb[0].mxu0
      %v2211 = vadd.f32 0.0, %v2210
      %v2212 = vpop.f32.mrb[0].mxu0
      %v2213 = vpop.f32.mrb[0].mxu0
      %v2214 = vadd.f32 0.0, %v2213
      %v2215 = vpop.f32.mrb[0].mxu0
      %2216 = vmatprep.mubr.bf16.mxu0 0
      %2217 = vmatmul.mubr.bf16.gmra.mrb[0].mxu0 %v2165
      %v2218 = vpop.f32.mrb[0].mxu0
      %v2219 = vadd.f32 0.0, %v2218
      %v2220 = vpop.f32.mrb[0].mxu0
      %v2221 = vpop.f32.mrb[0].mxu0
      %v2222 = vadd.f32 0.0, %v2221
      %v2223 = vpop.f32.mrb[0].mxu0
      %2224 = vmatprep.mubr.bf16.mxu0 0
      %2225 = vmatmul.mubr.bf16.gmra.mrb[0].mxu0 %v2168
      %v2226 = vpop.f32.mrb[0].mxu0
      %v2227 = vadd.f32 0.0, %v2226
      %v2228 = vpop.f32.mrb[0].mxu0
      %v2229 = vpop.f32.mrb[0].mxu0
      %v2230 = vadd.f32 0.0, %v2229
      %v2231 = vpop.f32.mrb[0].mxu0
      %2232 = vmatprep.mubr.bf16.mxu0 0
      %2233 = vmatmul.mubr.bf16.gmra.mrb[0].mxu0 %v2171
      %v2234 = vpop.f32.mrb[0].mxu0
      %v2235 = vadd.f32 0.0, %v2234
      %v2236 = vpop.f32.mrb[0].mxu0
      %v2237 = vpop.f32.mrb[0].mxu0
      %v2238 = vadd.f32 0.0, %v2237
      %v2239 = vpop.f32.mrb[0].mxu0
      %2240 = vmatprep.mubr.bf16.mxu0 0
      %2241 = vmatmul.mubr.bf16.gmra.mrb[0].mxu0 %v2174
      %v2242 = vpop.f32.mrb[0].mxu0
      %v2243 = vadd.f32 0.0, %v2242
      %v2244 = vpop.f32.mrb[0].mxu0
      %v2245 = vpop.f32.mrb[0].mxu0
      %v2246 = vadd.f32 0.0, %v2245
      %v2247 = vpop.f32.mrb[0].mxu0
      %2248 = vdwg.mxu0
      %v2249 = vadd.f32 %v2128, %v2211
      %v2250 = vadd.f32 %v2129, %v2214
      %v2251 = vadd.f32 %v2130, %v2219
      %v2252 = vadd.f32 %v2131, %v2222
      %v2253 = vadd.f32 %v2132, %v2227
      %v2254 = vadd.f32 %v2133, %v2230
      %v2255 = vadd.f32 %v2134, %v2235
      %v2256 = vadd.f32 %v2135, %v2238
      %v2257 = vadd.f32 %v2136, %v2243
      %v2258 = vadd.f32 %v2137, %v2246
      %v2259 = vld [vmem:[%s5] sm:$0x1]
      %v2261 = vlaneseq
      %v2262 = vshrl.u32 %v2261, 7
      %v2263 = vsub.s32 0, %v2262
      %v2264 = vrot.slane %v2259, %v2263
      %v2266 = vmul.f32 %v2249, %v2264
      %v2267 = vmul.f32 %v2250, %v2264
      %v2268 = vmul.f32 %v2251, %v2264
      %v2269 = vmul.f32 %v2252, %v2264
      %v2270 = vmul.f32 %v2253, %v2264
      %v2271 = vmul.f32 %v2254, %v2264
      %v2272 = vmul.f32 %v2255, %v2264
      %v2273 = vmul.f32 %v2256, %v2264
      %v2274 = vmul.f32 %v2257, %v2264
      %v2275 = vmul.f32 %v2258, %v2264
      %v2276 = vld [vmem:[%s6] sm:$0x1]
      %v2278 = vlaneseq
      %v2279 = vshrl.u32 %v2278, 7
      %v2280 = vsub.s32 0, %v2279
      %v2281 = vrot.slane %v2276, %v2280
      %v2283 = vadd.f32 %v2266, %v2281
      %v2284 = vadd.f32 %v2267, %v2281
      %v2285 = vadd.f32 %v2268, %v2281
      %v2286 = vadd.f32 %v2269, %v2281
      %v2287 = vadd.f32 %v2270, %v2281
      %v2288 = vadd.f32 %v2271, %v2281
      %v2289 = vadd.f32 %v2272, %v2281
      %v2290 = vadd.f32 %v2273, %v2281
      %v2291 = vadd.f32 %v2274, %v2281
      %v2292 = vadd.f32 %v2275, %v2281
      %v2293 = vmax.f32 %v2283, 0.0
      %v2294 = vmax.f32 %v2284, 0.0
      %v2295 = vmax.f32 %v2285, 0.0
      %v2296 = vmax.f32 %v2286, 0.0
      %v2297 = vmax.f32 %v2287, 0.0
      %v2298 = vmax.f32 %v2288, 0.0
      %v2299 = vmax.f32 %v2289, 0.0
      %v2300 = vmax.f32 %v2290, 0.0
      %v2301 = vmax.f32 %v2291, 0.0
      %v2302 = vmax.f32 %v2292, 0.0
      %2303 = vst.msk [vmem:[#allocation5] sm:$0xff] %vm516, %v2293
      %2304 = vst.msk [vmem:[#allocation5 + $0x8] sm:$0xff] %vm516, %v2294
      %2305 = vst.msk [vmem:[#allocation5 + $0x10] sm:$0xff] %vm516, %v2295
      %2306 = vst.msk [vmem:[#allocation5 + $0x18] sm:$0xff] %vm516, %v2296
      %2307 = vst.msk [vmem:[#allocation5 + $0x20] sm:$0xff] %vm516, %v2297
      %2308 = vst.msk [vmem:[#allocation5 + $0x28] sm:$0xff] %vm516, %v2298
      %2309 = vst.msk [vmem:[#allocation5 + $0x30] sm:$0xff] %vm516, %v2299
      %2310 = vst.msk [vmem:[#allocation5 + $0x38] sm:$0xff] %vm516, %v2300
      %2311 = vst.msk [vmem:[#allocation5 + $0x40] sm:$0xff] %vm516, %v2301
      %2312 = vst.msk [vmem:[#allocation5 + $0x48] sm:$0xff] %vm516, %v2302
      %v2313 = vld [vmem:[#allocation5] sm:$0xff]
      %v2314 = vld [vmem:[#allocation5 + $0x8] sm:$0xff]
      %v2315 = vld [vmem:[#allocation5 + $0x10] sm:$0xff]
      %v2316 = vld [vmem:[#allocation5 + $0x18] sm:$0xff]
      %v2317 = vld [vmem:[#allocation5 + $0x20] sm:$0xff]
      %v2318 = vld [vmem:[#allocation5 + $0x28] sm:$0xff]
      %v2319 = vld [vmem:[#allocation5 + $0x30] sm:$0xff]
      %v2320 = vld [vmem:[#allocation5 + $0x38] sm:$0xff]
      %v2321 = vld [vmem:[#allocation5 + $0x40] sm:$0x1f]
      %v2322 = vld [vmem:[#allocation5 + $0x1] sm:$0xff]
      %v2323 = vld [vmem:[#allocation5 + $0x9] sm:$0xff]
      %v2324 = vld [vmem:[#allocation5 + $0x11] sm:$0xff]
      %v2325 = vld [vmem:[#allocation5 + $0x19] sm:$0xff]
      %v2326 = vld [vmem:[#allocation5 + $0x21] sm:$0xff]
      %v2327 = vld [vmem:[#allocation5 + $0x29] sm:$0xff]
      %v2328 = vld [vmem:[#allocation5 + $0x31] sm:$0xff]
      %v2329 = vld [vmem:[#allocation5 + $0x39] sm:$0xff]
      %v2330 = vld [vmem:[#allocation5 + $0x41] sm:$0x1f]
      %v2331 = vmax.f32 %v2313, %v2322
      %v2332 = vmax.f32 %v2314, %v2323
      %v2333 = vmax.f32 %v2315, %v2324
      %v2334 = vmax.f32 %v2316, %v2325
      %v2335 = vmax.f32 %v2317, %v2326
      %v2336 = vmax.f32 %v2318, %v2327
      %v2337 = vmax.f32 %v2319, %v2328
      %v2338 = vmax.f32 %v2320, %v2329
      %v2339 = vmax.f32 %v2321, %v2330
      %v2340 = vld [vmem:[#allocation5 + $0xa] sm:$0xff]
      %v2341 = vld [vmem:[#allocation5 + $0x12] sm:$0xff]
      %v2342 = vld [vmem:[#allocation5 + $0x1a] sm:$0xff]
      %v2343 = vld [vmem:[#allocation5 + $0x22] sm:$0xff]
      %v2344 = vld [vmem:[#allocation5 + $0x2a] sm:$0xff]
      %v2345 = vld [vmem:[#allocation5 + $0x32] sm:$0xff]
      %v2346 = vld [vmem:[#allocation5 + $0x3a] sm:$0xff]
      %v2347 = vld [vmem:[#allocation5 + $0x42] sm:$0xff]
      %v2348 = vld [vmem:[#allocation5 + $0x4a] sm:$0x1f]
      %v2349 = vld [vmem:[#allocation5 + $0xb] sm:$0xff]
      %v2350 = vld [vmem:[#allocation5 + $0x13] sm:$0xff]
      %v2351 = vld [vmem:[#allocation5 + $0x1b] sm:$0xff]
      %v2352 = vld [vmem:[#allocation5 + $0x23] sm:$0xff]
      %v2353 = vld [vmem:[#allocation5 + $0x2b] sm:$0xff]
      %v2354 = vld [vmem:[#allocation5 + $0x33] sm:$0xff]
      %v2355 = vld [vmem:[#allocation5 + $0x3b] sm:$0xff]
      %v2356 = vld [vmem:[#allocation5 + $0x43] sm:$0xff]
      %v2357 = vld [vmem:[#allocation5 + $0x4b] sm:$0x1f]
      %v2358 = vmax.f32 %v2340, %v2349
      %v2359 = vmax.f32 %v2341, %v2350
      %v2360 = vmax.f32 %v2342, %v2351
      %v2361 = vmax.f32 %v2343, %v2352
      %v2362 = vmax.f32 %v2344, %v2353
      %v2363 = vmax.f32 %v2345, %v2354
      %v2364 = vmax.f32 %v2346, %v2355
      %v2365 = vmax.f32 %v2347, %v2356
      %v2366 = vmax.f32 %v2348, %v2357
      %v2367 = vmax.f32 %v2331, %v2358
      %v2368 = vmax.f32 %v2332, %v2359
      %v2369 = vmax.f32 %v2333, %v2360
      %v2370 = vmax.f32 %v2334, %v2361
      %v2371 = vmax.f32 %v2335, %v2362
      %v2372 = vmax.f32 %v2336, %v2363
      %v2373 = vmax.f32 %v2337, %v2364
      %v2374 = vmax.f32 %v2338, %v2365
      %v2375 = vmax.f32 %v2339, %v2366
      %2376 = vst.msk [vmem:[#allocation5] sm:$0xff] %vm516, %v2367
      %2377 = vst.msk [vmem:[#allocation5 + $0x8] sm:$0xff] %vm516, %v2368
      %2378 = vst.msk [vmem:[#allocation5 + $0x10] sm:$0xff] %vm516, %v2369
      %2379 = vst.msk [vmem:[#allocation5 + $0x18] sm:$0xff] %vm516, %v2370
      %2380 = vst.msk [vmem:[#allocation5 + $0x20] sm:$0xff] %vm516, %v2371
      %2381 = vst.msk [vmem:[#allocation5 + $0x28] sm:$0xff] %vm516, %v2372
      %2382 = vst.msk [vmem:[#allocation5 + $0x30] sm:$0xff] %vm516, %v2373
      %2383 = vst.msk [vmem:[#allocation5 + $0x38] sm:$0xff] %vm516, %v2374
      %2384 = vst.msk [vmem:[#allocation5 + $0x40] sm:$0x1f] %vm518, %v2375
      %v2385 = vld [vmem:[#allocation5] ss:$2 sm:$0xf]
      %vm2386 = vcmask 257024
      %2387 = vst.msk [vmem:[#allocation3 + $0x7] sm:$0xf] %vm2386, %v2385
      %s2388 = scalar_lea.vmem [#allocation5], 20
      %v2389 = vld [vmem:[%s2388] ss:$2 sm:$0xf]
      %2390 = vst.msk [vmem:[#allocation3 + $0xd] sm:$0xf] %vm2386, %v2389
      %s2391 = scalar_lea.vmem [#allocation5], 40
      %v2392 = vld [vmem:[%s2391] ss:$2 sm:$0xf]
      %2393 = vst.msk [vmem:[#allocation3 + $0x13] sm:$0xf] %vm2386, %v2392
      %s2394 = scalar_lea.vmem [#allocation5], 60
      %v2395 = vld [vmem:[%s2394] ss:$2 sm:$0xf]
      %2396 = vst.msk [vmem:[#allocation3 + $0x19] sm:$0xf] %vm2386, %v2395
      %v2397 = vld [vmem:[#allocation3] sm:$0xff]
      %v2398 = vld [vmem:[#allocation3 + $0x8] sm:$0xff]
      %v2399 = vld [vmem:[#allocation3 + $0x10] sm:$0xff]
      %v2400 = vpack.c.bf16 %v2398, %v2397
      %v2401 = vpack.c.bf16 %v2399, %v2399
      %v2402 = vld [vmem:[%s7] sm:$0xf]
      %v2403 = vld [vmem:[%s7 + $0x4] sm:$0xf]
      %v2404 = vld [vmem:[%s7 + $0x8] sm:$0xf]
      %v2405 = vld [vmem:[%s7 + $0xc] sm:$0xf]
      %v2406 = vld [vmem:[#allocation3 + $0x1] sm:$0xff]
      %v2407 = vld [vmem:[#allocation3 + $0x9] sm:$0xff]
      %v2408 = vld [vmem:[#allocation3 + $0x11] sm:$0xff]
      %v2409 = vpack.c.bf16 %v2407, %v2406
      %v2410 = vpack.c.bf16 %v2408, %v2408
      %v2411 = vld [vmem:[%s7 + $0x10] sm:$0xf]
      %v2412 = vld [vmem:[%s7 + $0x14] sm:$0xf]
      %v2413 = vld [vmem:[%s7 + $0x18] sm:$0xf]
      %v2414 = vld [vmem:[%s7 + $0x1c] sm:$0xf]
      %v2419 = vunpack.c.l.b16 %v2411
      %v2420 = vunpack.c.l.b16 %v2412
      %v2421 = vunpack.c.l.b16 %v2413
      %v2422 = vunpack.c.l.b16 %v2414
      %v2423 = vpack.c.b16 %v2420, %v2419
      %v2424 = vpack.c.b16 %v2422, %v2421
      %v2428 = vsel %vm516, %v2409, 0
      %v2431 = vsel %vm516, %v2410, 0
      %2433 = vmatprep.subr.bf16.mxu0 0
      %2434 = vmatpush1.bf16.msra.mxu0 %v2423
      %2435 = vmatprep.subr.bf16.mxu0 0
      %2436 = vmatpush1.bf16.msra.mxu0 %v2424
      %2437 = vmatprep.subr.bf16.mxu0 0
      %2438 = vmatpush1.bf16.msra.mxu0 0
      %2439 = vmatprep.subr.bf16.mxu0 0
      %2440 = vmatpush1.bf16.msra.mxu0 0
      %2441 = vmatprep.subr.bf16.mxu0 0
      %2442 = vmatpush1.bf16.msra.mxu0 0
      %2443 = vmatprep.subr.bf16.mxu0 0
      %2444 = vmatpush1.bf16.msra.mxu0 0
      %2445 = vmatprep.subr.bf16.mxu0 0
      %2446 = vmatpush1.bf16.msra.mxu0 0
      %2447 = vmatprep.subr.bf16.mxu0 0
      %2448 = vmatpush1.bf16.msra.mxu0 0
      %2449 = vmatprep.subr.bf16.mxu0 0
      %2450 = vmatpush1.bf16.msra.mxu0 0
      %2451 = vmatprep.subr.bf16.mxu0 0
      %2452 = vmatpush1.bf16.msra.mxu0 0
      %2453 = vmatprep.subr.bf16.mxu0 0
      %2454 = vmatpush1.bf16.msra.mxu0 0
      %2455 = vmatprep.subr.bf16.mxu0 0
      %2456 = vmatpush1.bf16.msra.mxu0 0
      %2457 = vmatprep.subr.bf16.mxu0 0
      %2458 = vmatpush1.bf16.msra.mxu0 0
      %2459 = vmatprep.subr.bf16.mxu0 0
      %2460 = vmatpush1.bf16.msra.mxu0 0
      %2461 = vmatprep.subr.bf16.mxu0 0
      %2462 = vmatpush1.bf16.msra.mxu0 0
      %2463 = vmatprep.subr.bf16.mxu0 0
      %2464 = vmatpush1.bf16.msra.mxu0 0
      %2465 = vmatprep.mubr.bf16.mxu0 0
      %2466 = vmatmul.mubr.bf16.gmra.mrb[0].mxu0 %v2428
      %v2467 = vpop.f32.mrb[0].mxu0
      %v2468 = vadd.f32 0.0, %v2467
      %v2469 = vpop.f32.mrb[0].mxu0
      %v2470 = vpop.f32.mrb[0].mxu0
      %v2471 = vadd.f32 0.0, %v2470
      %v2472 = vpop.f32.mrb[0].mxu0
      %2473 = vmatprep.mubr.bf16.mxu0 0
      %2474 = vmatmul.mubr.bf16.gmra.mrb[0].mxu0 %v2431
      %v2475 = vpop.f32.mrb[0].mxu0
      %v2476 = vadd.f32 0.0, %v2475
      %v2477 = vpop.f32.mrb[0].mxu0
      %v2478 = vpop.f32.mrb[0].mxu0
      %v2479 = vpop.f32.mrb[0].mxu0
      %2480 = vdwg.mxu0
      %v2485 = vunpack.c.l.b16 %v2402
      %v2486 = vunpack.c.l.b16 %v2403
      %v2487 = vunpack.c.l.b16 %v2404
      %v2488 = vunpack.c.l.b16 %v2405
      %v2489 = vpack.c.b16 %v2486, %v2485
      %v2490 = vpack.c.b16 %v2488, %v2487
      %v2494 = vsel %vm516, %v2400, 0
      %v2497 = vsel %vm516, %v2401, 0
      %2499 = vmatprep.subr.bf16.mxu0 0
      %2500 = vmatpush1.bf16.msra.mxu0 %v2489
      %2501 = vmatprep.subr.bf16.mxu0 0
      %2502 = vmatpush1.bf16.msra.mxu0 %v2490
      %2503 = vmatprep.subr.bf16.mxu0 0
      %2504 = vmatpush1.bf16.msra.mxu0 0
      %2505 = vmatprep.subr.bf16.mxu0 0
      %2506 = vmatpush1.bf16.msra.mxu0 0
      %2507 = vmatprep.subr.bf16.mxu0 0
      %2508 = vmatpush1.bf16.msra.mxu0 0
      %2509 = vmatprep.subr.bf16.mxu0 0
      %2510 = vmatpush1.bf16.msra.mxu0 0
      %2511 = vmatprep.subr.bf16.mxu0 0
      %2512 = vmatpush1.bf16.msra.mxu0 0
      %2513 = vmatprep.subr.bf16.mxu0 0
      %2514 = vmatpush1.bf16.msra.mxu0 0
      %2515 = vmatprep.subr.bf16.mxu0 0
      %2516 = vmatpush1.bf16.msra.mxu0 0
      %2517 = vmatprep.subr.bf16.mxu0 0
      %2518 = vmatpush1.bf16.msra.mxu0 0
      %2519 = vmatprep.subr.bf16.mxu0 0
      %2520 = vmatpush1.bf16.msra.mxu0 0
      %2521 = vmatprep.subr.bf16.mxu0 0
      %2522 = vmatpush1.bf16.msra.mxu0 0
      %2523 = vmatprep.subr.bf16.mxu0 0
      %2524 = vmatpush1.bf16.msra.mxu0 0
      %2525 = vmatprep.subr.bf16.mxu0 0
      %2526 = vmatpush1.bf16.msra.mxu0 0
      %2527 = vmatprep.subr.bf16.mxu0 0
      %2528 = vmatpush1.bf16.msra.mxu0 0
      %2529 = vmatprep.subr.bf16.mxu0 0
      %2530 = vmatpush1.bf16.msra.mxu0 0
      %2531 = vmatprep.mubr.bf16.mxu0 0
      %2532 = vmatmul.mubr.bf16.gmra.mrb[0].mxu0 %v2494
      %v2533 = vpop.f32.mrb[0].mxu0
      %v2534 = vadd.f32 %v2468, %v2533
      %v2535 = vpop.f32.mrb[0].mxu0
      %v2536 = vpop.f32.mrb[0].mxu0
      %v2537 = vadd.f32 %v2471, %v2536
      %v2538 = vpop.f32.mrb[0].mxu0
      %2539 = vmatprep.mubr.bf16.mxu0 0
      %2540 = vmatmul.mubr.bf16.gmra.mrb[0].mxu0 %v2497
      %v2541 = vpop.f32.mrb[0].mxu0
      %v2542 = vadd.f32 %v2476, %v2541
      %v2543 = vpop.f32.mrb[0].mxu0
      %v2544 = vpop.f32.mrb[0].mxu0
      %v2545 = vpop.f32.mrb[0].mxu0
      %2546 = vdwg.mxu0
      %v2547 = vld [vmem:[#allocation3 + $0x2] sm:$0xff]
      %v2548 = vld [vmem:[#allocation3 + $0xa] sm:$0xff]
      %v2549 = vld [vmem:[#allocation3 + $0x12] sm:$0xff]
      %v2550 = vpack.c.bf16 %v2548, %v2547
      %v2551 = vpack.c.bf16 %v2549, %v2549
      %v2552 = vld [vmem:[%s7 + $0x20] sm:$0xf]
      %v2553 = vld [vmem:[%s7 + $0x24] sm:$0xf]
      %v2554 = vld [vmem:[%s7 + $0x28] sm:$0xf]
      %v2555 = vld [vmem:[%s7 + $0x2c] sm:$0xf]
      %v2560 = vunpack.c.l.b16 %v2552
      %v2561 = vunpack.c.l.b16 %v2553
      %v2562 = vunpack.c.l.b16 %v2554
      %v2563 = vunpack.c.l.b16 %v2555
      %v2564 = vpack.c.b16 %v2561, %v2560
      %v2565 = vpack.c.b16 %v2563, %v2562
      %v2569 = vsel %vm516, %v2550, 0
      %v2572 = vsel %vm516, %v2551, 0
      %2574 = vmatprep.subr.bf16.mxu0 0
      %2575 = vmatpush1.bf16.msra.mxu0 %v2564
      %2576 = vmatprep.subr.bf16.mxu0 0
      %2577 = vmatpush1.bf16.msra.mxu0 %v2565
      %2578 = vmatprep.subr.bf16.mxu0 0
      %2579 = vmatpush1.bf16.msra.mxu0 0
      %2580 = vmatprep.subr.bf16.mxu0 0
      %2581 = vmatpush1.bf16.msra.mxu0 0
      %2582 = vmatprep.subr.bf16.mxu0 0
      %2583 = vmatpush1.bf16.msra.mxu0 0
      %2584 = vmatprep.subr.bf16.mxu0 0
      %2585 = vmatpush1.bf16.msra.mxu0 0
      %2586 = vmatprep.subr.bf16.mxu0 0
      %2587 = vmatpush1.bf16.msra.mxu0 0
      %2588 = vmatprep.subr.bf16.mxu0 0
      %2589 = vmatpush1.bf16.msra.mxu0 0
      %2590 = vmatprep.subr.bf16.mxu0 0
      %2591 = vmatpush1.bf16.msra.mxu0 0
      %2592 = vmatprep.subr.bf16.mxu0 0
      %2593 = vmatpush1.bf16.msra.mxu0 0
      %2594 = vmatprep.subr.bf16.mxu0 0
      %2595 = vmatpush1.bf16.msra.mxu0 0
      %2596 = vmatprep.subr.bf16.mxu0 0
      %2597 = vmatpush1.bf16.msra.mxu0 0
      %2598 = vmatprep.subr.bf16.mxu0 0
      %2599 = vmatpush1.bf16.msra.mxu0 0
      %2600 = vmatprep.subr.bf16.mxu0 0
      %2601 = vmatpush1.bf16.msra.mxu0 0
      %2602 = vmatprep.subr.bf16.mxu0 0
      %2603 = vmatpush1.bf16.msra.mxu0 0
      %2604 = vmatprep.subr.bf16.mxu0 0
      %2605 = vmatpush1.bf16.msra.mxu0 0
      %2606 = vmatprep.mubr.bf16.mxu0 0
      %2607 = vmatmul.mubr.bf16.gmra.mrb[0].mxu0 %v2569
      %v2608 = vpop.f32.mrb[0].mxu0
      %v2609 = vadd.f32 0.0, %v2608
      %v2610 = vpop.f32.mrb[0].mxu0
      %v2611 = vpop.f32.mrb[0].mxu0
      %v2612 = vadd.f32 0.0, %v2611
      %v2613 = vpop.f32.mrb[0].mxu0
      %2614 = vmatprep.mubr.bf16.mxu0 0
      %2615 = vmatmul.mubr.bf16.gmra.mrb[0].mxu0 %v2572
      %v2616 = vpop.f32.mrb[0].mxu0
      %v2617 = vadd.f32 0.0, %v2616
      %v2618 = vpop.f32.mrb[0].mxu0
      %v2619 = vpop.f32.mrb[0].mxu0
      %v2620 = vpop.f32.mrb[0].mxu0
      %2621 = vdwg.mxu0
      %v2622 = vadd.f32 %v2534, %v2609
      %v2623 = vadd.f32 %v2537, %v2612
      %v2624 = vadd.f32 %v2542, %v2617
      %v2625 = vld [vmem:[#allocation3 + $0x6] sm:$0xff]
      %v2626 = vld [vmem:[#allocation3 + $0xe] sm:$0xff]
      %v2627 = vld [vmem:[#allocation3 + $0x16] sm:$0xff]
      %v2628 = vpack.c.bf16 %v2626, %v2625
      %v2629 = vpack.c.bf16 %v2627, %v2627
      %v2630 = vld [vmem:[%s7 + $0x30] sm:$0xf]
      %v2631 = vld [vmem:[%s7 + $0x34] sm:$0xf]
      %v2632 = vld [vmem:[%s7 + $0x38] sm:$0xf]
      %v2633 = vld [vmem:[%s7 + $0x3c] sm:$0xf]
      %v2638 = vunpack.c.l.b16 %v2630
      %v2639 = vunpack.c.l.b16 %v2631
      %v2640 = vunpack.c.l.b16 %v2632
      %v2641 = vunpack.c.l.b16 %v2633
      %v2642 = vpack.c.b16 %v2639, %v2638
      %v2643 = vpack.c.b16 %v2641, %v2640
      %v2647 = vsel %vm516, %v2628, 0
      %v2650 = vsel %vm516, %v2629, 0
      %2652 = vmatprep.subr.bf16.mxu0 0
      %2653 = vmatpush1.bf16.msra.mxu0 %v2642
      %2654 = vmatprep.subr.bf16.mxu0 0
      %2655 = vmatpush1.bf16.msra.mxu0 %v2643
      %2656 = vmatprep.subr.bf16.mxu0 0
      %2657 = vmatpush1.bf16.msra.mxu0 0
      %2658 = vmatprep.subr.bf16.mxu0 0
      %2659 = vmatpush1.bf16.msra.mxu0 0
      %2660 = vmatprep.subr.bf16.mxu0 0
      %2661 = vmatpush1.bf16.msra.mxu0 0
      %2662 = vmatprep.subr.bf16.mxu0 0
      %2663 = vmatpush1.bf16.msra.mxu0 0
      %2664 = vmatprep.subr.bf16.mxu0 0
      %2665 = vmatpush1.bf16.msra.mxu0 0
      %2666 = vmatprep.subr.bf16.mxu0 0
      %2667 = vmatpush1.bf16.msra.mxu0 0
      %2668 = vmatprep.subr.bf16.mxu0 0
      %2669 = vmatpush1.bf16.msra.mxu0 0
      %2670 = vmatprep.subr.bf16.mxu0 0
      %2671 = vmatpush1.bf16.msra.mxu0 0
      %2672 = vmatprep.subr.bf16.mxu0 0
      %2673 = vmatpush1.bf16.msra.mxu0 0
      %2674 = vmatprep.subr.bf16.mxu0 0
      %2675 = vmatpush1.bf16.msra.mxu0 0
      %2676 = vmatprep.subr.bf16.mxu0 0
      %2677 = vmatpush1.bf16.msra.mxu0 0
      %2678 = vmatprep.subr.bf16.mxu0 0
      %2679 = vmatpush1.bf16.msra.mxu0 0
      %2680 = vmatprep.subr.bf16.mxu0 0
      %2681 = vmatpush1.bf16.msra.mxu0 0
      %2682 = vmatprep.subr.bf16.mxu0 0
      %2683 = vmatpush1.bf16.msra.mxu0 0
      %2684 = vmatprep.mubr.bf16.mxu0 0
      %2685 = vmatmul.mubr.bf16.gmra.mrb[0].mxu0 %v2647
      %v2686 = vpop.f32.mrb[0].mxu0
      %v2687 = vadd.f32 0.0, %v2686
      %v2688 = vpop.f32.mrb[0].mxu0
      %v2689 = vpop.f32.mrb[0].mxu0
      %v2690 = vadd.f32 0.0, %v2689
      %v2691 = vpop.f32.mrb[0].mxu0
      %2692 = vmatprep.mubr.bf16.mxu0 0
      %2693 = vmatmul.mubr.bf16.gmra.mrb[0].mxu0 %v2650
      %v2694 = vpop.f32.mrb[0].mxu0
      %v2695 = vadd.f32 0.0, %v2694
      %v2696 = vpop.f32.mrb[0].mxu0
      %v2697 = vpop.f32.mrb[0].mxu0
      %v2698 = vpop.f32.mrb[0].mxu0
      %2699 = vdwg.mxu0
      %v2700 = vadd.f32 %v2622, %v2687
      %v2701 = vadd.f32 %v2623, %v2690
      %v2702 = vadd.f32 %v2624, %v2695
      %v2703 = vld [vmem:[#allocation3 + $0x7] sm:$0xff]
      %v2704 = vld [vmem:[#allocation3 + $0xf] sm:$0xff]
      %v2705 = vld [vmem:[#allocation3 + $0x17] sm:$0xff]
      %v2706 = vpack.c.bf16 %v2704, %v2703
      %v2707 = vpack.c.bf16 %v2705, %v2705
      %v2708 = vld [vmem:[%s7 + $0x40] sm:$0xf]
      %v2709 = vld [vmem:[%s7 + $0x44] sm:$0xf]
      %v2710 = vld [vmem:[%s7 + $0x48] sm:$0xf]
      %v2711 = vld [vmem:[%s7 + $0x4c] sm:$0xf]
      %v2716 = vunpack.c.l.b16 %v2708
      %v2717 = vunpack.c.l.b16 %v2709
      %v2718 = vunpack.c.l.b16 %v2710
      %v2719 = vunpack.c.l.b16 %v2711
      %v2720 = vpack.c.b16 %v2717, %v2716
      %v2721 = vpack.c.b16 %v2719, %v2718
      %v2725 = vsel %vm516, %v2706, 0
      %v2728 = vsel %vm516, %v2707, 0
      %2730 = vmatprep.subr.bf16.mxu0 0
      %2731 = vmatpush1.bf16.msra.mxu0 %v2720
      %2732 = vmatprep.subr.bf16.mxu0 0
      %2733 = vmatpush1.bf16.msra.mxu0 %v2721
      %2734 = vmatprep.subr.bf16.mxu0 0
      %2735 = vmatpush1.bf16.msra.mxu0 0
      %2736 = vmatprep.subr.bf16.mxu0 0
      %2737 = vmatpush1.bf16.msra.mxu0 0
      %2738 = vmatprep.subr.bf16.mxu0 0
      %2739 = vmatpush1.bf16.msra.mxu0 0
      %2740 = vmatprep.subr.bf16.mxu0 0
      %2741 = vmatpush1.bf16.msra.mxu0 0
      %2742 = vmatprep.subr.bf16.mxu0 0
      %2743 = vmatpush1.bf16.msra.mxu0 0
      %2744 = vmatprep.subr.bf16.mxu0 0
      %2745 = vmatpush1.bf16.msra.mxu0 0
      %2746 = vmatprep.subr.bf16.mxu0 0
      %2747 = vmatpush1.bf16.msra.mxu0 0
      %2748 = vmatprep.subr.bf16.mxu0 0
      %2749 = vmatpush1.bf16.msra.mxu0 0
      %2750 = vmatprep.subr.bf16.mxu0 0
      %2751 = vmatpush1.bf16.msra.mxu0 0
      %2752 = vmatprep.subr.bf16.mxu0 0
      %2753 = vmatpush1.bf16.msra.mxu0 0
      %2754 = vmatprep.subr.bf16.mxu0 0
      %2755 = vmatpush1.bf16.msra.mxu0 0
      %2756 = vmatprep.subr.bf16.mxu0 0
      %2757 = vmatpush1.bf16.msra.mxu0 0
      %2758 = vmatprep.subr.bf16.mxu0 0
      %2759 = vmatpush1.bf16.msra.mxu0 0
      %2760 = vmatprep.subr.bf16.mxu0 0
      %2761 = vmatpush1.bf16.msra.mxu0 0
      %2762 = vmatprep.mubr.bf16.mxu0 0
      %2763 = vmatmul.mubr.bf16.gmra.mrb[0].mxu0 %v2725
      %v2764 = vpop.f32.mrb[0].mxu0
      %v2765 = vadd.f32 0.0, %v2764
      %v2766 = vpop.f32.mrb[0].mxu0
      %v2767 = vpop.f32.mrb[0].mxu0
      %v2768 = vadd.f32 0.0, %v2767
      %v2769 = vpop.f32.mrb[0].mxu0
      %2770 = vmatprep.mubr.bf16.mxu0 0
      %2771 = vmatmul.mubr.bf16.gmra.mrb[0].mxu0 %v2728
      %v2772 = vpop.f32.mrb[0].mxu0
      %v2773 = vadd.f32 0.0, %v2772
      %v2774 = vpop.f32.mrb[0].mxu0
      %v2775 = vpop.f32.mrb[0].mxu0
      %v2776 = vpop.f32.mrb[0].mxu0
      %2777 = vdwg.mxu0
      %v2778 = vadd.f32 %v2700, %v2765
      %v2779 = vadd.f32 %v2701, %v2768
      %v2780 = vadd.f32 %v2702, %v2773
      %v2781 = vld [vmem:[#allocation3 + $0x8] sm:$0xff]
      %v2782 = vld [vmem:[#allocation3 + $0x10] sm:$0xff]
      %v2783 = vld [vmem:[#allocation3 + $0x18] sm:$0xff]
      %v2784 = vpack.c.bf16 %v2782, %v2781
      %v2785 = vpack.c.bf16 %v2783, %v2783
      %v2786 = vld [vmem:[%s7 + $0x50] sm:$0xf]
      %v2787 = vld [vmem:[%s7 + $0x54] sm:$0xf]
      %v2788 = vld [vmem:[%s7 + $0x58] sm:$0xf]
      %v2789 = vld [vmem:[%s7 + $0x5c] sm:$0xf]
      %v2794 = vunpack.c.l.b16 %v2786
      %v2795 = vunpack.c.l.b16 %v2787
      %v2796 = vunpack.c.l.b16 %v2788
      %v2797 = vunpack.c.l.b16 %v2789
      %v2798 = vpack.c.b16 %v2795, %v2794
      %v2799 = vpack.c.b16 %v2797, %v2796
      %v2803 = vsel %vm516, %v2784, 0
      %v2806 = vsel %vm516, %v2785, 0
      %2808 = vmatprep.subr.bf16.mxu0 0
      %2809 = vmatpush1.bf16.msra.mxu0 %v2798
      %2810 = vmatprep.subr.bf16.mxu0 0
      %2811 = vmatpush1.bf16.msra.mxu0 %v2799
      %2812 = vmatprep.subr.bf16.mxu0 0
      %2813 = vmatpush1.bf16.msra.mxu0 0
      %2814 = vmatprep.subr.bf16.mxu0 0
      %2815 = vmatpush1.bf16.msra.mxu0 0
      %2816 = vmatprep.subr.bf16.mxu0 0
      %2817 = vmatpush1.bf16.msra.mxu0 0
      %2818 = vmatprep.subr.bf16.mxu0 0
      %2819 = vmatpush1.bf16.msra.mxu0 0
      %2820 = vmatprep.subr.bf16.mxu0 0
      %2821 = vmatpush1.bf16.msra.mxu0 0
      %2822 = vmatprep.subr.bf16.mxu0 0
      %2823 = vmatpush1.bf16.msra.mxu0 0
      %2824 = vmatprep.subr.bf16.mxu0 0
      %2825 = vmatpush1.bf16.msra.mxu0 0
      %2826 = vmatprep.subr.bf16.mxu0 0
      %2827 = vmatpush1.bf16.msra.mxu0 0
      %2828 = vmatprep.subr.bf16.mxu0 0
      %2829 = vmatpush1.bf16.msra.mxu0 0
      %2830 = vmatprep.subr.bf16.mxu0 0
      %2831 = vmatpush1.bf16.msra.mxu0 0
      %2832 = vmatprep.subr.bf16.mxu0 0
      %2833 = vmatpush1.bf16.msra.mxu0 0
      %2834 = vmatprep.subr.bf16.mxu0 0
      %2835 = vmatpush1.bf16.msra.mxu0 0
      %2836 = vmatprep.subr.bf16.mxu0 0
      %2837 = vmatpush1.bf16.msra.mxu0 0
      %2838 = vmatprep.subr.bf16.mxu0 0
      %2839 = vmatpush1.bf16.msra.mxu0 0
      %2840 = vmatprep.mubr.bf16.mxu0 0
      %2841 = vmatmul.mubr.bf16.gmra.mrb[0].mxu0 %v2803
      %v2842 = vpop.f32.mrb[0].mxu0
      %v2843 = vadd.f32 0.0, %v2842
      %v2844 = vpop.f32.mrb[0].mxu0
      %v2845 = vpop.f32.mrb[0].mxu0
      %v2846 = vadd.f32 0.0, %v2845
      %v2847 = vpop.f32.mrb[0].mxu0
      %2848 = vmatprep.mubr.bf16.mxu0 0
      %2849 = vmatmul.mubr.bf16.gmra.mrb[0].mxu0 %v2806
      %v2850 = vpop.f32.mrb[0].mxu0
      %v2851 = vadd.f32 0.0, %v2850
      %v2852 = vpop.f32.mrb[0].mxu0
      %v2853 = vpop.f32.mrb[0].mxu0
      %v2854 = vpop.f32.mrb[0].mxu0
      %2855 = vdwg.mxu0
      %v2856 = vadd.f32 %v2778, %v2843
      %v2857 = vadd.f32 %v2779, %v2846
      %v2858 = vadd.f32 %v2780, %v2851
      %v2859 = vld [vmem:[#allocation3 + $0xc] sm:$0xff]
      %v2860 = vld [vmem:[#allocation3 + $0x14] sm:$0xff]
      %v2861 = vld [vmem:[#allocation3 + $0x1c] sm:$0xff]
      %v2862 = vpack.c.bf16 %v2860, %v2859
      %v2863 = vpack.c.bf16 %v2861, %v2861
      %v2864 = vld [vmem:[%s7 + $0x60] sm:$0xf]
      %v2865 = vld [vmem:[%s7 + $0x64] sm:$0xf]
      %v2866 = vld [vmem:[%s7 + $0x68] sm:$0xf]
      %v2867 = vld [vmem:[%s7 + $0x6c] sm:$0xf]
      %v2872 = vunpack.c.l.b16 %v2864
      %v2873 = vunpack.c.l.b16 %v2865
      %v2874 = vunpack.c.l.b16 %v2866
      %v2875 = vunpack.c.l.b16 %v2867
      %v2876 = vpack.c.b16 %v2873, %v2872
      %v2877 = vpack.c.b16 %v2875, %v2874
      %v2881 = vsel %vm516, %v2862, 0
      %v2884 = vsel %vm516, %v2863, 0
      %2886 = vmatprep.subr.bf16.mxu0 0
      %2887 = vmatpush1.bf16.msra.mxu0 %v2876
      %2888 = vmatprep.subr.bf16.mxu0 0
      %2889 = vmatpush1.bf16.msra.mxu0 %v2877
      %2890 = vmatprep.subr.bf16.mxu0 0
      %2891 = vmatpush1.bf16.msra.mxu0 0
      %2892 = vmatprep.subr.bf16.mxu0 0
      %2893 = vmatpush1.bf16.msra.mxu0 0
      %2894 = vmatprep.subr.bf16.mxu0 0
      %2895 = vmatpush1.bf16.msra.mxu0 0
      %2896 = vmatprep.subr.bf16.mxu0 0
      %2897 = vmatpush1.bf16.msra.mxu0 0
      %2898 = vmatprep.subr.bf16.mxu0 0
      %2899 = vmatpush1.bf16.msra.mxu0 0
      %2900 = vmatprep.subr.bf16.mxu0 0
      %2901 = vmatpush1.bf16.msra.mxu0 0
      %2902 = vmatprep.subr.bf16.mxu0 0
      %2903 = vmatpush1.bf16.msra.mxu0 0
      %2904 = vmatprep.subr.bf16.mxu0 0
      %2905 = vmatpush1.bf16.msra.mxu0 0
      %2906 = vmatprep.subr.bf16.mxu0 0
      %2907 = vmatpush1.bf16.msra.mxu0 0
      %2908 = vmatprep.subr.bf16.mxu0 0
      %2909 = vmatpush1.bf16.msra.mxu0 0
      %2910 = vmatprep.subr.bf16.mxu0 0
      %2911 = vmatpush1.bf16.msra.mxu0 0
      %2912 = vmatprep.subr.bf16.mxu0 0
      %2913 = vmatpush1.bf16.msra.mxu0 0
      %2914 = vmatprep.subr.bf16.mxu0 0
      %2915 = vmatpush1.bf16.msra.mxu0 0
      %2916 = vmatprep.subr.bf16.mxu0 0
      %2917 = vmatpush1.bf16.msra.mxu0 0
      %2918 = vmatprep.mubr.bf16.mxu0 0
      %2919 = vmatmul.mubr.bf16.gmra.mrb[0].mxu0 %v2881
      %v2920 = vpop.f32.mrb[0].mxu0
      %v2921 = vadd.f32 0.0, %v2920
      %v2922 = vpop.f32.mrb[0].mxu0
      %v2923 = vpop.f32.mrb[0].mxu0
      %v2924 = vadd.f32 0.0, %v2923
      %v2925 = vpop.f32.mrb[0].mxu0
      %2926 = vmatprep.mubr.bf16.mxu0 0
      %2927 = vmatmul.mubr.bf16.gmra.mrb[0].mxu0 %v2884
      %v2928 = vpop.f32.mrb[0].mxu0
      %v2929 = vadd.f32 0.0, %v2928
      %v2930 = vpop.f32.mrb[0].mxu0
      %v2931 = vpop.f32.mrb[0].mxu0
      %v2932 = vpop.f32.mrb[0].mxu0
      %2933 = vdwg.mxu0
      %v2934 = vadd.f32 %v2856, %v2921
      %v2935 = vadd.f32 %v2857, %v2924
      %v2936 = vadd.f32 %v2858, %v2929
      %v2937 = vld [vmem:[#allocation3 + $0xd] sm:$0xff]
      %v2938 = vld [vmem:[#allocation3 + $0x15] sm:$0xff]
      %v2939 = vld [vmem:[#allocation3 + $0x1d] sm:$0xff]
      %v2940 = vpack.c.bf16 %v2938, %v2937
      %v2941 = vpack.c.bf16 %v2939, %v2939
      %v2942 = vld [vmem:[%s7 + $0x70] sm:$0xf]
      %v2943 = vld [vmem:[%s7 + $0x74] sm:$0xf]
      %v2944 = vld [vmem:[%s7 + $0x78] sm:$0xf]
      %v2945 = vld [vmem:[%s7 + $0x7c] sm:$0xf]
      %v2950 = vunpack.c.l.b16 %v2942
      %v2951 = vunpack.c.l.b16 %v2943
      %v2952 = vunpack.c.l.b16 %v2944
      %v2953 = vunpack.c.l.b16 %v2945
      %v2954 = vpack.c.b16 %v2951, %v2950
      %v2955 = vpack.c.b16 %v2953, %v2952
      %v2959 = vsel %vm516, %v2940, 0
      %v2962 = vsel %vm516, %v2941, 0
      %2964 = vmatprep.subr.bf16.mxu0 0
      %2965 = vmatpush1.bf16.msra.mxu0 %v2954
      %2966 = vmatprep.subr.bf16.mxu0 0
      %2967 = vmatpush1.bf16.msra.mxu0 %v2955
      %2968 = vmatprep.subr.bf16.mxu0 0
      %2969 = vmatpush1.bf16.msra.mxu0 0
      %2970 = vmatprep.subr.bf16.mxu0 0
      %2971 = vmatpush1.bf16.msra.mxu0 0
      %2972 = vmatprep.subr.bf16.mxu0 0
      %2973 = vmatpush1.bf16.msra.mxu0 0
      %2974 = vmatprep.subr.bf16.mxu0 0
      %2975 = vmatpush1.bf16.msra.mxu0 0
      %2976 = vmatprep.subr.bf16.mxu0 0
      %2977 = vmatpush1.bf16.msra.mxu0 0
      %2978 = vmatprep.subr.bf16.mxu0 0
      %2979 = vmatpush1.bf16.msra.mxu0 0
      %2980 = vmatprep.subr.bf16.mxu0 0
      %2981 = vmatpush1.bf16.msra.mxu0 0
      %2982 = vmatprep.subr.bf16.mxu0 0
      %2983 = vmatpush1.bf16.msra.mxu0 0
      %2984 = vmatprep.subr.bf16.mxu0 0
      %2985 = vmatpush1.bf16.msra.mxu0 0
      %2986 = vmatprep.subr.bf16.mxu0 0
      %2987 = vmatpush1.bf16.msra.mxu0 0
      %2988 = vmatprep.subr.bf16.mxu0 0
      %2989 = vmatpush1.bf16.msra.mxu0 0
      %2990 = vmatprep.subr.bf16.mxu0 0
      %2991 = vmatpush1.bf16.msra.mxu0 0
      %2992 = vmatprep.subr.bf16.mxu0 0
      %2993 = vmatpush1.bf16.msra.mxu0 0
      %2994 = vmatprep.subr.bf16.mxu0 0
      %2995 = vmatpush1.bf16.msra.mxu0 0
      %2996 = vmatprep.mubr.bf16.mxu0 0
      %2997 = vmatmul.mubr.bf16.gmra.mrb[0].mxu0 %v2959
      %v2998 = vpop.f32.mrb[0].mxu0
      %v2999 = vadd.f32 0.0, %v2998
      %v3000 = vpop.f32.mrb[0].mxu0
      %v3001 = vpop.f32.mrb[0].mxu0
      %v3002 = vadd.f32 0.0, %v3001
      %v3003 = vpop.f32.mrb[0].mxu0
      %3004 = vmatprep.mubr.bf16.mxu0 0
      %3005 = vmatmul.mubr.bf16.gmra.mrb[0].mxu0 %v2962
      %v3006 = vpop.f32.mrb[0].mxu0
      %v3007 = vadd.f32 0.0, %v3006
      %v3008 = vpop.f32.mrb[0].mxu0
      %v3009 = vpop.f32.mrb[0].mxu0
      %v3010 = vpop.f32.mrb[0].mxu0
      %3011 = vdwg.mxu0
      %v3012 = vadd.f32 %v2934, %v2999
      %v3013 = vadd.f32 %v2935, %v3002
      %v3014 = vadd.f32 %v2936, %v3007
      %v3015 = vld [vmem:[#allocation3 + $0xe] sm:$0xff]
      %v3016 = vld [vmem:[#allocation3 + $0x16] sm:$0xff]
      %v3017 = vld [vmem:[#allocation3 + $0x1e] sm:$0xff]
      %v3018 = vpack.c.bf16 %v3016, %v3015
      %v3019 = vpack.c.bf16 %v3017, %v3017
      %v3020 = vld [vmem:[%s7 + $0x80] sm:$0xf]
      %v3021 = vld [vmem:[%s7 + $0x84] sm:$0xf]
      %v3022 = vld [vmem:[%s7 + $0x88] sm:$0xf]
      %v3023 = vld [vmem:[%s7 + $0x8c] sm:$0xf]
      %v3028 = vunpack.c.l.b16 %v3020
      %v3029 = vunpack.c.l.b16 %v3021
      %v3030 = vunpack.c.l.b16 %v3022
      %v3031 = vunpack.c.l.b16 %v3023
      %v3032 = vpack.c.b16 %v3029, %v3028
      %v3033 = vpack.c.b16 %v3031, %v3030
      %v3037 = vsel %vm516, %v3018, 0
      %v3040 = vsel %vm516, %v3019, 0
      %3042 = vmatprep.subr.bf16.mxu0 0
      %3043 = vmatpush1.bf16.msra.mxu0 %v3032
      %3044 = vmatprep.subr.bf16.mxu0 0
      %3045 = vmatpush1.bf16.msra.mxu0 %v3033
      %3046 = vmatprep.subr.bf16.mxu0 0
      %3047 = vmatpush1.bf16.msra.mxu0 0
      %3048 = vmatprep.subr.bf16.mxu0 0
      %3049 = vmatpush1.bf16.msra.mxu0 0
      %3050 = vmatprep.subr.bf16.mxu0 0
      %3051 = vmatpush1.bf16.msra.mxu0 0
      %3052 = vmatprep.subr.bf16.mxu0 0
      %3053 = vmatpush1.bf16.msra.mxu0 0
      %3054 = vmatprep.subr.bf16.mxu0 0
      %3055 = vmatpush1.bf16.msra.mxu0 0
      %3056 = vmatprep.subr.bf16.mxu0 0
      %3057 = vmatpush1.bf16.msra.mxu0 0
      %3058 = vmatprep.subr.bf16.mxu0 0
      %3059 = vmatpush1.bf16.msra.mxu0 0
      %3060 = vmatprep.subr.bf16.mxu0 0
      %3061 = vmatpush1.bf16.msra.mxu0 0
      %3062 = vmatprep.subr.bf16.mxu0 0
      %3063 = vmatpush1.bf16.msra.mxu0 0
      %3064 = vmatprep.subr.bf16.mxu0 0
      %3065 = vmatpush1.bf16.msra.mxu0 0
      %3066 = vmatprep.subr.bf16.mxu0 0
      %3067 = vmatpush1.bf16.msra.mxu0 0
      %3068 = vmatprep.subr.bf16.mxu0 0
      %3069 = vmatpush1.bf16.msra.mxu0 0
      %3070 = vmatprep.subr.bf16.mxu0 0
      %3071 = vmatpush1.bf16.msra.mxu0 0
      %3072 = vmatprep.subr.bf16.mxu0 0
      %3073 = vmatpush1.bf16.msra.mxu0 0
      %3074 = vmatprep.mubr.bf16.mxu0 0
      %3075 = vmatmul.mubr.bf16.gmra.mrb[0].mxu0 %v3037
      %v3076 = vpop.f32.mrb[0].mxu0
      %v3077 = vadd.f32 0.0, %v3076
      %v3078 = vpop.f32.mrb[0].mxu0
      %v3079 = vpop.f32.mrb[0].mxu0
      %v3080 = vadd.f32 0.0, %v3079
      %v3081 = vpop.f32.mrb[0].mxu0
      %3082 = vmatprep.mubr.bf16.mxu0 0
      %3083 = vmatmul.mubr.bf16.gmra.mrb[0].mxu0 %v3040
      %v3084 = vpop.f32.mrb[0].mxu0
      %v3085 = vadd.f32 0.0, %v3084
      %v3086 = vpop.f32.mrb[0].mxu0
      %v3087 = vpop.f32.mrb[0].mxu0
      %v3088 = vpop.f32.mrb[0].mxu0
      %3089 = vdwg.mxu0
      %v3090 = vadd.f32 %v3012, %v3077
      %v3091 = vadd.f32 %v3013, %v3080
      %v3092 = vadd.f32 %v3014, %v3085
      %v3093 = vld [vmem:[%s8] sm:$0x1]
      %v3095 = vlaneseq
      %v3096 = vshrl.u32 %v3095, 7
      %v3097 = vsub.s32 0, %v3096
      %v3098 = vrot.slane %v3093, %v3097
      %v3100 = vmul.f32 %v3090, %v3098
      %v3101 = vmul.f32 %v3091, %v3098
      %v3102 = vmul.f32 %v3092, %v3098
      %v3103 = vld [vmem:[%s9] sm:$0x1]
      %v3105 = vlaneseq
      %v3106 = vshrl.u32 %v3105, 7
      %v3107 = vsub.s32 0, %v3106
      %v3108 = vrot.slane %v3103, %v3107
      %v3110 = vadd.f32 %v3100, %v3108
      %v3111 = vadd.f32 %v3101, %v3108
      %v3112 = vadd.f32 %v3102, %v3108
      %v3113 = vmax.f32 %v3110, 0.0
      %v3114 = vmax.f32 %v3111, 0.0
      %v3115 = vmax.f32 %v3112, 0.0
      %3116 = vst.msk [vmem:[#allocation5] sm:$0xff] %vm524, %v3113
      %3117 = vst.msk [vmem:[#allocation5 + $0x8] sm:$0xff] %vm524, %v3114
      %3118 = vst.msk [vmem:[#allocation5 + $0x10] sm:$0xff] %vm524, %v3115
      %v3119 = vld [vmem:[#allocation5] sm:$0xff]
      %v3120 = vld [vmem:[#allocation5 + $0x8] sm:$0xff]
      %v3121 = vld [vmem:[#allocation5 + $0x10] sm:$0x1]
      %v3122 = vld [vmem:[#allocation5 + $0x1] sm:$0xff]
      %v3123 = vld [vmem:[#allocation5 + $0x9] sm:$0xff]
      %v3124 = vld [vmem:[#allocation5 + $0x11] sm:$0x1]
      %v3125 = vmax.f32 %v3119, %v3122
      %v3126 = vmax.f32 %v3120, %v3123
      %v3127 = vmax.f32 %v3121, %v3124
      %v3128 = vld [vmem:[#allocation5 + $0x6] sm:$0xff]
      %v3129 = vld [vmem:[#allocation5 + $0xe] sm:$0xff]
      %v3130 = vld [vmem:[#allocation5 + $0x16] sm:$0x1]
      %v3131 = vld [vmem:[#allocation5 + $0x7] sm:$0xff]
      %v3132 = vld [vmem:[#allocation5 + $0xf] sm:$0xff]
      %v3133 = vld [vmem:[#allocation5 + $0x17] sm:$0x1]
      %v3134 = vmax.f32 %v3128, %v3131
      %v3135 = vmax.f32 %v3129, %v3132
      %v3136 = vmax.f32 %v3130, %v3133
      %v3137 = vmax.f32 %v3125, %v3134
      %v3138 = vmax.f32 %v3126, %v3135
      %v3139 = vmax.f32 %v3127, %v3136
      %3140 = vst.msk [vmem:[#allocation5] sm:$0xff] %vm524, %v3137
      %3141 = vst.msk [vmem:[#allocation5 + $0x8] sm:$0xff] %vm524, %v3138
      %3142 = vst.msk [vmem:[#allocation5 + $0x10] sm:$0x1] %vm526, %v3139
      %v3143 = vld [vmem:[#allocation5] ss:$2 sm:$0x3]
      %3144 = vst.msk [vmem:[#allocation4 + $0x5] sm:$0x3] %vm522, %v3143
      %s3145 = scalar_lea.vmem [#allocation5], 12
      %v3146 = vld [vmem:[%s3145] ss:$2 sm:$0x3]
      %3147 = vst.msk [vmem:[#allocation4 + $0x9] sm:$0x3] %vm522, %v3146
      %v3148 = vld [vmem:[#allocation4] sm:$0xff]
      %v3149 = vpack.c.bf16 %v3148, %v3148
      %v3150 = vld [vmem:[%s10] sm:$0xf]
      %v3151 = vld [vmem:[%s10 + $0x4] sm:$0xf]
      %v3152 = vld [vmem:[%s10 + $0x8] sm:$0xf]
      %v3153 = vld [vmem:[%s10 + $0xc] sm:$0xf]
      %v3154 = vld [vmem:[%s10 + $0x10] sm:$0xf]
      %v3155 = vld [vmem:[%s10 + $0x14] sm:$0xf]
      %v3156 = vld [vmem:[%s10 + $0x18] sm:$0xf]
      %v3157 = vld [vmem:[%s10 + $0x1c] sm:$0xf]
      %v3158 = vld [vmem:[#allocation4 + $0x1] sm:$0xff]
      %v3159 = vpack.c.bf16 %v3158, %v3158
      %v3160 = vld [vmem:[%s10 + $0x20] sm:$0xf]
      %v3161 = vld [vmem:[%s10 + $0x24] sm:$0xf]
      %v3162 = vld [vmem:[%s10 + $0x28] sm:$0xf]
      %v3163 = vld [vmem:[%s10 + $0x2c] sm:$0xf]
      %v3164 = vld [vmem:[%s10 + $0x30] sm:$0xf]
      %v3165 = vld [vmem:[%s10 + $0x34] sm:$0xf]
      %v3166 = vld [vmem:[%s10 + $0x38] sm:$0xf]
      %v3167 = vld [vmem:[%s10 + $0x3c] sm:$0xf]
      %v3176 = vunpack.c.l.b16 %v3160
      %v3177 = vunpack.c.l.b16 %v3161
      %v3178 = vunpack.c.l.b16 %v3162
      %v3179 = vunpack.c.l.b16 %v3163
      %v3180 = vunpack.c.l.b16 %v3164
      %v3181 = vunpack.c.l.b16 %v3165
      %v3182 = vunpack.c.l.b16 %v3166
      %v3183 = vunpack.c.l.b16 %v3167
      %v3184 = vpack.c.b16 %v3177, %v3176
      %v3185 = vpack.c.b16 %v3179, %v3178
      %v3186 = vpack.c.b16 %v3181, %v3180
      %v3187 = vpack.c.b16 %v3183, %v3182
      %v3193 = vsel %vm524, %v3159, 0
      %3195 = vmatprep.subr.bf16.mxu0 0
      %3196 = vmatpush1.bf16.msra.mxu0 %v3184
      %3197 = vmatprep.subr.bf16.mxu0 0
      %3198 = vmatpush1.bf16.msra.mxu0 %v3185
      %3199 = vmatprep.subr.bf16.mxu0 0
      %3200 = vmatpush1.bf16.msra.mxu0 %v3186
      %3201 = vmatprep.subr.bf16.mxu0 0
      %3202 = vmatpush1.bf16.msra.mxu0 %v3187
      %3203 = vmatprep.subr.bf16.mxu0 0
      %3204 = vmatpush1.bf16.msra.mxu0 0
      %3205 = vmatprep.subr.bf16.mxu0 0
      %3206 = vmatpush1.bf16.msra.mxu0 0
      %3207 = vmatprep.subr.bf16.mxu0 0
      %3208 = vmatpush1.bf16.msra.mxu0 0
      %3209 = vmatprep.subr.bf16.mxu0 0
      %3210 = vmatpush1.bf16.msra.mxu0 0
      %3211 = vmatprep.subr.bf16.mxu0 0
      %3212 = vmatpush1.bf16.msra.mxu0 0
      %3213 = vmatprep.subr.bf16.mxu0 0
      %3214 = vmatpush1.bf16.msra.mxu0 0
      %3215 = vmatprep.subr.bf16.mxu0 0
      %3216 = vmatpush1.bf16.msra.mxu0 0
      %3217 = vmatprep.subr.bf16.mxu0 0
      %3218 = vmatpush1.bf16.msra.mxu0 0
      %3219 = vmatprep.subr.bf16.mxu0 0
      %3220 = vmatpush1.bf16.msra.mxu0 0
      %3221 = vmatprep.subr.bf16.mxu0 0
      %3222 = vmatpush1.bf16.msra.mxu0 0
      %3223 = vmatprep.subr.bf16.mxu0 0
      %3224 = vmatpush1.bf16.msra.mxu0 0
      %3225 = vmatprep.subr.bf16.mxu0 0
      %3226 = vmatpush1.bf16.msra.mxu0 0
      %3227 = vmatprep.mubr.bf16.mxu0 0
      %3228 = vmatmul.mubr.bf16.gmra.mrb[0].mxu0 %v3193
      %v3229 = vpop.f32.mrb[0].mxu0
      %v3230 = vadd.f32 0.0, %v3229
      %v3231 = vpop.f32.mrb[0].mxu0
      %v3232 = vpop.f32.mrb[0].mxu0
      %v3233 = vpop.f32.mrb[0].mxu0
      %3234 = vdwg.mxu0
      %v3243 = vunpack.c.l.b16 %v3150
      %v3244 = vunpack.c.l.b16 %v3151
      %v3245 = vunpack.c.l.b16 %v3152
      %v3246 = vunpack.c.l.b16 %v3153
      %v3247 = vunpack.c.l.b16 %v3154
      %v3248 = vunpack.c.l.b16 %v3155
      %v3249 = vunpack.c.l.b16 %v3156
      %v3250 = vunpack.c.l.b16 %v3157
      %v3251 = vpack.c.b16 %v3244, %v3243
      %v3252 = vpack.c.b16 %v3246, %v3245
      %v3253 = vpack.c.b16 %v3248, %v3247
      %v3254 = vpack.c.b16 %v3250, %v3249
      %v3260 = vsel %vm524, %v3149, 0
      %3262 = vmatprep.subr.bf16.mxu0 0
      %3263 = vmatpush1.bf16.msra.mxu0 %v3251
      %3264 = vmatprep.subr.bf16.mxu0 0
      %3265 = vmatpush1.bf16.msra.mxu0 %v3252
      %3266 = vmatprep.subr.bf16.mxu0 0
      %3267 = vmatpush1.bf16.msra.mxu0 %v3253
      %3268 = vmatprep.subr.bf16.mxu0 0
      %3269 = vmatpush1.bf16.msra.mxu0 %v3254
      %3270 = vmatprep.subr.bf16.mxu0 0
      %3271 = vmatpush1.bf16.msra.mxu0 0
      %3272 = vmatprep.subr.bf16.mxu0 0
      %3273 = vmatpush1.bf16.msra.mxu0 0
      %3274 = vmatprep.subr.bf16.mxu0 0
      %3275 = vmatpush1.bf16.msra.mxu0 0
      %3276 = vmatprep.subr.bf16.mxu0 0
      %3277 = vmatpush1.bf16.msra.mxu0 0
      %3278 = vmatprep.subr.bf16.mxu0 0
      %3279 = vmatpush1.bf16.msra.mxu0 0
      %3280 = vmatprep.subr.bf16.mxu0 0
      %3281 = vmatpush1.bf16.msra.mxu0 0
      %3282 = vmatprep.subr.bf16.mxu0 0
      %3283 = vmatpush1.bf16.msra.mxu0 0
      %3284 = vmatprep.subr.bf16.mxu0 0
      %3285 = vmatpush1.bf16.msra.mxu0 0
      %3286 = vmatprep.subr.bf16.mxu0 0
      %3287 = vmatpush1.bf16.msra.mxu0 0
      %3288 = vmatprep.subr.bf16.mxu0 0
      %3289 = vmatpush1.bf16.msra.mxu0 0
      %3290 = vmatprep.subr.bf16.mxu0 0
      %3291 = vmatpush1.bf16.msra.mxu0 0
      %3292 = vmatprep.subr.bf16.mxu0 0
      %3293 = vmatpush1.bf16.msra.mxu0 0
      %3294 = vmatprep.mubr.bf16.mxu0 0
      %3295 = vmatmul.mubr.bf16.gmra.mrb[0].mxu0 %v3260
      %v3296 = vpop.f32.mrb[0].mxu0
      %v3297 = vadd.f32 %v3230, %v3296
      %v3298 = vpop.f32.mrb[0].mxu0
      %v3299 = vpop.f32.mrb[0].mxu0
      %v3300 = vpop.f32.mrb[0].mxu0
      %3301 = vdwg.mxu0
      %v3302 = vld [vmem:[#allocation4 + $0x2] sm:$0xff]
      %v3303 = vpack.c.bf16 %v3302, %v3302
      %v3304 = vld [vmem:[%s10 + $0x40] sm:$0xf]
      %v3305 = vld [vmem:[%s10 + $0x44] sm:$0xf]
      %v3306 = vld [vmem:[%s10 + $0x48] sm:$0xf]
      %v3307 = vld [vmem:[%s10 + $0x4c] sm:$0xf]
      %v3308 = vld [vmem:[%s10 + $0x50] sm:$0xf]
      %v3309 = vld [vmem:[%s10 + $0x54] sm:$0xf]
      %v3310 = vld [vmem:[%s10 + $0x58] sm:$0xf]
      %v3311 = vld [vmem:[%s10 + $0x5c] sm:$0xf]
      %v3320 = vunpack.c.l.b16 %v3304
      %v3321 = vunpack.c.l.b16 %v3305
      %v3322 = vunpack.c.l.b16 %v3306
      %v3323 = vunpack.c.l.b16 %v3307
      %v3324 = vunpack.c.l.b16 %v3308
      %v3325 = vunpack.c.l.b16 %v3309
      %v3326 = vunpack.c.l.b16 %v3310
      %v3327 = vunpack.c.l.b16 %v3311
      %v3328 = vpack.c.b16 %v3321, %v3320
      %v3329 = vpack.c.b16 %v3323, %v3322
      %v3330 = vpack.c.b16 %v3325, %v3324
      %v3331 = vpack.c.b16 %v3327, %v3326
      %v3337 = vsel %vm524, %v3303, 0
      %3339 = vmatprep.subr.bf16.mxu0 0
      %3340 = vmatpush1.bf16.msra.mxu0 %v3328
      %3341 = vmatprep.subr.bf16.mxu0 0
      %3342 = vmatpush1.bf16.msra.mxu0 %v3329
      %3343 = vmatprep.subr.bf16.mxu0 0
      %3344 = vmatpush1.bf16.msra.mxu0 %v3330
      %3345 = vmatprep.subr.bf16.mxu0 0
      %3346 = vmatpush1.bf16.msra.mxu0 %v3331
      %3347 = vmatprep.subr.bf16.mxu0 0
      %3348 = vmatpush1.bf16.msra.mxu0 0
      %3349 = vmatprep.subr.bf16.mxu0 0
      %3350 = vmatpush1.bf16.msra.mxu0 0
      %3351 = vmatprep.subr.bf16.mxu0 0
      %3352 = vmatpush1.bf16.msra.mxu0 0
      %3353 = vmatprep.subr.bf16.mxu0 0
      %3354 = vmatpush1.bf16.msra.mxu0 0
      %3355 = vmatprep.subr.bf16.mxu0 0
      %3356 = vmatpush1.bf16.msra.mxu0 0
      %3357 = vmatprep.subr.bf16.mxu0 0
      %3358 = vmatpush1.bf16.msra.mxu0 0
      %3359 = vmatprep.subr.bf16.mxu0 0
      %3360 = vmatpush1.bf16.msra.mxu0 0
      %3361 = vmatprep.subr.bf16.mxu0 0
      %3362 = vmatpush1.bf16.msra.mxu0 0
      %3363 = vmatprep.subr.bf16.mxu0 0
      %3364 = vmatpush1.bf16.msra.mxu0 0
      %3365 = vmatprep.subr.bf16.mxu0 0
      %3366 = vmatpush1.bf16.msra.mxu0 0
      %3367 = vmatprep.subr.bf16.mxu0 0
      %3368 = vmatpush1.bf16.msra.mxu0 0
      %3369 = vmatprep.subr.bf16.mxu0 0
      %3370 = vmatpush1.bf16.msra.mxu0 0
      %3371 = vmatprep.mubr.bf16.mxu0 0
      %3372 = vmatmul.mubr.bf16.gmra.mrb[0].mxu0 %v3337
      %v3373 = vpop.f32.mrb[0].mxu0
      %v3374 = vadd.f32 0.0, %v3373
      %v3375 = vpop.f32.mrb[0].mxu0
      %v3376 = vpop.f32.mrb[0].mxu0
      %v3377 = vpop.f32.mrb[0].mxu0
      %3378 = vdwg.mxu0
      %v3379 = vadd.f32 %v3297, %v3374
      %v3380 = vld [vmem:[#allocation4 + $0x4] sm:$0xff]
      %v3381 = vpack.c.bf16 %v3380, %v3380
      %v3382 = vld [vmem:[%s10 + $0x60] sm:$0xf]
      %v3383 = vld [vmem:[%s10 + $0x64] sm:$0xf]
      %v3384 = vld [vmem:[%s10 + $0x68] sm:$0xf]
      %v3385 = vld [vmem:[%s10 + $0x6c] sm:$0xf]
      %v3386 = vld [vmem:[%s10 + $0x70] sm:$0xf]
      %v3387 = vld [vmem:[%s10 + $0x74] sm:$0xf]
      %v3388 = vld [vmem:[%s10 + $0x78] sm:$0xf]
      %v3389 = vld [vmem:[%s10 + $0x7c] sm:$0xf]
      %v3398 = vunpack.c.l.b16 %v3382
      %v3399 = vunpack.c.l.b16 %v3383
      %v3400 = vunpack.c.l.b16 %v3384
      %v3401 = vunpack.c.l.b16 %v3385
      %v3402 = vunpack.c.l.b16 %v3386
      %v3403 = vunpack.c.l.b16 %v3387
      %v3404 = vunpack.c.l.b16 %v3388
      %v3405 = vunpack.c.l.b16 %v3389
      %v3406 = vpack.c.b16 %v3399, %v3398
      %v3407 = vpack.c.b16 %v3401, %v3400
      %v3408 = vpack.c.b16 %v3403, %v3402
      %v3409 = vpack.c.b16 %v3405, %v3404
      %v3415 = vsel %vm524, %v3381, 0
      %3417 = vmatprep.subr.bf16.mxu0 0
      %3418 = vmatpush1.bf16.msra.mxu0 %v3406
      %3419 = vmatprep.subr.bf16.mxu0 0
      %3420 = vmatpush1.bf16.msra.mxu0 %v3407
      %3421 = vmatprep.subr.bf16.mxu0 0
      %3422 = vmatpush1.bf16.msra.mxu0 %v3408
      %3423 = vmatprep.subr.bf16.mxu0 0
      %3424 = vmatpush1.bf16.msra.mxu0 %v3409
      %3425 = vmatprep.subr.bf16.mxu0 0
      %3426 = vmatpush1.bf16.msra.mxu0 0
      %3427 = vmatprep.subr.bf16.mxu0 0
      %3428 = vmatpush1.bf16.msra.mxu0 0
      %3429 = vmatprep.subr.bf16.mxu0 0
      %3430 = vmatpush1.bf16.msra.mxu0 0
      %3431 = vmatprep.subr.bf16.mxu0 0
      %3432 = vmatpush1.bf16.msra.mxu0 0
      %3433 = vmatprep.subr.bf16.mxu0 0
      %3434 = vmatpush1.bf16.msra.mxu0 0
      %3435 = vmatprep.subr.bf16.mxu0 0
      %3436 = vmatpush1.bf16.msra.mxu0 0
      %3437 = vmatprep.subr.bf16.mxu0 0
      %3438 = vmatpush1.bf16.msra.mxu0 0
      %3439 = vmatprep.subr.bf16.mxu0 0
      %3440 = vmatpush1.bf16.msra.mxu0 0
      %3441 = vmatprep.subr.bf16.mxu0 0
      %3442 = vmatpush1.bf16.msra.mxu0 0
      %3443 = vmatprep.subr.bf16.mxu0 0
      %3444 = vmatpush1.bf16.msra.mxu0 0
      %3445 = vmatprep.subr.bf16.mxu0 0
      %3446 = vmatpush1.bf16.msra.mxu0 0
      %3447 = vmatprep.subr.bf16.mxu0 0
      %3448 = vmatpush1.bf16.msra.mxu0 0
      %3449 = vmatprep.mubr.bf16.mxu0 0
      %3450 = vmatmul.mubr.bf16.gmra.mrb[0].mxu0 %v3415
      %v3451 = vpop.f32.mrb[0].mxu0
      %v3452 = vadd.f32 0.0, %v3451
      %v3453 = vpop.f32.mrb[0].mxu0
      %v3454 = vpop.f32.mrb[0].mxu0
      %v3455 = vpop.f32.mrb[0].mxu0
      %3456 = vdwg.mxu0
      %v3457 = vadd.f32 %v3379, %v3452
      %v3458 = vld [vmem:[#allocation4 + $0x5] sm:$0xff]
      %v3459 = vpack.c.bf16 %v3458, %v3458
      %v3460 = vld [vmem:[%s10 + $0x80] sm:$0xf]
      %v3461 = vld [vmem:[%s10 + $0x84] sm:$0xf]
      %v3462 = vld [vmem:[%s10 + $0x88] sm:$0xf]
      %v3463 = vld [vmem:[%s10 + $0x8c] sm:$0xf]
      %v3464 = vld [vmem:[%s10 + $0x90] sm:$0xf]
      %v3465 = vld [vmem:[%s10 + $0x94] sm:$0xf]
      %v3466 = vld [vmem:[%s10 + $0x98] sm:$0xf]
      %v3467 = vld [vmem:[%s10 + $0x9c] sm:$0xf]
      %v3476 = vunpack.c.l.b16 %v3460
      %v3477 = vunpack.c.l.b16 %v3461
      %v3478 = vunpack.c.l.b16 %v3462
      %v3479 = vunpack.c.l.b16 %v3463
      %v3480 = vunpack.c.l.b16 %v3464
      %v3481 = vunpack.c.l.b16 %v3465
      %v3482 = vunpack.c.l.b16 %v3466
      %v3483 = vunpack.c.l.b16 %v3467
      %v3484 = vpack.c.b16 %v3477, %v3476
      %v3485 = vpack.c.b16 %v3479, %v3478
      %v3486 = vpack.c.b16 %v3481, %v3480
      %v3487 = vpack.c.b16 %v3483, %v3482
      %v3493 = vsel %vm524, %v3459, 0
      %3495 = vmatprep.subr.bf16.mxu0 0
      %3496 = vmatpush1.bf16.msra.mxu0 %v3484
      %3497 = vmatprep.subr.bf16.mxu0 0
      %3498 = vmatpush1.bf16.msra.mxu0 %v3485
      %3499 = vmatprep.subr.bf16.mxu0 0
      %3500 = vmatpush1.bf16.msra.mxu0 %v3486
      %3501 = vmatprep.subr.bf16.mxu0 0
      %3502 = vmatpush1.bf16.msra.mxu0 %v3487
      %3503 = vmatprep.subr.bf16.mxu0 0
      %3504 = vmatpush1.bf16.msra.mxu0 0
      %3505 = vmatprep.subr.bf16.mxu0 0
      %3506 = vmatpush1.bf16.msra.mxu0 0
      %3507 = vmatprep.subr.bf16.mxu0 0
      %3508 = vmatpush1.bf16.msra.mxu0 0
      %3509 = vmatprep.subr.bf16.mxu0 0
      %3510 = vmatpush1.bf16.msra.mxu0 0
      %3511 = vmatprep.subr.bf16.mxu0 0
      %3512 = vmatpush1.bf16.msra.mxu0 0
      %3513 = vmatprep.subr.bf16.mxu0 0
      %3514 = vmatpush1.bf16.msra.mxu0 0
      %3515 = vmatprep.subr.bf16.mxu0 0
      %3516 = vmatpush1.bf16.msra.mxu0 0
      %3517 = vmatprep.subr.bf16.mxu0 0
      %3518 = vmatpush1.bf16.msra.mxu0 0
      %3519 = vmatprep.subr.bf16.mxu0 0
      %3520 = vmatpush1.bf16.msra.mxu0 0
      %3521 = vmatprep.subr.bf16.mxu0 0
      %3522 = vmatpush1.bf16.msra.mxu0 0
      %3523 = vmatprep.subr.bf16.mxu0 0
      %3524 = vmatpush1.bf16.msra.mxu0 0
      %3525 = vmatprep.subr.bf16.mxu0 0
      %3526 = vmatpush1.bf16.msra.mxu0 0
      %3527 = vmatprep.mubr.bf16.mxu0 0
      %3528 = vmatmul.mubr.bf16.gmra.mrb[0].mxu0 %v3493
      %v3529 = vpop.f32.mrb[0].mxu0
      %v3530 = vadd.f32 0.0, %v3529
      %v3531 = vpop.f32.mrb[0].mxu0
      %v3532 = vpop.f32.mrb[0].mxu0
      %v3533 = vpop.f32.mrb[0].mxu0
      %3534 = vdwg.mxu0
      %v3535 = vadd.f32 %v3457, %v3530
      %v3536 = vld [vmem:[#allocation4 + $0x6] sm:$0xff]
      %v3537 = vpack.c.bf16 %v3536, %v3536
      %v3538 = vld [vmem:[%s10 + $0xa0] sm:$0xf]
      %v3539 = vld [vmem:[%s10 + $0xa4] sm:$0xf]
      %v3540 = vld [vmem:[%s10 + $0xa8] sm:$0xf]
      %v3541 = vld [vmem:[%s10 + $0xac] sm:$0xf]
      %v3542 = vld [vmem:[%s10 + $0xb0] sm:$0xf]
      %v3543 = vld [vmem:[%s10 + $0xb4] sm:$0xf]
      %v3544 = vld [vmem:[%s10 + $0xb8] sm:$0xf]
      %v3545 = vld [vmem:[%s10 + $0xbc] sm:$0xf]
      %v3554 = vunpack.c.l.b16 %v3538
      %v3555 = vunpack.c.l.b16 %v3539
      %v3556 = vunpack.c.l.b16 %v3540
      %v3557 = vunpack.c.l.b16 %v3541
      %v3558 = vunpack.c.l.b16 %v3542
      %v3559 = vunpack.c.l.b16 %v3543
      %v3560 = vunpack.c.l.b16 %v3544
      %v3561 = vunpack.c.l.b16 %v3545
      %v3562 = vpack.c.b16 %v3555, %v3554
      %v3563 = vpack.c.b16 %v3557, %v3556
      %v3564 = vpack.c.b16 %v3559, %v3558
      %v3565 = vpack.c.b16 %v3561, %v3560
      %v3571 = vsel %vm524, %v3537, 0
      %3573 = vmatprep.subr.bf16.mxu0 0
      %3574 = vmatpush1.bf16.msra.mxu0 %v3562
      %3575 = vmatprep.subr.bf16.mxu0 0
      %3576 = vmatpush1.bf16.msra.mxu0 %v3563
      %3577 = vmatprep.subr.bf16.mxu0 0
      %3578 = vmatpush1.bf16.msra.mxu0 %v3564
      %3579 = vmatprep.subr.bf16.mxu0 0
      %3580 = vmatpush1.bf16.msra.mxu0 %v3565
      %3581 = vmatprep.subr.bf16.mxu0 0
      %3582 = vmatpush1.bf16.msra.mxu0 0
      %3583 = vmatprep.subr.bf16.mxu0 0
      %3584 = vmatpush1.bf16.msra.mxu0 0
      %3585 = vmatprep.subr.bf16.mxu0 0
      %3586 = vmatpush1.bf16.msra.mxu0 0
      %3587 = vmatprep.subr.bf16.mxu0 0
      %3588 = vmatpush1.bf16.msra.mxu0 0
      %3589 = vmatprep.subr.bf16.mxu0 0
      %3590 = vmatpush1.bf16.msra.mxu0 0
      %3591 = vmatprep.subr.bf16.mxu0 0
      %3592 = vmatpush1.bf16.msra.mxu0 0
      %3593 = vmatprep.subr.bf16.mxu0 0
      %3594 = vmatpush1.bf16.msra.mxu0 0
      %3595 = vmatprep.subr.bf16.mxu0 0
      %3596 = vmatpush1.bf16.msra.mxu0 0
      %3597 = vmatprep.subr.bf16.mxu0 0
      %3598 = vmatpush1.bf16.msra.mxu0 0
      %3599 = vmatprep.subr.bf16.mxu0 0
      %3600 = vmatpush1.bf16.msra.mxu0 0
      %3601 = vmatprep.subr.bf16.mxu0 0
      %3602 = vmatpush1.bf16.msra.mxu0 0
      %3603 = vmatprep.subr.bf16.mxu0 0
      %3604 = vmatpush1.bf16.msra.mxu0 0
      %3605 = vmatprep.mubr.bf16.mxu0 0
      %3606 = vmatmul.mubr.bf16.gmra.mrb[0].mxu0 %v3571
      %v3607 = vpop.f32.mrb[0].mxu0
      %v3608 = vadd.f32 0.0, %v3607
      %v3609 = vpop.f32.mrb[0].mxu0
      %v3610 = vpop.f32.mrb[0].mxu0
      %v3611 = vpop.f32.mrb[0].mxu0
      %3612 = vdwg.mxu0
      %v3613 = vadd.f32 %v3535, %v3608
      %v3614 = vld [vmem:[#allocation4 + $0x8] sm:$0xff]
      %v3615 = vpack.c.bf16 %v3614, %v3614
      %v3616 = vld [vmem:[%s10 + $0xc0] sm:$0xf]
      %v3617 = vld [vmem:[%s10 + $0xc4] sm:$0xf]
      %v3618 = vld [vmem:[%s10 + $0xc8] sm:$0xf]
      %v3619 = vld [vmem:[%s10 + $0xcc] sm:$0xf]
      %v3620 = vld [vmem:[%s10 + $0xd0] sm:$0xf]
      %v3621 = vld [vmem:[%s10 + $0xd4] sm:$0xf]
      %v3622 = vld [vmem:[%s10 + $0xd8] sm:$0xf]
      %v3623 = vld [vmem:[%s10 + $0xdc] sm:$0xf]
      %v3632 = vunpack.c.l.b16 %v3616
      %v3633 = vunpack.c.l.b16 %v3617
      %v3634 = vunpack.c.l.b16 %v3618
      %v3635 = vunpack.c.l.b16 %v3619
      %v3636 = vunpack.c.l.b16 %v3620
      %v3637 = vunpack.c.l.b16 %v3621
      %v3638 = vunpack.c.l.b16 %v3622
      %v3639 = vunpack.c.l.b16 %v3623
      %v3640 = vpack.c.b16 %v3633, %v3632
      %v3641 = vpack.c.b16 %v3635, %v3634
      %v3642 = vpack.c.b16 %v3637, %v3636
      %v3643 = vpack.c.b16 %v3639, %v3638
      %v3649 = vsel %vm524, %v3615, 0
      %3651 = vmatprep.subr.bf16.mxu0 0
      %3652 = vmatpush1.bf16.msra.mxu0 %v3640
      %3653 = vmatprep.subr.bf16.mxu0 0
      %3654 = vmatpush1.bf16.msra.mxu0 %v3641
      %3655 = vmatprep.subr.bf16.mxu0 0
      %3656 = vmatpush1.bf16.msra.mxu0 %v3642
      %3657 = vmatprep.subr.bf16.mxu0 0
      %3658 = vmatpush1.bf16.msra.mxu0 %v3643
      %3659 = vmatprep.subr.bf16.mxu0 0
      %3660 = vmatpush1.bf16.msra.mxu0 0
      %3661 = vmatprep.subr.bf16.mxu0 0
      %3662 = vmatpush1.bf16.msra.mxu0 0
      %3663 = vmatprep.subr.bf16.mxu0 0
      %3664 = vmatpush1.bf16.msra.mxu0 0
      %3665 = vmatprep.subr.bf16.mxu0 0
      %3666 = vmatpush1.bf16.msra.mxu0 0
      %3667 = vmatprep.subr.bf16.mxu0 0
      %3668 = vmatpush1.bf16.msra.mxu0 0
      %3669 = vmatprep.subr.bf16.mxu0 0
      %3670 = vmatpush1.bf16.msra.mxu0 0
      %3671 = vmatprep.subr.bf16.mxu0 0
      %3672 = vmatpush1.bf16.msra.mxu0 0
      %3673 = vmatprep.subr.bf16.mxu0 0
      %3674 = vmatpush1.bf16.msra.mxu0 0
      %3675 = vmatprep.subr.bf16.mxu0 0
      %3676 = vmatpush1.bf16.msra.mxu0 0
      %3677 = vmatprep.subr.bf16.mxu0 0
      %3678 = vmatpush1.bf16.msra.mxu0 0
      %3679 = vmatprep.subr.bf16.mxu0 0
      %3680 = vmatpush1.bf16.msra.mxu0 0
      %3681 = vmatprep.subr.bf16.mxu0 0
      %3682 = vmatpush1.bf16.msra.mxu0 0
      %3683 = vmatprep.mubr.bf16.mxu0 0
      %3684 = vmatmul.mubr.bf16.gmra.mrb[0].mxu0 %v3649
      %v3685 = vpop.f32.mrb[0].mxu0
      %v3686 = vadd.f32 0.0, %v3685
      %v3687 = vpop.f32.mrb[0].mxu0
      %v3688 = vpop.f32.mrb[0].mxu0
      %v3689 = vpop.f32.mrb[0].mxu0
      %3690 = vdwg.mxu0
      %v3691 = vadd.f32 %v3613, %v3686
      %v3692 = vld [vmem:[#allocation4 + $0x9] sm:$0xff]
      %v3693 = vpack.c.bf16 %v3692, %v3692
      %v3694 = vld [vmem:[%s10 + $0xe0] sm:$0xf]
      %v3695 = vld [vmem:[%s10 + $0xe4] sm:$0xf]
      %v3696 = vld [vmem:[%s10 + $0xe8] sm:$0xf]
      %v3697 = vld [vmem:[%s10 + $0xec] sm:$0xf]
      %v3698 = vld [vmem:[%s10 + $0xf0] sm:$0xf]
      %v3699 = vld [vmem:[%s10 + $0xf4] sm:$0xf]
      %v3700 = vld [vmem:[%s10 + $0xf8] sm:$0xf]
      %v3701 = vld [vmem:[%s10 + $0xfc] sm:$0xf]
      %v3710 = vunpack.c.l.b16 %v3694
      %v3711 = vunpack.c.l.b16 %v3695
      %v3712 = vunpack.c.l.b16 %v3696
      %v3713 = vunpack.c.l.b16 %v3697
      %v3714 = vunpack.c.l.b16 %v3698
      %v3715 = vunpack.c.l.b16 %v3699
      %v3716 = vunpack.c.l.b16 %v3700
      %v3717 = vunpack.c.l.b16 %v3701
      %v3718 = vpack.c.b16 %v3711, %v3710
      %v3719 = vpack.c.b16 %v3713, %v3712
      %v3720 = vpack.c.b16 %v3715, %v3714
      %v3721 = vpack.c.b16 %v3717, %v3716
      %v3727 = vsel %vm524, %v3693, 0
      %3729 = vmatprep.subr.bf16.mxu0 0
      %3730 = vmatpush1.bf16.msra.mxu0 %v3718
      %3731 = vmatprep.subr.bf16.mxu0 0
      %3732 = vmatpush1.bf16.msra.mxu0 %v3719
      %3733 = vmatprep.subr.bf16.mxu0 0
      %3734 = vmatpush1.bf16.msra.mxu0 %v3720
      %3735 = vmatprep.subr.bf16.mxu0 0
      %3736 = vmatpush1.bf16.msra.mxu0 %v3721
      %3737 = vmatprep.subr.bf16.mxu0 0
      %3738 = vmatpush1.bf16.msra.mxu0 0
      %3739 = vmatprep.subr.bf16.mxu0 0
      %3740 = vmatpush1.bf16.msra.mxu0 0
      %3741 = vmatprep.subr.bf16.mxu0 0
      %3742 = vmatpush1.bf16.msra.mxu0 0
      %3743 = vmatprep.subr.bf16.mxu0 0
      %3744 = vmatpush1.bf16.msra.mxu0 0
      %3745 = vmatprep.subr.bf16.mxu0 0
      %3746 = vmatpush1.bf16.msra.mxu0 0
      %3747 = vmatprep.subr.bf16.mxu0 0
      %3748 = vmatpush1.bf16.msra.mxu0 0
      %3749 = vmatprep.subr.bf16.mxu0 0
      %3750 = vmatpush1.bf16.msra.mxu0 0
      %3751 = vmatprep.subr.bf16.mxu0 0
      %3752 = vmatpush1.bf16.msra.mxu0 0
      %3753 = vmatprep.subr.bf16.mxu0 0
      %3754 = vmatpush1.bf16.msra.mxu0 0
      %3755 = vmatprep.subr.bf16.mxu0 0
      %3756 = vmatpush1.bf16.msra.mxu0 0
      %3757 = vmatprep.subr.bf16.mxu0 0
      %3758 = vmatpush1.bf16.msra.mxu0 0
      %3759 = vmatprep.subr.bf16.mxu0 0
      %3760 = vmatpush1.bf16.msra.mxu0 0
      %3761 = vmatprep.mubr.bf16.mxu0 0
      %3762 = vmatmul.mubr.bf16.gmra.mrb[0].mxu0 %v3727
      %v3763 = vpop.f32.mrb[0].mxu0
      %v3764 = vadd.f32 0.0, %v3763
      %v3765 = vpop.f32.mrb[0].mxu0
      %v3766 = vpop.f32.mrb[0].mxu0
      %v3767 = vpop.f32.mrb[0].mxu0
      %3768 = vdwg.mxu0
      %v3769 = vadd.f32 %v3691, %v3764
      %v3770 = vld [vmem:[#allocation4 + $0xa] sm:$0xff]
      %v3771 = vpack.c.bf16 %v3770, %v3770
      %v3772 = vld [vmem:[%s10 + $0x100] sm:$0xf]
      %v3773 = vld [vmem:[%s10 + $0x104] sm:$0xf]
      %v3774 = vld [vmem:[%s10 + $0x108] sm:$0xf]
      %v3775 = vld [vmem:[%s10 + $0x10c] sm:$0xf]
      %v3776 = vld [vmem:[%s10 + $0x110] sm:$0xf]
      %v3777 = vld [vmem:[%s10 + $0x114] sm:$0xf]
      %v3778 = vld [vmem:[%s10 + $0x118] sm:$0xf]
      %v3779 = vld [vmem:[%s10 + $0x11c] sm:$0xf]
      %v3788 = vunpack.c.l.b16 %v3772
      %v3789 = vunpack.c.l.b16 %v3773
      %v3790 = vunpack.c.l.b16 %v3774
      %v3791 = vunpack.c.l.b16 %v3775
      %v3792 = vunpack.c.l.b16 %v3776
      %v3793 = vunpack.c.l.b16 %v3777
      %v3794 = vunpack.c.l.b16 %v3778
      %v3795 = vunpack.c.l.b16 %v3779
      %v3796 = vpack.c.b16 %v3789, %v3788
      %v3797 = vpack.c.b16 %v3791, %v3790
      %v3798 = vpack.c.b16 %v3793, %v3792
      %v3799 = vpack.c.b16 %v3795, %v3794
      %v3805 = vsel %vm524, %v3771, 0
      %3807 = vmatprep.subr.bf16.mxu0 0
      %3808 = vmatpush1.bf16.msra.mxu0 %v3796
      %3809 = vmatprep.subr.bf16.mxu0 0
      %3810 = vmatpush1.bf16.msra.mxu0 %v3797
      %3811 = vmatprep.subr.bf16.mxu0 0
      %3812 = vmatpush1.bf16.msra.mxu0 %v3798
      %3813 = vmatprep.subr.bf16.mxu0 0
      %3814 = vmatpush1.bf16.msra.mxu0 %v3799
      %3815 = vmatprep.subr.bf16.mxu0 0
      %3816 = vmatpush1.bf16.msra.mxu0 0
      %3817 = vmatprep.subr.bf16.mxu0 0
      %3818 = vmatpush1.bf16.msra.mxu0 0
      %3819 = vmatprep.subr.bf16.mxu0 0
      %3820 = vmatpush1.bf16.msra.mxu0 0
      %3821 = vmatprep.subr.bf16.mxu0 0
      %3822 = vmatpush1.bf16.msra.mxu0 0
      %3823 = vmatprep.subr.bf16.mxu0 0
      %3824 = vmatpush1.bf16.msra.mxu0 0
      %3825 = vmatprep.subr.bf16.mxu0 0
      %3826 = vmatpush1.bf16.msra.mxu0 0
      %3827 = vmatprep.subr.bf16.mxu0 0
      %3828 = vmatpush1.bf16.msra.mxu0 0
      %3829 = vmatprep.subr.bf16.mxu0 0
      %3830 = vmatpush1.bf16.msra.mxu0 0
      %3831 = vmatprep.subr.bf16.mxu0 0
      %3832 = vmatpush1.bf16.msra.mxu0 0
      %3833 = vmatprep.subr.bf16.mxu0 0
      %3834 = vmatpush1.bf16.msra.mxu0 0
      %3835 = vmatprep.subr.bf16.mxu0 0
      %3836 = vmatpush1.bf16.msra.mxu0 0
      %3837 = vmatprep.subr.bf16.mxu0 0
      %3838 = vmatpush1.bf16.msra.mxu0 0
      %3839 = vmatprep.mubr.bf16.mxu0 0
      %3840 = vmatmul.mubr.bf16.gmra.mrb[0].mxu0 %v3805
      %v3841 = vpop.f32.mrb[0].mxu0
      %v3842 = vadd.f32 0.0, %v3841
      %v3843 = vpop.f32.mrb[0].mxu0
      %v3844 = vpop.f32.mrb[0].mxu0
      %v3845 = vpop.f32.mrb[0].mxu0
      %3846 = vdwg.mxu0
      %v3847 = vadd.f32 %v3769, %v3842
      %v3848 = vld [vmem:[%s11] sm:$0x1]
      %v3850 = vlaneseq
      %v3851 = vshrl.u32 %v3850, 7
      %v3852 = vsub.s32 0, %v3851
      %v3853 = vrot.slane %v3848, %v3852
      %v3855 = vmul.f32 %v3847, %v3853
      %v3856 = vld [vmem:[%s12] sm:$0x1]
      %v3858 = vlaneseq
      %v3859 = vshrl.u32 %v3858, 7
      %v3860 = vsub.s32 0, %v3859
      %v3861 = vrot.slane %v3856, %v3860
      %v3863 = vadd.f32 %v3855, %v3861
      %v3864 = vmax.f32 %v3863, 0.0
      %v3865 = vpack.c.bf16 %v3864, %v3864
      %v3866 = vld [vmem:[%s13] sm:$0xf]
      %v3867 = vld [vmem:[%s13 + $0x4] sm:$0xf]
      %v3868 = vld [vmem:[%s13 + $0x8] sm:$0xf]
      %v3869 = vld [vmem:[%s13 + $0xc] sm:$0xf]
      %v3870 = vld [vmem:[%s13 + $0x10] sm:$0xf]
      %v3871 = vld [vmem:[%s13 + $0x14] sm:$0xf]
      %v3872 = vld [vmem:[%s13 + $0x18] sm:$0xf]
      %v3873 = vld [vmem:[%s13 + $0x1c] sm:$0xf]
      %v3874 = vld [vmem:[%s13 + $0x20] sm:$0xf]
      %v3875 = vld [vmem:[%s13 + $0x24] sm:$0xf]
      %v3876 = vld [vmem:[%s13 + $0x28] sm:$0xf]
      %v3877 = vld [vmem:[%s13 + $0x2c] sm:$0xf]
      %v3878 = vld [vmem:[%s13 + $0x30] sm:$0xf]
      %v3879 = vld [vmem:[%s13 + $0x34] sm:$0xf]
      %v3880 = vld [vmem:[%s13 + $0x38] sm:$0xf]
      %v3881 = vld [vmem:[%s13 + $0x3c] sm:$0xf]
      %v3882 = vld [vmem:[%s14] sm:$0x1]
      %v3884 = vlaneseq
      %v3885 = vshrl.u32 %v3884, 7
      %v3886 = vsub.s32 0, %v3885
      %v3887 = vrot.slane %v3882, %v3886
      %v3905 = vunpack.c.l.b16 %v3866
      %v3906 = vunpack.c.l.b16 %v3867
      %v3907 = vunpack.c.l.b16 %v3868
      %v3908 = vunpack.c.l.b16 %v3869
      %v3909 = vunpack.c.l.b16 %v3870
      %v3910 = vunpack.c.l.b16 %v3871
      %v3911 = vunpack.c.l.b16 %v3872
      %v3912 = vunpack.c.l.b16 %v3873
      %v3913 = vunpack.c.l.b16 %v3874
      %v3914 = vunpack.c.l.b16 %v3875
      %v3915 = vunpack.c.l.b16 %v3876
      %v3916 = vunpack.c.l.b16 %v3877
      %v3917 = vunpack.c.l.b16 %v3878
      %v3918 = vunpack.c.l.b16 %v3879
      %v3919 = vunpack.c.l.b16 %v3880
      %v3920 = vunpack.c.l.b16 %v3881
      %v3921 = vpack.c.b16 %v3906, %v3905
      %v3922 = vpack.c.b16 %v3908, %v3907
      %v3923 = vpack.c.b16 %v3910, %v3909
      %v3924 = vpack.c.b16 %v3912, %v3911
      %v3925 = vpack.c.b16 %v3914, %v3913
      %v3926 = vpack.c.b16 %v3916, %v3915
      %v3927 = vpack.c.b16 %v3918, %v3917
      %v3928 = vpack.c.b16 %v3920, %v3919
      %3937 = vmatprep.subr.bf16.mxu0 0
      %3938 = vmatpush1.bf16.msra.mxu0 %v3921
      %3939 = vmatprep.subr.bf16.mxu0 0
      %3940 = vmatpush1.bf16.msra.mxu0 %v3922
      %3941 = vmatprep.subr.bf16.mxu0 0
      %3942 = vmatpush1.bf16.msra.mxu0 %v3923
      %3943 = vmatprep.subr.bf16.mxu0 0
      %3944 = vmatpush1.bf16.msra.mxu0 %v3924
      %3945 = vmatprep.subr.bf16.mxu0 0
      %3946 = vmatpush1.bf16.msra.mxu0 %v3925
      %3947 = vmatprep.subr.bf16.mxu0 0
      %3948 = vmatpush1.bf16.msra.mxu0 %v3926
      %3949 = vmatprep.subr.bf16.mxu0 0
      %3950 = vmatpush1.bf16.msra.mxu0 %v3927
      %3951 = vmatprep.subr.bf16.mxu0 0
      %3952 = vmatpush1.bf16.msra.mxu0 %v3928
      %3953 = vmatprep.subr.bf16.mxu0 0
      %3954 = vmatpush1.bf16.msra.mxu0 0
      %3955 = vmatprep.subr.bf16.mxu0 0
      %3956 = vmatpush1.bf16.msra.mxu0 0
      %3957 = vmatprep.subr.bf16.mxu0 0
      %3958 = vmatpush1.bf16.msra.mxu0 0
      %3959 = vmatprep.subr.bf16.mxu0 0
      %3960 = vmatpush1.bf16.msra.mxu0 0
      %3961 = vmatprep.subr.bf16.mxu0 0
      %3962 = vmatpush1.bf16.msra.mxu0 0
      %3963 = vmatprep.subr.bf16.mxu0 0
      %3964 = vmatpush1.bf16.msra.mxu0 0
      %3965 = vmatprep.subr.bf16.mxu0 0
      %3966 = vmatpush1.bf16.msra.mxu0 0
      %3967 = vmatprep.subr.bf16.mxu0 0
      %3968 = vmatpush1.bf16.msra.mxu0 0
      %3969 = vmatprep.mubr.bf16.mxu0 0
      %3970 = vmatmul.mubr.bf16.gmra.mrb[0].mxu0 %v3865
      %v3971 = vpop.f32.mrb[0].mxu0
      %v3972 = vadd.f32 %v3887, %v3971
      %v3973 = vpop.f32.mrb[0].mxu0
      %v3974 = vpop.f32.mrb[0].mxu0
      %v3975 = vpop.f32.mrb[0].mxu0
      %3976 = vdwg.mxu0
      %3977 = vst [vmem:[%s492] sm:$0xff] %v3972
      %p3978 = scmp.lt.s32.totalorder %s26, 1
      %s3979 = scalar_select %p3978, %s26, 1
      %s3980 = smul.addr %s3979, 8
      %s3981 = scalar_lea.vmem %s15, %s3980
      // Predicated region
      $region81: #{missile_detector_forward.1} parent=79 // pred_check
        %p3982 = pneg %p364
      $region82: #{missile_detector_forward.1} parent=79 // pred_check_branch
        %3984 = sbr.rel (%p3982) target = $region84
      $region83: #{missile_detector_forward.1} parent=79 // pred_region
        _
      $region84: #{missile_detector_forward.1} parent=79 // pred_fallthru
        _
    $region80: #{missile_detector_forward.1} parent=5 // pred_fallthru
      _
    %p3985 = scmp.le.s32.totalorder 2, %s21
    // Predicated region
    $region85: #{missile_detector_forward.1} parent=5 // pred_check
      %p3986 = pneg %p3985
    $region86: #{missile_detector_forward.1} parent=5 // pred_check_branch
      %3988 = sbr.rel (%p3986) target = $region88
    $region87: #{missile_detector_forward.1} parent=5 // pred_region
      %s3989 = ssub.s32 %s21, 2
      // Predicated region
      $region89: #{missile_detector_forward.1} parent=87 // pred_check
        %p3990 = pneg %p370
      $region90: #{missile_detector_forward.1} parent=87 // pred_check_branch
        %3992 = sbr.rel (%p3990) target = $region92
      $region91: #{missile_detector_forward.1} parent=87 // pred_region
        %p3993 = scmp.lt.s32.totalorder %s27, 1
        %s3994 = scalar_select %p3993, %s27, 1
        %s3995 = smul.addr %s3994, 8
        %s3996 = scalar_lea.vmem %s15, %s3995
      $region92: #{missile_detector_forward.1} parent=87 // pred_fallthru
        _
    $region88: #{missile_detector_forward.1} parent=5 // pred_fallthru
      _
  $region6: #{missile_detector_forward.1} parent=0 // loop_footer
    %s25 = sadd.s32 1, %s21
  $region7: #{missile_detector_forward.1} parent=0 // loop_footer_branch
    %20 = sbr.rel target = $region3
  $region8: #{missile_detector_forward.1} parent=0 // loop_exit
    _

</llo_original>
